<compile_context>
chip_gen: v6e
topology: v6e:2x2x1
jax: 0.10.0
libtpu: 0.0.40
codegen_flags: <defaults>
</compile_context>

<pallas_src>
from functools import partial

import jax
import jax.numpy as jnp
from jax import lax
from jax.experimental import pallas as pl
from jax.experimental.pallas import tpu as pltpu

BN_EPS = 1e-5


# ------------------------------ Pallas kernels -------------------------------

def _mm_stats_kernel(w_ref, p_ref, y_ref, sum_ref, sq_ref):
    """y = W (Cout,K) @ P (K,tm); accumulate per-channel sum / sum-of-squares."""
    first = (pl.program_id(0) == 0) & (pl.program_id(1) == 0)

    @pl.when(first)
    def _():
        sum_ref[...] = jnp.zeros_like(sum_ref)
        sq_ref[...] = jnp.zeros_like(sq_ref)

    y = jnp.dot(w_ref[...], p_ref[...], preferred_element_type=jnp.float32)
    y_ref[...] = y
    sum_ref[...] += jnp.sum(y, axis=1, keepdims=True)
    sq_ref[...] += jnp.sum(y * y, axis=1, keepdims=True)


def _bn_relu_kernel(inv_count, y_ref, sum_ref, sq_ref, g_ref, b_ref, o_ref):
    """Training-mode BatchNorm (stats from kernel A) + ReLU on a (Cout, tm) tile."""
    mean = sum_ref[...] * inv_count                       # (Cout, 1)
    var = sq_ref[...] * inv_count - mean * mean
    scale = g_ref[...] * lax.rsqrt(var + BN_EPS)
    shift = b_ref[...] - mean * scale
    o_ref[...] = jnp.maximum(y_ref[...] * scale + shift, 0.0).astype(o_ref.dtype)


def _mm_tanh_kernel(w_ref, p_ref, o_ref):
    y = jnp.dot(w_ref[...], p_ref[...], preferred_element_type=jnp.float32)
    o_ref[...] = jnp.tanh(y).astype(o_ref.dtype)


# ------------------------------ pallas_call wrappers --------------------------

def _pick_tm(M, per_col_bytes, budget=16 << 20):
    """Largest lane tile: a multiple of 128 dividing M (or M itself when M is not
    128-aligned), capped by a conservative double-buffered VMEM budget."""
    if M % 128 != 0:
        return M
    tm = min(M, 2048)
    tm -= tm % 128
    while tm > 128 and (M % tm != 0 or tm * per_col_bytes > budget):
        tm -= 128
    return tm


def matmul_bn_stats(wmats, patches):
    """wmats (P,Cout,K) bf16, patches (P,K,M) bf16 ->
       y (P,Cout,M) f32, per-channel sum (Cout,1), sumsq (Cout,1)."""
    P, Cout, K = wmats.shape
    M = patches.shape[2]
    tm = _pick_tm(M, per_col_bytes=2 * (2 * K + 4 * Cout))
    return pl.pallas_call(
        _mm_stats_kernel,
        out_shape=(jax.ShapeDtypeStruct((P, Cout, M), jnp.float32),
                   jax.ShapeDtypeStruct((Cout, 1), jnp.float32),
                   jax.ShapeDtypeStruct((Cout, 1), jnp.float32)),
        grid=(P, M // tm),
        in_specs=[
            pl.BlockSpec((None, Cout, K), lambda ph, m: (ph, 0, 0)),
            pl.BlockSpec((None, K, tm), lambda ph, m: (ph, 0, m)),
        ],
        out_specs=(
            pl.BlockSpec((None, Cout, tm), lambda ph, m: (ph, 0, m)),
            pl.BlockSpec((Cout, 1), lambda ph, m: (0, 0)),   # resident accumulators
            pl.BlockSpec((Cout, 1), lambda ph, m: (0, 0)),
        ),
        compiler_params=pltpu.CompilerParams(
            dimension_semantics=("arbitrary", "arbitrary")),
    )(wmats, patches)


def bn_relu(y, s, sq, gamma, beta, count):
    P, Cout, M = y.shape
    tm = _pick_tm(M, per_col_bytes=2 * (4 * Cout + 4 * Cout))
    kern = partial(_bn_relu_kernel, 1.0 / float(count))
    return pl.pallas_call(
        kern,
        out_shape=jax.ShapeDtypeStruct((P, Cout, M), jnp.float32),
        grid=(P, M // tm),
        in_specs=[
            pl.BlockSpec((None, Cout, tm), lambda ph, m: (ph, 0, m)),
            pl.BlockSpec((Cout, 1), lambda ph, m: (0, 0)),
            pl.BlockSpec((Cout, 1), lambda ph, m: (0, 0)),
            pl.BlockSpec((Cout, 1), lambda ph, m: (0, 0)),
            pl.BlockSpec((Cout, 1), lambda ph, m: (0, 0)),
        ],
        out_specs=pl.BlockSpec((None, Cout, tm), lambda ph, m: (ph, 0, m)),
        compiler_params=pltpu.CompilerParams(
            dimension_semantics=("parallel", "parallel")),
    )(y, s, sq, gamma, beta)


def matmul_tanh(wmats, patches):
    P, Cout, K = wmats.shape
    M = patches.shape[2]
    tm = _pick_tm(M, per_col_bytes=2 * (2 * K + 4 * Cout))
    return pl.pallas_call(
        _mm_tanh_kernel,
        out_shape=jax.ShapeDtypeStruct((P, Cout, M), jnp.float32),
        grid=(P, M // tm),
        in_specs=[
            pl.BlockSpec((None, Cout, K), lambda ph, m: (ph, 0, 0)),
            pl.BlockSpec((None, K, tm), lambda ph, m: (ph, 0, m)),
        ],
        out_specs=pl.BlockSpec((None, Cout, tm), lambda ph, m: (ph, 0, m)),
        compiler_params=pltpu.CompilerParams(
            dimension_semantics=("parallel", "parallel")),
    )(wmats, patches)


# --------------------------- plain-JAX glue (layout) --------------------------

# _KH[phase][tap] -> ConvTranspose2d kernel index for stride=2, pad=1, k=4.
_KH = ((3, 1), (2, 0))


def _deconv1_matrices(x, wt):
    """ConvTranspose2d(stride=1, pad=0, k=4) as one transposed matmul.
       Returns patches^T (1,K,M) bf16, W^T (1,Cout,K) bf16, (N, OH, OW)."""
    N, Cin, H, W = x.shape
    Cout, k = wt.shape[1], wt.shape[2]
    OH, OW = H + k - 1, W + k - 1
    p = k - 1
    xp = jnp.pad(x, ((0, 0), (0, 0), (p, p), (p, p)))
    parts = [xp[:, :, kh:kh + OH, kw:kw + OW] for kh in range(k) for kw in range(k)]
    pat = jnp.stack(parts, axis=2)                               # (N, Cin, k*k, OH, OW)
    pat = pat.transpose(1, 2, 0, 3, 4).reshape(Cin * k * k, N * OH * OW)
    wT = wt[:, :, ::-1, ::-1].transpose(1, 0, 2, 3).reshape(Cout, Cin * k * k)
    return (pat[None].astype(jnp.bfloat16), wT[None].astype(jnp.bfloat16),
            (N, OH, OW))


def _deconv2_matrices(x, wt):
    """ConvTranspose2d(stride=2, pad=1, k=4) via sub-pixel decomposition: four
       output phases, each a stride-1 conv with a 2x2 tap subset (no zeros).
       Returns patches^T (4, 4*Cin, M) bf16, W^T (4, Cout, 4*Cin) bf16, (N,H,W)."""
    N, Cin, H, W = x.shape
    Cout = wt.shape[1]
    xp = jnp.pad(x, ((0, 0), (0, 0), (1, 1), (1, 1)))
    pats, wms = [], []
    for a in range(2):
        for b in range(2):
            parts = [xp[:, :, a + dh:a + dh + H, b + dw:b + dw + W]
                     for dh in range(2) for dw in range(2)]
            pat = jnp.stack(parts, axis=2)                       # (N, Cin, 4, H, W)
            pats.append(pat.transpose(1, 2, 0, 3, 4).reshape(Cin * 4, N * H * W))
            taps = [wt[:, :, _KH[a][dh], _KH[b][dw]]
                    for dh in range(2) for dw in range(2)]       # each (Cin, Cout)
            wm = jnp.stack(taps, axis=1)                         # (Cin, 4, Cout)
            wms.append(wm.transpose(2, 0, 1).reshape(Cout, Cin * 4))
    return (jnp.stack(pats, 0).astype(jnp.bfloat16),
            jnp.stack(wms, 0).astype(jnp.bfloat16), (N, H, W))


def _phases_to_nchw(y, N, H, W):
    """(4, Cout, N*H*W) with phase = a*2+b  ->  (N, Cout, 2H, 2W)."""
    Cout = y.shape[1]
    y = y.reshape(2, 2, Cout, N, H, W)
    y = y.transpose(3, 2, 4, 0, 5, 1)                            # (N, Cout, H, a, W, b)
    return y.reshape(N, Cout, 2 * H, 2 * W)


def _layer1_bn_relu(x, wt, gamma, beta):
    pat, wT, (N, OH, OW) = _deconv1_matrices(x, wt)
    Cout = wT.shape[1]
    y, s, sq = matmul_bn_stats(wT, pat)
    act = bn_relu(y, s, sq, gamma.reshape(-1, 1), beta.reshape(-1, 1),
                  count=pat.shape[0] * pat.shape[2])
    return act.reshape(Cout, N, OH, OW).transpose(1, 0, 2, 3)


def _layer2_bn_relu(x, wt, gamma, beta):
    pat, wm, (N, H, W) = _deconv2_matrices(x, wt)
    y, s, sq = matmul_bn_stats(wm, pat)
    act = bn_relu(y, s, sq, gamma.reshape(-1, 1), beta.reshape(-1, 1),
                  count=pat.shape[0] * pat.shape[2])
    return _phases_to_nchw(act, N, H, W)


def _layer_tanh(x, wt):
    pat, wm, (N, H, W) = _deconv2_matrices(x, wt)
    y = matmul_tanh(wm, pat)
    return _phases_to_nchw(y, N, H, W)


@jax.jit
def generator_forward(x, params):
    x = _layer1_bn_relu(x, params["w1"], params["g1"], params["b1"])
    x = _layer2_bn_relu(x, params["w2"], params["g2"], params["b2"])
    x = _layer2_bn_relu(x, params["w3"], params["g3"], params["b3"])
    return _layer_tanh(x, params["w4"])


# ------------------------------ pure-JAX reference ----------------------------

def _ref_deconv(x, wt, stride, pad):
    k = wt.shape[2]
    w = wt[:, :, ::-1, ::-1].transpose(1, 0, 2, 3)  # (Cout, Cin, kH, kW)
    p = k - 1 - pad
    return lax.conv_general_dilated(
        x, w, window_strides=(1, 1), padding=((p, p), (p, p)),
        lhs_dilation=(stride, stride),
        dimension_numbers=("NCHW", "OIHW", "NCHW"))


def _ref_bn_relu(y, gamma, beta):
    mean = jnp.mean(y, axis=(0, 2, 3), keepdims=True)
    var = jnp.mean((y - mean) ** 2, axis=(0, 2, 3), keepdims=True)
    yhat = (y - mean) * lax.rsqrt(var + BN_EPS)
    out = yhat * gamma[None, :, None, None] + beta[None, :, None, None]
    return jnp.maximum(out, 0.0)


def generator_reference(x, params):
    x = _ref_bn_relu(_ref_deconv(x, params["w1"], 1, 0), params["g1"], params["b1"])
    x = _ref_bn_relu(_ref_deconv(x, params["w2"], 2, 1), params["g2"], params["b2"])
    x = _ref_bn_relu(_ref_deconv(x, params["w3"], 2, 1), params["g3"], params["b3"])
    return jnp.tanh(_ref_deconv(x, params["w4"], 2, 1))


# ------------------------------------ main ------------------------------------

def init_params(key, in_dim, hidden_dim, out_dim):
    k1, k2, k3, k4 = jax.random.split(key, 4)
    def w(k, cin, cout):
        return (0.02 * jax.random.normal(k, (cin, cout, 4, 4))).astype(jnp.float32)
    h4, h2, h1 = hidden_dim * 4, hidden_dim * 2, hidden_dim
    return {
        "w1": w(k1, in_dim, h4), "g1": jnp.ones((h4,), jnp.float32), "b1": jnp.zeros((h4,), jnp.float32),
        "w2": w(k2, h4, h2),     "g2": jnp.ones((h2,), jnp.float32), "b2": jnp.zeros((h2,), jnp.float32),
        "w3": w(k3, h2, h1),     "g3": jnp.ones((h1,), jnp.float32), "b3": jnp.zeros((h1,), jnp.float32),
        "w4": w(k4, h1, out_dim),
    }


if __name__ == "__main__":
    in_dim, hidden_dim, out_dim = 16, 8, 3
    batch = 2

    key = jax.random.PRNGKey(0)
    kx, kp = jax.random.split(key)
    x = jax.random.normal(kx, (batch, in_dim, 1, 1), dtype=jnp.float32)
    params = init_params(kp, in_dim, hidden_dim, out_dim)

    out = generator_forward(x, params)
    out = jax.block_until_ready(out)

    assert out.shape == (batch, out_dim, 32, 32), out.shape
    assert jnp.all(jnp.isfinite(out))

    ref = generator_reference(x, params)
    assert jnp.allclose(out, ref, rtol=5e-2, atol=5e-2), float(jnp.max(jnp.abs(out - ref)))

    print("KERNEL_OK")
</pallas_src>

<mosaic_0001>
module attributes {stable_mosaic.version = 11 : i64} {
  func.func @_mm_stats_kernel(%arg0: i32, %arg1: i32, %arg2: memref<1x32x256xbf16, #tpu.memory_space<vmem>>, %arg3: memref<1x256x32xbf16, #tpu.memory_space<vmem>>, %arg4: memref<1x32x32xf32, #tpu.memory_space<vmem>>, %arg5: memref<32x1xf32, #tpu.memory_space<vmem>>, %arg6: memref<32x1xf32, #tpu.memory_space<vmem>>) attributes {dimension_semantics = [#tpu.dimension_semantics<arbitrary>, #tpu.dimension_semantics<arbitrary>], iteration_bounds = array<i64: 1, 1>, scalar_prefetch = 0 : i64, scratch_operands = 0 : i64, tpu.core_type = #tpu.core_type<tc>, window_params = [{transform_indices = @transform_0, window_bounds = array<i64: 1, 32, 256>}, {transform_indices = @transform_1, window_bounds = array<i64: 1, 256, 32>}, {transform_indices = @transform_2, window_bounds = array<i64: 1, 32, 32>}, {pipeline_mode = #tpu.pipeline_mode<synchronous>, transform_indices = @transform_3, window_bounds = array<i64: 32, 1>}, {pipeline_mode = #tpu.pipeline_mode<synchronous>, transform_indices = @transform_4, window_bounds = array<i64: 32, 1>}]} {
    %c0_i32 = arith.constant 0 : i32
    %0 = arith.cmpi eq, %arg0, %c0_i32 : i32
    %c0_i32_0 = arith.constant 0 : i32
    %1 = arith.cmpi eq, %arg1, %c0_i32_0 : i32
    %2 = arith.andi %0, %1 : i1
    %3 = arith.extui %2 : i1 to i32
    %c0_i32_1 = arith.constant 0 : i32
    %4 = arith.cmpi ne, %3, %c0_i32_1 : i32
    scf.if %4 {
      %cst_20 = arith.constant 0.000000e+00 : f32
      %24 = vector.broadcast %cst_20 : f32 to vector<32x1xf32>
      %c0_21 = arith.constant 0 : index
      %c0_22 = arith.constant 0 : index
      %25 = vector.load %arg5[%c0_21, %c0_22] : memref<32x1xf32, #tpu.memory_space<vmem>>, vector<32x1xf32>
      tpu.vector_store %arg5[%c0_21, %c0_22], %24 {strides = array<i32>} : memref<32x1xf32, #tpu.memory_space<vmem>>, vector<32x1xf32>,
      %cst_23 = arith.constant 0.000000e+00 : f32
      %26 = vector.broadcast %cst_23 : f32 to vector<32x1xf32>
      %c0_24 = arith.constant 0 : index
      %c0_25 = arith.constant 0 : index
      %27 = vector.load %arg6[%c0_24, %c0_25] : memref<32x1xf32, #tpu.memory_space<vmem>>, vector<32x1xf32>
      tpu.vector_store %arg6[%c0_24, %c0_25], %26 {strides = array<i32>} : memref<32x1xf32, #tpu.memory_space<vmem>>, vector<32x1xf32>,
    } else {
    }
    %c0 = arith.constant 0 : index
    %c0_2 = arith.constant 0 : index
    %c0_3 = arith.constant 0 : index
    %5 = vector.load %arg2[%c0, %c0_2, %c0_3] : memref<1x32x256xbf16, #tpu.memory_space<vmem>>, vector<1x32x256xbf16>
    %6 = vector.shape_cast %5 : vector<1x32x256xbf16> to vector<32x256xbf16>
    %c0_4 = arith.constant 0 : index
    %c0_5 = arith.constant 0 : index
    %c0_6 = arith.constant 0 : index
    %7 = vector.load %arg3[%c0_4, %c0_5, %c0_6] : memref<1x256x32xbf16, #tpu.memory_space<vmem>>, vector<1x256x32xbf16>
    %8 = vector.shape_cast %7 : vector<1x256x32xbf16> to vector<256x32xbf16>
    %cst = arith.constant dense<0.000000e+00> : vector<32x32xf32>
    %9 = tpu.matmul %6, %8, %cst {dimension_numbers = #tpu.dot_dimension_numbers<[1], [0], [0], [1], [0, 0, 1, 1], [], []>} : vector<32x256xbf16>, vector<256x32xbf16>, vector<32x32xf32> -> vector<32x32xf32>
    %c0_7 = arith.constant 0 : index
    %c0_8 = arith.constant 0 : index
    %c0_9 = arith.constant 0 : index
    %10 = vector.load %arg4[%c0_7, %c0_8, %c0_9] : memref<1x32x32xf32, #tpu.memory_space<vmem>>, vector<1x32x32xf32>
    %11 = vector.shape_cast %10 : vector<1x32x32xf32> to vector<32x32xf32>
    %12 = vector.shape_cast %9 : vector<32x32xf32> to vector<1x32x32xf32>
    tpu.vector_store %arg4[%c0_7, %c0_8, %c0_9], %12 {strides = array<i32>} : memref<1x32x32xf32, #tpu.memory_space<vmem>>, vector<1x32x32xf32>,
    %c0_10 = arith.constant 0 : index
    %c0_11 = arith.constant 0 : index
    %13 = vector.load %arg5[%c0_10, %c0_11] : memref<32x1xf32, #tpu.memory_space<vmem>>, vector<32x1xf32>
    %cst_12 = arith.constant dense<0.000000e+00> : vector<32xf32>
    %14 = vector.multi_reduction <add>, %9, %cst_12 [1] : vector<32x32xf32> to vector<32xf32>
    %15 = vector.shape_cast %14 : vector<32xf32> to vector<32x1xf32>
    %16 = arith.addf %13, %15 : vector<32x1xf32>
    %c0_13 = arith.constant 0 : index
    %c0_14 = arith.constant 0 : index
    %17 = vector.load %arg5[%c0_13, %c0_14] : memref<32x1xf32, #tpu.memory_space<vmem>>, vector<32x1xf32>
    tpu.vector_store %arg5[%c0_13, %c0_14], %16 {strides = array<i32>} : memref<32x1xf32, #tpu.memory_space<vmem>>, vector<32x1xf32>,
    %c0_15 = arith.constant 0 : index
    %c0_16 = arith.constant 0 : index
    %18 = vector.load %arg6[%c0_15, %c0_16] : memref<32x1xf32, #tpu.memory_space<vmem>>, vector<32x1xf32>
    %19 = arith.mulf %9, %9 : vector<32x32xf32>
    %cst_17 = arith.constant dense<0.000000e+00> : vector<32xf32>
    %20 = vector.multi_reduction <add>, %19, %cst_17 [1] : vector<32x32xf32> to vector<32xf32>
    %21 = vector.shape_cast %20 : vector<32xf32> to vector<32x1xf32>
    %22 = arith.addf %18, %21 : vector<32x1xf32>
    %c0_18 = arith.constant 0 : index
    %c0_19 = arith.constant 0 : index
    %23 = vector.load %arg6[%c0_18, %c0_19] : memref<32x1xf32, #tpu.memory_space<vmem>>, vector<32x1xf32>
    tpu.vector_store %arg6[%c0_18, %c0_19], %22 {strides = array<i32>} : memref<32x1xf32, #tpu.memory_space<vmem>>, vector<32x1xf32>,
    return
  }
  func.func @transform_0(%arg0: i32, %arg1: i32) -> (i32, i32, i32) {
    %c0_i32 = arith.constant 0 : i32
    %c0_i32_0 = arith.constant 0 : i32
    %c0_i32_1 = arith.constant 0 : i32
    return %arg0, %c0_i32, %c0_i32_0 : i32, i32, i32
  }
  func.func @transform_1(%arg0: i32, %arg1: i32) -> (i32, i32, i32) {
    %c0_i32 = arith.constant 0 : i32
    %c0_i32_0 = arith.constant 0 : i32
    return %arg0, %c0_i32, %arg1 : i32, i32, i32
  }
  func.func @transform_2(%arg0: i32, %arg1: i32) -> (i32, i32, i32) {
    %c0_i32 = arith.constant 0 : i32
    %c0_i32_0 = arith.constant 0 : i32
    return %arg0, %c0_i32, %arg1 : i32, i32, i32
  }
  func.func @transform_3(%arg0: i32, %arg1: i32) -> (i32, i32) {
    %c0_i32 = arith.constant 0 : i32
    %c0_i32_0 = arith.constant 0 : i32
    %c0_i32_1 = arith.constant 0 : i32
    return %c0_i32, %c0_i32_0 : i32, i32
  }
  func.func @transform_4(%arg0: i32, %arg1: i32) -> (i32, i32) {
    %c0_i32 = arith.constant 0 : i32
    %c0_i32_0 = arith.constant 0 : i32
    %c0_i32_1 = arith.constant 0 : i32
    return %c0_i32, %c0_i32_0 : i32, i32
  }
}

module attributes {stable_mosaic.version = 11 : i64} {
  func.func @_bn_relu_kernel(%arg0: i32, %arg1: i32, %arg2: memref<1x32x32xf32, #tpu.memory_space<vmem>>, %arg3: memref<32x1xf32, #tpu.memory_space<vmem>>, %arg4: memref<32x1xf32, #tpu.memory_space<vmem>>, %arg5: memref<32x1xf32, #tpu.memory_space<vmem>>, %arg6: memref<32x1xf32, #tpu.memory_space<vmem>>, %arg7: memref<1x32x32xf32, #tpu.memory_space<vmem>>) attributes {dimension_semantics = [#tpu.dimension_semantics<parallel>, #tpu.dimension_semantics<parallel>], iteration_bounds = array<i64: 1, 1>, scalar_prefetch = 0 : i64, scratch_operands = 0 : i64, tpu.core_type = #tpu.core_type<tc>, window_params = [{transform_indices = @transform_0, window_bounds = array<i64: 1, 32, 32>}, {pipeline_mode = #tpu.pipeline_mode<synchronous>, transform_indices = @transform_1, window_bounds = array<i64: 32, 1>}, {pipeline_mode = #tpu.pipeline_mode<synchronous>, transform_indices = @transform_2, window_bounds = array<i64: 32, 1>}, {pipeline_mode = #tpu.pipeline_mode<synchronous>, transform_indices = @transform_3, window_bounds = array<i64: 32, 1>}, {pipeline_mode = #tpu.pipeline_mode<synchronous>, transform_indices = @transform_4, window_bounds = array<i64: 32, 1>}, {transform_indices = @transform_5, window_bounds = array<i64: 1, 32, 32>}]} {
    %c0 = arith.constant 0 : index
    %c0_0 = arith.constant 0 : index
    %0 = vector.load %arg3[%c0, %c0_0] : memref<32x1xf32, #tpu.memory_space<vmem>>, vector<32x1xf32>
    %cst = arith.constant 3.125000e-02 : f32
    %1 = vector.broadcast %cst : f32 to vector<32x1xf32>
    %2 = arith.mulf %0, %1 : vector<32x1xf32>
    %c0_1 = arith.constant 0 : index
    %c0_2 = arith.constant 0 : index
    %3 = vector.load %arg4[%c0_1, %c0_2] : memref<32x1xf32, #tpu.memory_space<vmem>>, vector<32x1xf32>
    %cst_3 = arith.constant 3.125000e-02 : f32
    %4 = vector.broadcast %cst_3 : f32 to vector<32x1xf32>
    %5 = arith.mulf %3, %4 : vector<32x1xf32>
    %6 = arith.mulf %2, %2 : vector<32x1xf32>
    %7 = arith.subf %5, %6 : vector<32x1xf32>
    %c0_4 = arith.constant 0 : index
    %c0_5 = arith.constant 0 : index
    %8 = vector.load %arg5[%c0_4, %c0_5] : memref<32x1xf32, #tpu.memory_space<vmem>>, vector<32x1xf32>
    %cst_6 = arith.constant 9.99999974E-6 : f32
    %9 = vector.broadcast %cst_6 : f32 to vector<32x1xf32>
    %10 = arith.addf %7, %9 : vector<32x1xf32>
    %11 = math.rsqrt %10 : vector<32x1xf32>
    %12 = arith.mulf %8, %11 : vector<32x1xf32>
    %c0_7 = arith.constant 0 : index
    %c0_8 = arith.constant 0 : index
    %13 = vector.load %arg6[%c0_7, %c0_8] : memref<32x1xf32, #tpu.memory_space<vmem>>, vector<32x1xf32>
    %14 = arith.mulf %2, %12 : vector<32x1xf32>
    %15 = arith.subf %13, %14 : vector<32x1xf32>
    %c0_9 = arith.constant 0 : index
    %c0_10 = arith.constant 0 : index
    %c0_11 = arith.constant 0 : index
    %16 = vector.load %arg2[%c0_9, %c0_10, %c0_11] : memref<1x32x32xf32, #tpu.memory_space<vmem>>, vector<1x32x32xf32>
    %17 = vector.shape_cast %16 : vector<1x32x32xf32> to vector<32x32xf32>
    %18 = vector.broadcast %12 : vector<32x1xf32> to vector<32x32xf32>
    %19 = arith.mulf %17, %18 : vector<32x32xf32>
    %20 = vector.broadcast %15 : vector<32x1xf32> to vector<32x32xf32>
    %21 = arith.addf %19, %20 : vector<32x32xf32>
    %cst_12 = arith.constant 0.000000e+00 : f32
    %22 = vector.broadcast %cst_12 : f32 to vector<32x32xf32>
    %23 = arith.maximumf %21, %22 : vector<32x32xf32>
    %c0_13 = arith.constant 0 : index
    %c0_14 = arith.constant 0 : index
    %c0_15 = arith.constant 0 : index
    %24 = vector.load %arg7[%c0_13, %c0_14, %c0_15] : memref<1x32x32xf32, #tpu.memory_space<vmem>>, vector<1x32x32xf32>
    %25 = vector.shape_cast %24 : vector<1x32x32xf32> to vector<32x32xf32>
    %26 = vector.shape_cast %23 : vector<32x32xf32> to vector<1x32x32xf32>
    tpu.vector_store %arg7[%c0_13, %c0_14, %c0_15], %26 {strides = array<i32>} : memref<1x32x32xf32, #tpu.memory_space<vmem>>, vector<1x32x32xf32>,
    return
  }
  func.func @transform_0(%arg0: i32, %arg1: i32) -> (i32, i32, i32) {
    %c0_i32 = arith.constant 0 : i32
    %c0_i32_0 = arith.constant 0 : i32
    return %arg0, %c0_i32, %arg1 : i32, i32, i32
  }
  func.func @transform_1(%arg0: i32, %arg1: i32) -> (i32, i32) {
    %c0_i32 = arith.constant 0 : i32
    %c0_i32_0 = arith.constant 0 : i32
    %c0_i32_1 = arith.constant 0 : i32
    return %c0_i32, %c0_i32_0 : i32, i32
  }
  func.func @transform_2(%arg0: i32, %arg1: i32) -> (i32, i32) {
    %c0_i32 = arith.constant 0 : i32
    %c0_i32_0 = arith.constant 0 : i32
    %c0_i32_1 = arith.constant 0 : i32
    return %c0_i32, %c0_i32_0 : i32, i32
  }
  func.func @transform_3(%arg0: i32, %arg1: i32) -> (i32, i32) {
    %c0_i32 = arith.constant 0 : i32
    %c0_i32_0 = arith.constant 0 : i32
    %c0_i32_1 = arith.constant 0 : i32
    return %c0_i32, %c0_i32_0 : i32, i32
  }
  func.func @transform_4(%arg0: i32, %arg1: i32) -> (i32, i32) {
    %c0_i32 = arith.constant 0 : i32
    %c0_i32_0 = arith.constant 0 : i32
    %c0_i32_1 = arith.constant 0 : i32
    return %c0_i32, %c0_i32_0 : i32, i32
  }
  func.func @transform_5(%arg0: i32, %arg1: i32) -> (i32, i32, i32) {
    %c0_i32 = arith.constant 0 : i32
    %c0_i32_0 = arith.constant 0 : i32
    return %arg0, %c0_i32, %arg1 : i32, i32, i32
  }
}

module attributes {stable_mosaic.version = 11 : i64} {
  func.func @_mm_stats_kernel(%arg0: i32, %arg1: i32, %arg2: memref<1x16x128xbf16, #tpu.memory_space<vmem>>, %arg3: memref<1x128x32xbf16, #tpu.memory_space<vmem>>, %arg4: memref<1x16x32xf32, #tpu.memory_space<vmem>>, %arg5: memref<16x1xf32, #tpu.memory_space<vmem>>, %arg6: memref<16x1xf32, #tpu.memory_space<vmem>>) attributes {dimension_semantics = [#tpu.dimension_semantics<arbitrary>, #tpu.dimension_semantics<arbitrary>], iteration_bounds = array<i64: 4, 1>, scalar_prefetch = 0 : i64, scratch_operands = 0 : i64, tpu.core_type = #tpu.core_type<tc>, window_params = [{transform_indices = @transform_0, window_bounds = array<i64: 1, 16, 128>}, {transform_indices = @transform_1, window_bounds = array<i64: 1, 128, 32>}, {transform_indices = @transform_2, window_bounds = array<i64: 1, 16, 32>}, {pipeline_mode = #tpu.pipeline_mode<synchronous>, transform_indices = @transform_3, window_bounds = array<i64: 16, 1>}, {pipeline_mode = #tpu.pipeline_mode<synchronous>, transform_indices = @transform_4, window_bounds = array<i64: 16, 1>}]} {
    %c0_i32 = arith.constant 0 : i32
    %0 = arith.cmpi eq, %arg0, %c0_i32 : i32
    %c0_i32_0 = arith.constant 0 : i32
    %1 = arith.cmpi eq, %arg1, %c0_i32_0 : i32
    %2 = arith.andi %0, %1 : i1
    %3 = arith.extui %2 : i1 to i32
    %c0_i32_1 = arith.constant 0 : i32
    %4 = arith.cmpi ne, %3, %c0_i32_1 : i32
    scf.if %4 {
      %cst_20 = arith.constant 0.000000e+00 : f32
      %24 = vector.broadcast %cst_20 : f32 to vector<16x1xf32>
      %c0_21 = arith.constant 0 : index
      %c0_22 = arith.constant 0 : index
      %25 = vector.load %arg5[%c0_21, %c0_22] : memref<16x1xf32, #tpu.memory_space<vmem>>, vector<16x1xf32>
      tpu.vector_store %arg5[%c0_21, %c0_22], %24 {strides = array<i32>} : memref<16x1xf32, #tpu.memory_space<vmem>>, vector<16x1xf32>,
      %cst_23 = arith.constant 0.000000e+00 : f32
      %26 = vector.broadcast %cst_23 : f32 to vector<16x1xf32>
      %c0_24 = arith.constant 0 : index
      %c0_25 = arith.constant 0 : index
      %27 = vector.load %arg6[%c0_24, %c0_25] : memref<16x1xf32, #tpu.memory_space<vmem>>, vector<16x1xf32>
      tpu.vector_store %arg6[%c0_24, %c0_25], %26 {strides = array<i32>} : memref<16x1xf32, #tpu.memory_space<vmem>>, vector<16x1xf32>,
    } else {
    }
    %c0 = arith.constant 0 : index
    %c0_2 = arith.constant 0 : index
    %c0_3 = arith.constant 0 : index
    %5 = vector.load %arg2[%c0, %c0_2, %c0_3] : memref<1x16x128xbf16, #tpu.memory_space<vmem>>, vector<1x16x128xbf16>
    %6 = vector.shape_cast %5 : vector<1x16x128xbf16> to vector<16x128xbf16>
    %c0_4 = arith.constant 0 : index
    %c0_5 = arith.constant 0 : index
    %c0_6 = arith.constant 0 : index
    %7 = vector.load %arg3[%c0_4, %c0_5, %c0_6] : memref<1x128x32xbf16, #tpu.memory_space<vmem>>, vector<1x128x32xbf16>
    %8 = vector.shape_cast %7 : vector<1x128x32xbf16> to vector<128x32xbf16>
    %cst = arith.constant dense<0.000000e+00> : vector<16x32xf32>
    %9 = tpu.matmul %6, %8, %cst {dimension_numbers = #tpu.dot_dimension_numbers<[1], [0], [0], [1], [0, 0, 1, 1], [], []>} : vector<16x128xbf16>, vector<128x32xbf16>, vector<16x32xf32> -> vector<16x32xf32>
    %c0_7 = arith.constant 0 : index
    %c0_8 = arith.constant 0 : index
    %c0_9 = arith.constant 0 : index
    %10 = vector.load %arg4[%c0_7, %c0_8, %c0_9] : memref<1x16x32xf32, #tpu.memory_space<vmem>>, vector<1x16x32xf32>
    %11 = vector.shape_cast %10 : vector<1x16x32xf32> to vector<16x32xf32>
    %12 = vector.shape_cast %9 : vector<16x32xf32> to vector<1x16x32xf32>
    tpu.vector_store %arg4[%c0_7, %c0_8, %c0_9], %12 {strides = array<i32>} : memref<1x16x32xf32, #tpu.memory_space<vmem>>, vector<1x16x32xf32>,
    %c0_10 = arith.constant 0 : index
    %c0_11 = arith.constant 0 : index
    %13 = vector.load %arg5[%c0_10, %c0_11] : memref<16x1xf32, #tpu.memory_space<vmem>>, vector<16x1xf32>
    %cst_12 = arith.constant dense<0.000000e+00> : vector<16xf32>
    %14 = vector.multi_reduction <add>, %9, %cst_12 [1] : vector<16x32xf32> to vector<16xf32>
    %15 = vector.shape_cast %14 : vector<16xf32> to vector<16x1xf32>
    %16 = arith.addf %13, %15 : vector<16x1xf32>
    %c0_13 = arith.constant 0 : index
    %c0_14 = arith.constant 0 : index
    %17 = vector.load %arg5[%c0_13, %c0_14] : memref<16x1xf32, #tpu.memory_space<vmem>>, vector<16x1xf32>
    tpu.vector_store %arg5[%c0_13, %c0_14], %16 {strides = array<i32>} : memref<16x1xf32, #tpu.memory_space<vmem>>, vector<16x1xf32>,
    %c0_15 = arith.constant 0 : index
    %c0_16 = arith.constant 0 : index
    %18 = vector.load %arg6[%c0_15, %c0_16] : memref<16x1xf32, #tpu.memory_space<vmem>>, vector<16x1xf32>
    %19 = arith.mulf %9, %9 : vector<16x32xf32>
    %cst_17 = arith.constant dense<0.000000e+00> : vector<16xf32>
    %20 = vector.multi_reduction <add>, %19, %cst_17 [1] : vector<16x32xf32> to vector<16xf32>
    %21 = vector.shape_cast %20 : vector<16xf32> to vector<16x1xf32>
    %22 = arith.addf %18, %21 : vector<16x1xf32>
    %c0_18 = arith.constant 0 : index
    %c0_19 = arith.constant 0 : index
    %23 = vector.load %arg6[%c0_18, %c0_19] : memref<16x1xf32, #tpu.memory_space<vmem>>, vector<16x1xf32>
    tpu.vector_store %arg6[%c0_18, %c0_19], %22 {strides = array<i32>} : memref<16x1xf32, #tpu.memory_space<vmem>>, vector<16x1xf32>,
    return
  }
  func.func @transform_0(%arg0: i32, %arg1: i32) -> (i32, i32, i32) {
    %c0_i32 = arith.constant 0 : i32
    %c0_i32_0 = arith.constant 0 : i32
    %c0_i32_1 = arith.constant 0 : i32
    return %arg0, %c0_i32, %c0_i32_0 : i32, i32, i32
  }
  func.func @transform_1(%arg0: i32, %arg1: i32) -> (i32, i32, i32) {
    %c0_i32 = arith.constant 0 : i32
    %c0_i32_0 = arith.constant 0 : i32
    return %arg0, %c0_i32, %arg1 : i32, i32, i32
  }
  func.func @transform_2(%arg0: i32, %arg1: i32) -> (i32, i32, i32) {
    %c0_i32 = arith.constant 0 : i32
    %c0_i32_0 = arith.constant 0 : i32
    return %arg0, %c0_i32, %arg1 : i32, i32, i32
  }
  func.func @transform_3(%arg0: i32, %arg1: i32) -> (i32, i32) {
    %c0_i32 = arith.constant 0 : i32
    %c0_i32_0 = arith.constant 0 : i32
    %c0_i32_1 = arith.constant 0 : i32
    return %c0_i32, %c0_i32_0 : i32, i32
  }
  func.func @transform_4(%arg0: i32, %arg1: i32) -> (i32, i32) {
    %c0_i32 = arith.constant 0 : i32
    %c0_i32_0 = arith.constant 0 : i32
    %c0_i32_1 = arith.constant 0 : i32
    return %c0_i32, %c0_i32_0 : i32, i32
  }
}

module attributes {stable_mosaic.version = 11 : i64} {
  func.func @_bn_relu_kernel(%arg0: i32, %arg1: i32, %arg2: memref<1x16x32xf32, #tpu.memory_space<vmem>>, %arg3: memref<16x1xf32, #tpu.memory_space<vmem>>, %arg4: memref<16x1xf32, #tpu.memory_space<vmem>>, %arg5: memref<16x1xf32, #tpu.memory_space<vmem>>, %arg6: memref<16x1xf32, #tpu.memory_space<vmem>>, %arg7: memref<1x16x32xf32, #tpu.memory_space<vmem>>) attributes {dimension_semantics = [#tpu.dimension_semantics<parallel>, #tpu.dimension_semantics<parallel>], iteration_bounds = array<i64: 4, 1>, scalar_prefetch = 0 : i64, scratch_operands = 0 : i64, tpu.core_type = #tpu.core_type<tc>, window_params = [{transform_indices = @transform_0, window_bounds = array<i64: 1, 16, 32>}, {pipeline_mode = #tpu.pipeline_mode<synchronous>, transform_indices = @transform_1, window_bounds = array<i64: 16, 1>}, {pipeline_mode = #tpu.pipeline_mode<synchronous>, transform_indices = @transform_2, window_bounds = array<i64: 16, 1>}, {pipeline_mode = #tpu.pipeline_mode<synchronous>, transform_indices = @transform_3, window_bounds = array<i64: 16, 1>}, {pipeline_mode = #tpu.pipeline_mode<synchronous>, transform_indices = @transform_4, window_bounds = array<i64: 16, 1>}, {transform_indices = @transform_5, window_bounds = array<i64: 1, 16, 32>}]} {
    %c0 = arith.constant 0 : index
    %c0_0 = arith.constant 0 : index
    %0 = vector.load %arg3[%c0, %c0_0] : memref<16x1xf32, #tpu.memory_space<vmem>>, vector<16x1xf32>
    %cst = arith.constant 7.812500e-03 : f32
    %1 = vector.broadcast %cst : f32 to vector<16x1xf32>
    %2 = arith.mulf %0, %1 : vector<16x1xf32>
    %c0_1 = arith.constant 0 : index
    %c0_2 = arith.constant 0 : index
    %3 = vector.load %arg4[%c0_1, %c0_2] : memref<16x1xf32, #tpu.memory_space<vmem>>, vector<16x1xf32>
    %cst_3 = arith.constant 7.812500e-03 : f32
    %4 = vector.broadcast %cst_3 : f32 to vector<16x1xf32>
    %5 = arith.mulf %3, %4 : vector<16x1xf32>
    %6 = arith.mulf %2, %2 : vector<16x1xf32>
    %7 = arith.subf %5, %6 : vector<16x1xf32>
    %c0_4 = arith.constant 0 : index
    %c0_5 = arith.constant 0 : index
    %8 = vector.load %arg5[%c0_4, %c0_5] : memref<16x1xf32, #tpu.memory_space<vmem>>, vector<16x1xf32>
    %cst_6 = arith.constant 9.99999974E-6 : f32
    %9 = vector.broadcast %cst_6 : f32 to vector<16x1xf32>
    %10 = arith.addf %7, %9 : vector<16x1xf32>
    %11 = math.rsqrt %10 : vector<16x1xf32>
    %12 = arith.mulf %8, %11 : vector<16x1xf32>
    %c0_7 = arith.constant 0 : index
    %c0_8 = arith.constant 0 : index
    %13 = vector.load %arg6[%c0_7, %c0_8] : memref<16x1xf32, #tpu.memory_space<vmem>>, vector<16x1xf32>
    %14 = arith.mulf %2, %12 : vector<16x1xf32>
    %15 = arith.subf %13, %14 : vector<16x1xf32>
    %c0_9 = arith.constant 0 : index
    %c0_10 = arith.constant 0 : index
    %c0_11 = arith.constant 0 : index
    %16 = vector.load %arg2[%c0_9, %c0_10, %c0_11] : memref<1x16x32xf32, #tpu.memory_space<vmem>>, vector<1x16x32xf32>
    %17 = vector.shape_cast %16 : vector<1x16x32xf32> to vector<16x32xf32>
    %18 = vector.broadcast %12 : vector<16x1xf32> to vector<16x32xf32>
    %19 = arith.mulf %17, %18 : vector<16x32xf32>
    %20 = vector.broadcast %15 : vector<16x1xf32> to vector<16x32xf32>
    %21 = arith.addf %19, %20 : vector<16x32xf32>
    %cst_12 = arith.constant 0.000000e+00 : f32
    %22 = vector.broadcast %cst_12 : f32 to vector<16x32xf32>
    %23 = arith.maximumf %21, %22 : vector<16x32xf32>
    %c0_13 = arith.constant 0 : index
    %c0_14 = arith.constant 0 : index
    %c0_15 = arith.constant 0 : index
    %24 = vector.load %arg7[%c0_13, %c0_14, %c0_15] : memref<1x16x32xf32, #tpu.memory_space<vmem>>, vector<1x16x32xf32>
    %25 = vector.shape_cast %24 : vector<1x16x32xf32> to vector<16x32xf32>
    %26 = vector.shape_cast %23 : vector<16x32xf32> to vector<1x16x32xf32>
    tpu.vector_store %arg7[%c0_13, %c0_14, %c0_15], %26 {strides = array<i32>} : memref<1x16x32xf32, #tpu.memory_space<vmem>>, vector<1x16x32xf32>,
    return
  }
  func.func @transform_0(%arg0: i32, %arg1: i32) -> (i32, i32, i32) {
    %c0_i32 = arith.constant 0 : i32
    %c0_i32_0 = arith.constant 0 : i32
    return %arg0, %c0_i32, %arg1 : i32, i32, i32
  }
  func.func @transform_1(%arg0: i32, %arg1: i32) -> (i32, i32) {
    %c0_i32 = arith.constant 0 : i32
    %c0_i32_0 = arith.constant 0 : i32
    %c0_i32_1 = arith.constant 0 : i32
    return %c0_i32, %c0_i32_0 : i32, i32
  }
  func.func @transform_2(%arg0: i32, %arg1: i32) -> (i32, i32) {
    %c0_i32 = arith.constant 0 : i32
    %c0_i32_0 = arith.constant 0 : i32
    %c0_i32_1 = arith.constant 0 : i32
    return %c0_i32, %c0_i32_0 : i32, i32
  }
  func.func @transform_3(%arg0: i32, %arg1: i32) -> (i32, i32) {
    %c0_i32 = arith.constant 0 : i32
    %c0_i32_0 = arith.constant 0 : i32
    %c0_i32_1 = arith.constant 0 : i32
    return %c0_i32, %c0_i32_0 : i32, i32
  }
  func.func @transform_4(%arg0: i32, %arg1: i32) -> (i32, i32) {
    %c0_i32 = arith.constant 0 : i32
    %c0_i32_0 = arith.constant 0 : i32
    %c0_i32_1 = arith.constant 0 : i32
    return %c0_i32, %c0_i32_0 : i32, i32
  }
  func.func @transform_5(%arg0: i32, %arg1: i32) -> (i32, i32, i32) {
    %c0_i32 = arith.constant 0 : i32
    %c0_i32_0 = arith.constant 0 : i32
    return %arg0, %c0_i32, %arg1 : i32, i32, i32
  }
}

module attributes {stable_mosaic.version = 11 : i64} {
  func.func @_mm_stats_kernel(%arg0: i32, %arg1: i32, %arg2: memref<1x8x64xbf16, #tpu.memory_space<vmem>>, %arg3: memref<1x64x128xbf16, #tpu.memory_space<vmem>>, %arg4: memref<1x8x128xf32, #tpu.memory_space<vmem>>, %arg5: memref<8x1xf32, #tpu.memory_space<vmem>>, %arg6: memref<8x1xf32, #tpu.memory_space<vmem>>) attributes {dimension_semantics = [#tpu.dimension_semantics<arbitrary>, #tpu.dimension_semantics<arbitrary>], iteration_bounds = array<i64: 4, 1>, scalar_prefetch = 0 : i64, scratch_operands = 0 : i64, tpu.core_type = #tpu.core_type<tc>, window_params = [{transform_indices = @transform_0, window_bounds = array<i64: 1, 8, 64>}, {transform_indices = @transform_1, window_bounds = array<i64: 1, 64, 128>}, {transform_indices = @transform_2, window_bounds = array<i64: 1, 8, 128>}, {pipeline_mode = #tpu.pipeline_mode<synchronous>, transform_indices = @transform_3, window_bounds = array<i64: 8, 1>}, {pipeline_mode = #tpu.pipeline_mode<synchronous>, transform_indices = @transform_4, window_bounds = array<i64: 8, 1>}]} {
    %c0_i32 = arith.constant 0 : i32
    %0 = arith.cmpi eq, %arg0, %c0_i32 : i32
    %c0_i32_0 = arith.constant 0 : i32
    %1 = arith.cmpi eq, %arg1, %c0_i32_0 : i32
    %2 = arith.andi %0, %1 : i1
    %3 = arith.extui %2 : i1 to i32
    %c0_i32_1 = arith.constant 0 : i32
    %4 = arith.cmpi ne, %3, %c0_i32_1 : i32
    scf.if %4 {
      %cst_20 = arith.constant 0.000000e+00 : f32
      %24 = vector.broadcast %cst_20 : f32 to vector<8x1xf32>
      %c0_21 = arith.constant 0 : index
      %c0_22 = arith.constant 0 : index
      %25 = vector.load %arg5[%c0_21, %c0_22] : memref<8x1xf32, #tpu.memory_space<vmem>>, vector<8x1xf32>
      tpu.vector_store %arg5[%c0_21, %c0_22], %24 {strides = array<i32>} : memref<8x1xf32, #tpu.memory_space<vmem>>, vector<8x1xf32>,
      %cst_23 = arith.constant 0.000000e+00 : f32
      %26 = vector.broadcast %cst_23 : f32 to vector<8x1xf32>
      %c0_24 = arith.constant 0 : index
      %c0_25 = arith.constant 0 : index
      %27 = vector.load %arg6[%c0_24, %c0_25] : memref<8x1xf32, #tpu.memory_space<vmem>>, vector<8x1xf32>
      tpu.vector_store %arg6[%c0_24, %c0_25], %26 {strides = array<i32>} : memref<8x1xf32, #tpu.memory_space<vmem>>, vector<8x1xf32>,
    } else {
    }
    %c0 = arith.constant 0 : index
    %c0_2 = arith.constant 0 : index
    %c0_3 = arith.constant 0 : index
    %5 = vector.load %arg2[%c0, %c0_2, %c0_3] : memref<1x8x64xbf16, #tpu.memory_space<vmem>>, vector<1x8x64xbf16>
    %6 = vector.shape_cast %5 : vector<1x8x64xbf16> to vector<8x64xbf16>
    %c0_4 = arith.constant 0 : index
    %c0_5 = arith.constant 0 : index
    %c0_6 = arith.constant 0 : index
    %7 = vector.load %arg3[%c0_4, %c0_5, %c0_6] : memref<1x64x128xbf16, #tpu.memory_space<vmem>>, vector<1x64x128xbf16>
    %8 = vector.shape_cast %7 : vector<1x64x128xbf16> to vector<64x128xbf16>
    %cst = arith.constant dense<0.000000e+00> : vector<8x128xf32>
    %9 = tpu.matmul %6, %8, %cst {dimension_numbers = #tpu.dot_dimension_numbers<[1], [0], [0], [1], [0, 0, 1, 1], [], []>} : vector<8x64xbf16>, vector<64x128xbf16>, vector<8x128xf32> -> vector<8x128xf32>
    %c0_7 = arith.constant 0 : index
    %c0_8 = arith.constant 0 : index
    %c0_9 = arith.constant 0 : index
    %10 = vector.load %arg4[%c0_7, %c0_8, %c0_9] : memref<1x8x128xf32, #tpu.memory_space<vmem>>, vector<1x8x128xf32>
    %11 = vector.shape_cast %10 : vector<1x8x128xf32> to vector<8x128xf32>
    %12 = vector.shape_cast %9 : vector<8x128xf32> to vector<1x8x128xf32>
    tpu.vector_store %arg4[%c0_7, %c0_8, %c0_9], %12 {strides = array<i32>} : memref<1x8x128xf32, #tpu.memory_space<vmem>>, vector<1x8x128xf32>,
    %c0_10 = arith.constant 0 : index
    %c0_11 = arith.constant 0 : index
    %13 = vector.load %arg5[%c0_10, %c0_11] : memref<8x1xf32, #tpu.memory_space<vmem>>, vector<8x1xf32>
    %cst_12 = arith.constant dense<0.000000e+00> : vector<8xf32>
    %14 = vector.multi_reduction <add>, %9, %cst_12 [1] : vector<8x128xf32> to vector<8xf32>
    %15 = vector.shape_cast %14 : vector<8xf32> to vector<8x1xf32>
    %16 = arith.addf %13, %15 : vector<8x1xf32>
    %c0_13 = arith.constant 0 : index
    %c0_14 = arith.constant 0 : index
    %17 = vector.load %arg5[%c0_13, %c0_14] : memref<8x1xf32, #tpu.memory_space<vmem>>, vector<8x1xf32>
    tpu.vector_store %arg5[%c0_13, %c0_14], %16 {strides = array<i32>} : memref<8x1xf32, #tpu.memory_space<vmem>>, vector<8x1xf32>,
    %c0_15 = arith.constant 0 : index
    %c0_16 = arith.constant 0 : index
    %18 = vector.load %arg6[%c0_15, %c0_16] : memref<8x1xf32, #tpu.memory_space<vmem>>, vector<8x1xf32>
    %19 = arith.mulf %9, %9 : vector<8x128xf32>
    %cst_17 = arith.constant dense<0.000000e+00> : vector<8xf32>
    %20 = vector.multi_reduction <add>, %19, %cst_17 [1] : vector<8x128xf32> to vector<8xf32>
    %21 = vector.shape_cast %20 : vector<8xf32> to vector<8x1xf32>
    %22 = arith.addf %18, %21 : vector<8x1xf32>
    %c0_18 = arith.constant 0 : index
    %c0_19 = arith.constant 0 : index
    %23 = vector.load %arg6[%c0_18, %c0_19] : memref<8x1xf32, #tpu.memory_space<vmem>>, vector<8x1xf32>
    tpu.vector_store %arg6[%c0_18, %c0_19], %22 {strides = array<i32>} : memref<8x1xf32, #tpu.memory_space<vmem>>, vector<8x1xf32>,
    return
  }
  func.func @transform_0(%arg0: i32, %arg1: i32) -> (i32, i32, i32) {
    %c0_i32 = arith.constant 0 : i32
    %c0_i32_0 = arith.constant 0 : i32
    %c0_i32_1 = arith.constant 0 : i32
    return %arg0, %c0_i32, %c0_i32_0 : i32, i32, i32
  }
  func.func @transform_1(%arg0: i32, %arg1: i32) -> (i32, i32, i32) {
    %c0_i32 = arith.constant 0 : i32
    %c0_i32_0 = arith.constant 0 : i32
    return %arg0, %c0_i32, %arg1 : i32, i32, i32
  }
  func.func @transform_2(%arg0: i32, %arg1: i32) -> (i32, i32, i32) {
    %c0_i32 = arith.constant 0 : i32
    %c0_i32_0 = arith.constant 0 : i32
    return %arg0, %c0_i32, %arg1 : i32, i32, i32
  }
  func.func @transform_3(%arg0: i32, %arg1: i32) -> (i32, i32) {
    %c0_i32 = arith.constant 0 : i32
    %c0_i32_0 = arith.constant 0 : i32
    %c0_i32_1 = arith.constant 0 : i32
    return %c0_i32, %c0_i32_0 : i32, i32
  }
  func.func @transform_4(%arg0: i32, %arg1: i32) -> (i32, i32) {
    %c0_i32 = arith.constant 0 : i32
    %c0_i32_0 = arith.constant 0 : i32
    %c0_i32_1 = arith.constant 0 : i32
    return %c0_i32, %c0_i32_0 : i32, i32
  }
}

module attributes {stable_mosaic.version = 11 : i64} {
  func.func @_bn_relu_kernel(%arg0: i32, %arg1: i32, %arg2: memref<1x8x128xf32, #tpu.memory_space<vmem>>, %arg3: memref<8x1xf32, #tpu.memory_space<vmem>>, %arg4: memref<8x1xf32, #tpu.memory_space<vmem>>, %arg5: memref<8x1xf32, #tpu.memory_space<vmem>>, %arg6: memref<8x1xf32, #tpu.memory_space<vmem>>, %arg7: memref<1x8x128xf32, #tpu.memory_space<vmem>>) attributes {dimension_semantics = [#tpu.dimension_semantics<parallel>, #tpu.dimension_semantics<parallel>], iteration_bounds = array<i64: 4, 1>, scalar_prefetch = 0 : i64, scratch_operands = 0 : i64, tpu.core_type = #tpu.core_type<tc>, window_params = [{transform_indices = @transform_0, window_bounds = array<i64: 1, 8, 128>}, {pipeline_mode = #tpu.pipeline_mode<synchronous>, transform_indices = @transform_1, window_bounds = array<i64: 8, 1>}, {pipeline_mode = #tpu.pipeline_mode<synchronous>, transform_indices = @transform_2, window_bounds = array<i64: 8, 1>}, {pipeline_mode = #tpu.pipeline_mode<synchronous>, transform_indices = @transform_3, window_bounds = array<i64: 8, 1>}, {pipeline_mode = #tpu.pipeline_mode<synchronous>, transform_indices = @transform_4, window_bounds = array<i64: 8, 1>}, {transform_indices = @transform_5, window_bounds = array<i64: 1, 8, 128>}]} {
    %c0 = arith.constant 0 : index
    %c0_0 = arith.constant 0 : index
    %0 = vector.load %arg3[%c0, %c0_0] : memref<8x1xf32, #tpu.memory_space<vmem>>, vector<8x1xf32>
    %cst = arith.constant 0.001953125 : f32
    %1 = vector.broadcast %cst : f32 to vector<8x1xf32>
    %2 = arith.mulf %0, %1 : vector<8x1xf32>
    %c0_1 = arith.constant 0 : index
    %c0_2 = arith.constant 0 : index
    %3 = vector.load %arg4[%c0_1, %c0_2] : memref<8x1xf32, #tpu.memory_space<vmem>>, vector<8x1xf32>
    %cst_3 = arith.constant 0.001953125 : f32
    %4 = vector.broadcast %cst_3 : f32 to vector<8x1xf32>
    %5 = arith.mulf %3, %4 : vector<8x1xf32>
    %6 = arith.mulf %2, %2 : vector<8x1xf32>
    %7 = arith.subf %5, %6 : vector<8x1xf32>
    %c0_4 = arith.constant 0 : index
    %c0_5 = arith.constant 0 : index
    %8 = vector.load %arg5[%c0_4, %c0_5] : memref<8x1xf32, #tpu.memory_space<vmem>>, vector<8x1xf32>
    %cst_6 = arith.constant 9.99999974E-6 : f32
    %9 = vector.broadcast %cst_6 : f32 to vector<8x1xf32>
    %10 = arith.addf %7, %9 : vector<8x1xf32>
    %11 = math.rsqrt %10 : vector<8x1xf32>
    %12 = arith.mulf %8, %11 : vector<8x1xf32>
    %c0_7 = arith.constant 0 : index
    %c0_8 = arith.constant 0 : index
    %13 = vector.load %arg6[%c0_7, %c0_8] : memref<8x1xf32, #tpu.memory_space<vmem>>, vector<8x1xf32>
    %14 = arith.mulf %2, %12 : vector<8x1xf32>
    %15 = arith.subf %13, %14 : vector<8x1xf32>
    %c0_9 = arith.constant 0 : index
    %c0_10 = arith.constant 0 : index
    %c0_11 = arith.constant 0 : index
    %16 = vector.load %arg2[%c0_9, %c0_10, %c0_11] : memref<1x8x128xf32, #tpu.memory_space<vmem>>, vector<1x8x128xf32>
    %17 = vector.shape_cast %16 : vector<1x8x128xf32> to vector<8x128xf32>
    %18 = vector.broadcast %12 : vector<8x1xf32> to vector<8x128xf32>
    %19 = arith.mulf %17, %18 : vector<8x128xf32>
    %20 = vector.broadcast %15 : vector<8x1xf32> to vector<8x128xf32>
    %21 = arith.addf %19, %20 : vector<8x128xf32>
    %cst_12 = arith.constant 0.000000e+00 : f32
    %22 = vector.broadcast %cst_12 : f32 to vector<8x128xf32>
    %23 = arith.maximumf %21, %22 : vector<8x128xf32>
    %c0_13 = arith.constant 0 : index
    %c0_14 = arith.constant 0 : index
    %c0_15 = arith.constant 0 : index
    %24 = vector.load %arg7[%c0_13, %c0_14, %c0_15] : memref<1x8x128xf32, #tpu.memory_space<vmem>>, vector<1x8x128xf32>
    %25 = vector.shape_cast %24 : vector<1x8x128xf32> to vector<8x128xf32>
    %26 = vector.shape_cast %23 : vector<8x128xf32> to vector<1x8x128xf32>
    tpu.vector_store %arg7[%c0_13, %c0_14, %c0_15], %26 {strides = array<i32>} : memref<1x8x128xf32, #tpu.memory_space<vmem>>, vector<1x8x128xf32>,
    return
  }
  func.func @transform_0(%arg0: i32, %arg1: i32) -> (i32, i32, i32) {
    %c0_i32 = arith.constant 0 : i32
    %c0_i32_0 = arith.constant 0 : i32
    return %arg0, %c0_i32, %arg1 : i32, i32, i32
  }
  func.func @transform_1(%arg0: i32, %arg1: i32) -> (i32, i32) {
    %c0_i32 = arith.constant 0 : i32
    %c0_i32_0 = arith.constant 0 : i32
    %c0_i32_1 = arith.constant 0 : i32
    return %c0_i32, %c0_i32_0 : i32, i32
  }
  func.func @transform_2(%arg0: i32, %arg1: i32) -> (i32, i32) {
    %c0_i32 = arith.constant 0 : i32
    %c0_i32_0 = arith.constant 0 : i32
    %c0_i32_1 = arith.constant 0 : i32
    return %c0_i32, %c0_i32_0 : i32, i32
  }
  func.func @transform_3(%arg0: i32, %arg1: i32) -> (i32, i32) {
    %c0_i32 = arith.constant 0 : i32
    %c0_i32_0 = arith.constant 0 : i32
    %c0_i32_1 = arith.constant 0 : i32
    return %c0_i32, %c0_i32_0 : i32, i32
  }
  func.func @transform_4(%arg0: i32, %arg1: i32) -> (i32, i32) {
    %c0_i32 = arith.constant 0 : i32
    %c0_i32_0 = arith.constant 0 : i32
    %c0_i32_1 = arith.constant 0 : i32
    return %c0_i32, %c0_i32_0 : i32, i32
  }
  func.func @transform_5(%arg0: i32, %arg1: i32) -> (i32, i32, i32) {
    %c0_i32 = arith.constant 0 : i32
    %c0_i32_0 = arith.constant 0 : i32
    return %arg0, %c0_i32, %arg1 : i32, i32, i32
  }
}

module attributes {stable_mosaic.version = 11 : i64} {
  func.func @_mm_tanh_kernel(%arg0: i32, %arg1: i32, %arg2: memref<1x3x32xbf16, #tpu.memory_space<vmem>>, %arg3: memref<1x32x512xbf16, #tpu.memory_space<vmem>>, %arg4: memref<1x3x512xf32, #tpu.memory_space<vmem>>) attributes {dimension_semantics = [#tpu.dimension_semantics<parallel>, #tpu.dimension_semantics<parallel>], iteration_bounds = array<i64: 4, 1>, scalar_prefetch = 0 : i64, scratch_operands = 0 : i64, tpu.core_type = #tpu.core_type<tc>, window_params = [{transform_indices = @transform_0, window_bounds = array<i64: 1, 3, 32>}, {transform_indices = @transform_1, window_bounds = array<i64: 1, 32, 512>}, {transform_indices = @transform_2, window_bounds = array<i64: 1, 3, 512>}]} {
    %c0 = arith.constant 0 : index
    %c0_0 = arith.constant 0 : index
    %c0_1 = arith.constant 0 : index
    %0 = vector.load %arg2[%c0, %c0_0, %c0_1] : memref<1x3x32xbf16, #tpu.memory_space<vmem>>, vector<1x3x32xbf16>
    %1 = vector.shape_cast %0 : vector<1x3x32xbf16> to vector<3x32xbf16>
    %c0_2 = arith.constant 0 : index
    %c0_3 = arith.constant 0 : index
    %c0_4 = arith.constant 0 : index
    %2 = vector.load %arg3[%c0_2, %c0_3, %c0_4] : memref<1x32x512xbf16, #tpu.memory_space<vmem>>, vector<1x32x512xbf16>
    %3 = vector.shape_cast %2 : vector<1x32x512xbf16> to vector<32x512xbf16>
    %cst = arith.constant dense<0.000000e+00> : vector<3x512xf32>
    %4 = tpu.matmul %1, %3, %cst {dimension_numbers = #tpu.dot_dimension_numbers<[1], [0], [0], [1], [0, 0, 1, 1], [], []>} : vector<3x32xbf16>, vector<32x512xbf16>, vector<3x512xf32> -> vector<3x512xf32>
    %5 = math.tanh %4 : vector<3x512xf32>
    %c0_5 = arith.constant 0 : index
    %c0_6 = arith.constant 0 : index
    %c0_7 = arith.constant 0 : index
    %6 = vector.load %arg4[%c0_5, %c0_6, %c0_7] : memref<1x3x512xf32, #tpu.memory_space<vmem>>, vector<1x3x512xf32>
    %7 = vector.shape_cast %6 : vector<1x3x512xf32> to vector<3x512xf32>
    %8 = vector.shape_cast %5 : vector<3x512xf32> to vector<1x3x512xf32>
    tpu.vector_store %arg4[%c0_5, %c0_6, %c0_7], %8 {strides = array<i32>} : memref<1x3x512xf32, #tpu.memory_space<vmem>>, vector<1x3x512xf32>,
    return
  }
  func.func @transform_0(%arg0: i32, %arg1: i32) -> (i32, i32, i32) {
    %c0_i32 = arith.constant 0 : i32
    %c0_i32_0 = arith.constant 0 : i32
    %c0_i32_1 = arith.constant 0 : i32
    return %arg0, %c0_i32, %c0_i32_0 : i32, i32, i32
  }
  func.func @transform_1(%arg0: i32, %arg1: i32) -> (i32, i32, i32) {
    %c0_i32 = arith.constant 0 : i32
    %c0_i32_0 = arith.constant 0 : i32
    return %arg0, %c0_i32, %arg1 : i32, i32, i32
  }
  func.func @transform_2(%arg0: i32, %arg1: i32) -> (i32, i32, i32) {
    %c0_i32 = arith.constant 0 : i32
    %c0_i32_0 = arith.constant 0 : i32
    return %arg0, %c0_i32, %arg1 : i32, i32, i32
  }
}

</mosaic_0001>

<llo_original>
// kernel: generator_forward.8
$region0: #{generator_forward.8}
  #allocation0 [shape = 'u32[]', space=smem, size = 0x4, offset = 0x4, fixed_abs, tag = 'smem constant byte address 0x4 - core index']
  #allocation1 [shape = 'u32[144,128]{1,0:T(1,128)}', space=vmem, size = 0x12000, scoped, tag = 'internal scratch']
  %s0 = inlined_call_operand.vmem [shape: f32[1,32,32], index: 0, kind: input, shape index: {}]
  %s1 = inlined_call_operand.vmem [shape: f32[32,1], index: 1, kind: input, shape index: {}]
  %s2 = inlined_call_operand.vmem [shape: f32[32,1], index: 2, kind: input, shape index: {}]
  %s3 = inlined_call_operand.vmem [shape: f32[32,1], index: 3, kind: input, shape index: {}]
  %s4 = inlined_call_operand.vmem [shape: f32[32,1], index: 4, kind: input, shape index: {}]
  %s5 = inlined_call_operand.vmem [shape: f32[1,32,32], index: 5, kind: output, shape index: {}]
  %s6 = sld [smem:[#allocation0]]
  $region30: #{generator_forward.8} parent=0
    _
  %s8 = ssub.s32 1, %s6
  %s9 = scalar_select 0, %s8, %s6
  // Predicated region
  $region2: #{generator_forward.8} parent=0 // pred_check
    _
  $region3: #{generator_forward.8} parent=0 // pred_check_branch
    %11 = sbr.rel (0) target = $region5
  $region4: #{generator_forward.8} parent=0 // pred_region
    _
  $region5: #{generator_forward.8} parent=0 // pred_fallthru
    _
  // Predicated region
  $region6: #{generator_forward.8} parent=0 // pred_check
    _
  $region7: #{generator_forward.8} parent=0 // pred_check_branch
    %13 = sbr.rel (0) target = $region9
  $region8: #{generator_forward.8} parent=0 // pred_region
    _
  $region9: #{generator_forward.8} parent=0 // pred_fallthru
    _
  // Predicated region
  $region10: #{generator_forward.8} parent=0 // pred_check
    _
  $region11: #{generator_forward.8} parent=0 // pred_check_branch
    %15 = sbr.rel (0) target = $region13
  $region12: #{generator_forward.8} parent=0 // pred_region
    _
  $region13: #{generator_forward.8} parent=0 // pred_fallthru
    _
  // Predicated region
  $region14: #{generator_forward.8} parent=0 // pred_check
    _
  $region15: #{generator_forward.8} parent=0 // pred_check_branch
    %17 = sbr.rel (0) target = $region17
  $region16: #{generator_forward.8} parent=0 // pred_region
    _
  $region17: #{generator_forward.8} parent=0 // pred_fallthru
    _
  // Predicated region
  $region18: #{generator_forward.8} parent=0 // pred_check
    _
  $region19: #{generator_forward.8} parent=0 // pred_check_branch
    %19 = sbr.rel (0) target = $region21
  $region20: #{generator_forward.8} parent=0 // pred_region
    _
  $region21: #{generator_forward.8} parent=0 // pred_fallthru
    _
  %v20 = vld [vmem:[%s1] sm:$0xff]
  %v21 = vld [vmem:[%s1 + $0x8] sm:$0xff]
  %v22 = vld [vmem:[%s1 + $0x10] sm:$0xff]
  %v23 = vld [vmem:[%s1 + $0x18] sm:$0xff]
  %v24 = vmul.f32 %v20, 0.03125
  %v25 = vmul.f32 %v21, 0.03125
  %v26 = vmul.f32 %v22, 0.03125
  %v27 = vmul.f32 %v23, 0.03125
  %v28 = vld [vmem:[%s2] sm:$0xff]
  %v29 = vld [vmem:[%s2 + $0x8] sm:$0xff]
  %v30 = vld [vmem:[%s2 + $0x10] sm:$0xff]
  %v31 = vld [vmem:[%s2 + $0x18] sm:$0xff]
  %v32 = vmul.f32 %v28, 0.03125
  %v33 = vmul.f32 %v29, 0.03125
  %v34 = vmul.f32 %v30, 0.03125
  %v35 = vmul.f32 %v31, 0.03125
  %v36 = vmul.f32 %v24, %v24
  %v37 = vmul.f32 %v25, %v25
  %v38 = vmul.f32 %v26, %v26
  %v39 = vmul.f32 %v27, %v27
  %v40 = vsub.f32 %v32, %v36
  %v41 = vsub.f32 %v33, %v37
  %v42 = vsub.f32 %v34, %v38
  %v43 = vsub.f32 %v35, %v39
  %v44 = vld [vmem:[%s3] sm:$0xff]
  %v45 = vld [vmem:[%s3 + $0x8] sm:$0xff]
  %v46 = vld [vmem:[%s3 + $0x10] sm:$0xff]
  %v47 = vld [vmem:[%s3 + $0x18] sm:$0xff]
  %v48 = vadd.f32 %v40, 1e-05
  %v49 = vadd.f32 %v41, 1e-05
  %v50 = vadd.f32 %v42, 1e-05
  %v51 = vadd.f32 %v43, 1e-05
  %v52 = vrsqrt.pop %v48
  %v53 = vrsqrt.pop %v49
  %v54 = vrsqrt.pop %v50
  %v55 = vrsqrt.pop %v51
  %v56 = vmul.f32 %v44, %v52
  %v57 = vmul.f32 %v45, %v53
  %v58 = vmul.f32 %v46, %v54
  %v59 = vmul.f32 %v47, %v55
  %v60 = vld [vmem:[%s4] sm:$0xff]
  %v61 = vld [vmem:[%s4 + $0x8] sm:$0xff]
  %v62 = vld [vmem:[%s4 + $0x10] sm:$0xff]
  %v63 = vld [vmem:[%s4 + $0x18] sm:$0xff]
  %v64 = vmul.f32 %v24, %v56
  %v65 = vmul.f32 %v25, %v57
  %v66 = vmul.f32 %v26, %v58
  %v67 = vmul.f32 %v27, %v59
  %v68 = vsub.f32 %v60, %v64
  %v69 = vsub.f32 %v61, %v65
  %v70 = vsub.f32 %v62, %v66
  %v71 = vsub.f32 %v63, %v67
  %v72 = vld [vmem:[%s0] sm:$0xff]
  %v73 = vld [vmem:[%s0 + $0x8] sm:$0xff]
  %v74 = vld [vmem:[%s0 + $0x10] sm:$0xff]
  %v75 = vld [vmem:[%s0 + $0x18] sm:$0xff]
  %77 = vset.pattern.permute.xlu0 0
  %78 = vperm.xlu0 %77, %v56
  %v79 = vpop.permute.xlu0 %78
  %82 = vset.pattern.permute.xlu0 0
  %83 = vperm.xlu0 %82, %v57
  %v84 = vpop.permute.xlu0 %83
  %87 = vset.pattern.permute.xlu0 0
  %88 = vperm.xlu0 %87, %v58
  %v89 = vpop.permute.xlu0 %88
  %92 = vset.pattern.permute.xlu0 0
  %93 = vperm.xlu0 %92, %v59
  %v94 = vpop.permute.xlu0 %93
  %v96 = vmul.f32 %v72, %v79
  %v97 = vmul.f32 %v73, %v84
  %v98 = vmul.f32 %v74, %v89
  %v99 = vmul.f32 %v75, %v94
  %101 = vset.pattern.permute.xlu0 0
  %102 = vperm.xlu0 %101, %v68
  %v103 = vpop.permute.xlu0 %102
  %106 = vset.pattern.permute.xlu0 0
  %107 = vperm.xlu0 %106, %v69
  %v108 = vpop.permute.xlu0 %107
  %111 = vset.pattern.permute.xlu0 0
  %112 = vperm.xlu0 %111, %v70
  %v113 = vpop.permute.xlu0 %112
  %116 = vset.pattern.permute.xlu0 0
  %117 = vperm.xlu0 %116, %v71
  %v118 = vpop.permute.xlu0 %117
  %v120 = vadd.f32 %v96, %v103
  %v121 = vadd.f32 %v97, %v108
  %v122 = vadd.f32 %v98, %v113
  %v123 = vadd.f32 %v99, %v118
  %v124 = vmax.f32 %v120, 0.0
  %v125 = vmax.f32 %v121, 0.0
  %v126 = vmax.f32 %v122, 0.0
  %v127 = vmax.f32 %v123, 0.0
  %vm128 = vcmask 261120
  %129 = vst.msk [vmem:[%s5] sm:$0xff] %vm128, %v124
  %130 = vst.msk [vmem:[%s5 + $0x8] sm:$0xff] %vm128, %v125
  %131 = vst.msk [vmem:[%s5 + $0x10] sm:$0xff] %vm128, %v126
  %132 = vst.msk [vmem:[%s5 + $0x18] sm:$0xff] %vm128, %v127
  // Predicated region
  $region22: #{generator_forward.8} parent=0 // pred_check
    _
  $region23: #{generator_forward.8} parent=0 // pred_check_branch
    %134 = sbr.rel (0) target = $region25
  $region24: #{generator_forward.8} parent=0 // pred_region
    _
  $region25: #{generator_forward.8} parent=0 // pred_fallthru
    _
  // Predicated region
  $region26: #{generator_forward.8} parent=0 // pred_check
    _
  $region27: #{generator_forward.8} parent=0 // pred_check_branch
    %136 = sbr.rel (0) target = $region29
  $region28: #{generator_forward.8} parent=0 // pred_region
    _
  $region29: #{generator_forward.8} parent=0 // pred_fallthru
    _

// kernel: generator_forward.7
$region0: #{generator_forward.7}
  #allocation0 [shape = 'u32[]', space=smem, size = 0x4, offset = 0x4, fixed_abs, tag = 'smem constant byte address 0x4 - core index']
  #allocation1 [shape = 'u32[144,128]{1,0:T(1,128)}', space=vmem, size = 0x12000, scoped, tag = 'internal scratch']
  %s0 = inlined_call_operand.vmem [shape: bf16[1,32,256], index: 0, kind: input, shape index: {}]
  %s1 = inlined_call_operand.vmem [shape: bf16[1,256,32], index: 1, kind: input, shape index: {}]
  %s2 = inlined_call_operand.vmem [shape: f32[1,32,32], index: 2, kind: output, shape index: {0}]
  %s3 = inlined_call_operand.vmem [shape: f32[32,1], index: 3, kind: output, shape index: {1}]
  %s4 = inlined_call_operand.vmem [shape: f32[32,1], index: 4, kind: output, shape index: {2}]
  %5 = xla_tuple %s2, %s3, %s4
  %s6 = sld [smem:[#allocation0]]
  $region38: #{generator_forward.7} parent=0
    _
  %s8 = ssub.s32 1, %s6
  %s9 = scalar_select 0, %s8, %s6
  // Predicated region
  $region2: #{generator_forward.7} parent=0 // pred_check
    _
  $region3: #{generator_forward.7} parent=0 // pred_check_branch
    %11 = sbr.rel (0) target = $region5
  $region4: #{generator_forward.7} parent=0 // pred_region
    _
  $region5: #{generator_forward.7} parent=0 // pred_fallthru
    _
  // Predicated region
  $region6: #{generator_forward.7} parent=0 // pred_check
    _
  $region7: #{generator_forward.7} parent=0 // pred_check_branch
    %13 = sbr.rel (0) target = $region9
  $region8: #{generator_forward.7} parent=0 // pred_region
    _
  $region9: #{generator_forward.7} parent=0 // pred_fallthru
    _
  %p15 = scmp.eq.s32.totalorder 0, 0
  %p16 = scmp.eq.s32.totalorder 0, 0
  %p17 = pnand %p15, %p16
  %p18 = pneg %p17
  // Predicated region
  $region10: #{generator_forward.7} parent=0 // pred_check
    _
  $region11: #{generator_forward.7} parent=0 // pred_check_branch
    %20 = sbr.rel (%p17) target = $region13
  $region12: #{generator_forward.7} parent=0 // pred_region
    %vm21 = vcmask 7168
    %22 = vst.msk [vmem:[%s3] sm:$0xff] %vm21, 0.0
    %23 = vst.msk [vmem:[%s3 + $0x8] sm:$0xff] %vm21, 0.0
    %24 = vst.msk [vmem:[%s3 + $0x10] sm:$0xff] %vm21, 0.0
    %25 = vst.msk [vmem:[%s3 + $0x18] sm:$0xff] %vm21, 0.0
    %26 = vst.msk [vmem:[%s4] sm:$0xff] %vm21, 0.0
    %27 = vst.msk [vmem:[%s4 + $0x8] sm:$0xff] %vm21, 0.0
    %28 = vst.msk [vmem:[%s4 + $0x10] sm:$0xff] %vm21, 0.0
    %29 = vst.msk [vmem:[%s4 + $0x18] sm:$0xff] %vm21, 0.0
  $region13: #{generator_forward.7} parent=0 // pred_fallthru
    _
  %v30 = vld [vmem:[%s0] sm:$0xff]
  %v31 = vld [vmem:[%s0 + $0x8] sm:$0xff]
  %v32 = vld [vmem:[%s0 + $0x10] sm:$0xff]
  %v33 = vld [vmem:[%s0 + $0x18] sm:$0xff]
  %v34 = vld [vmem:[%s1] sm:$0xf]
  %v35 = vld [vmem:[%s1 + $0x4] sm:$0xf]
  %v36 = vld [vmem:[%s1 + $0x8] sm:$0xf]
  %v37 = vld [vmem:[%s1 + $0xc] sm:$0xf]
  %v38 = vld [vmem:[%s1 + $0x10] sm:$0xf]
  %v39 = vld [vmem:[%s1 + $0x14] sm:$0xf]
  %v40 = vld [vmem:[%s1 + $0x18] sm:$0xf]
  %v41 = vld [vmem:[%s1 + $0x1c] sm:$0xf]
  %v42 = vld [vmem:[%s1 + $0x20] sm:$0xf]
  %v43 = vld [vmem:[%s1 + $0x24] sm:$0xf]
  %v44 = vld [vmem:[%s1 + $0x28] sm:$0xf]
  %v45 = vld [vmem:[%s1 + $0x2c] sm:$0xf]
  %v46 = vld [vmem:[%s1 + $0x30] sm:$0xf]
  %v47 = vld [vmem:[%s1 + $0x34] sm:$0xf]
  %v48 = vld [vmem:[%s1 + $0x38] sm:$0xf]
  %v49 = vld [vmem:[%s1 + $0x3c] sm:$0xf]
  %v50 = vld [vmem:[%s1 + $0x40] sm:$0xf]
  %v51 = vld [vmem:[%s1 + $0x44] sm:$0xf]
  %v52 = vld [vmem:[%s1 + $0x48] sm:$0xf]
  %v53 = vld [vmem:[%s1 + $0x4c] sm:$0xf]
  %v54 = vld [vmem:[%s1 + $0x50] sm:$0xf]
  %v55 = vld [vmem:[%s1 + $0x54] sm:$0xf]
  %v56 = vld [vmem:[%s1 + $0x58] sm:$0xf]
  %v57 = vld [vmem:[%s1 + $0x5c] sm:$0xf]
  %v58 = vld [vmem:[%s1 + $0x60] sm:$0xf]
  %v59 = vld [vmem:[%s1 + $0x64] sm:$0xf]
  %v60 = vld [vmem:[%s1 + $0x68] sm:$0xf]
  %v61 = vld [vmem:[%s1 + $0x6c] sm:$0xf]
  %v62 = vld [vmem:[%s1 + $0x70] sm:$0xf]
  %v63 = vld [vmem:[%s1 + $0x74] sm:$0xf]
  %v64 = vld [vmem:[%s1 + $0x78] sm:$0xf]
  %v65 = vld [vmem:[%s1 + $0x7c] sm:$0xf]
  %v70 = vunpack.c.l.b16 %v30
  %v71 = vunpack.c.h.b16 %v30
  %v72 = vunpack.c.l.b16 %v31
  %v73 = vunpack.c.h.b16 %v31
  %v74 = vunpack.c.l.b16 %v32
  %v75 = vunpack.c.h.b16 %v32
  %v76 = vunpack.c.l.b16 %v33
  %v77 = vunpack.c.h.b16 %v33
  %v78 = vpack.c.b16 %v72, %v70
  %v79 = vpack.c.b16 %v73, %v71
  %v80 = vpack.c.b16 %v76, %v74
  %v81 = vpack.c.b16 %v77, %v75
  %v118 = vunpack.c.l.b16 %v34
  %v119 = vunpack.c.l.b16 %v35
  %v120 = vunpack.c.l.b16 %v36
  %v121 = vunpack.c.l.b16 %v37
  %v122 = vunpack.c.l.b16 %v38
  %v123 = vunpack.c.l.b16 %v39
  %v124 = vunpack.c.l.b16 %v40
  %v125 = vunpack.c.l.b16 %v41
  %v126 = vunpack.c.l.b16 %v42
  %v127 = vunpack.c.l.b16 %v43
  %v128 = vunpack.c.l.b16 %v44
  %v129 = vunpack.c.l.b16 %v45
  %v130 = vunpack.c.l.b16 %v46
  %v131 = vunpack.c.l.b16 %v47
  %v132 = vunpack.c.l.b16 %v48
  %v133 = vunpack.c.l.b16 %v49
  %v134 = vunpack.c.l.b16 %v50
  %v135 = vunpack.c.l.b16 %v51
  %v136 = vunpack.c.l.b16 %v52
  %v137 = vunpack.c.l.b16 %v53
  %v138 = vunpack.c.l.b16 %v54
  %v139 = vunpack.c.l.b16 %v55
  %v140 = vunpack.c.l.b16 %v56
  %v141 = vunpack.c.l.b16 %v57
  %v142 = vunpack.c.l.b16 %v58
  %v143 = vunpack.c.l.b16 %v59
  %v144 = vunpack.c.l.b16 %v60
  %v145 = vunpack.c.l.b16 %v61
  %v146 = vunpack.c.l.b16 %v62
  %v147 = vunpack.c.l.b16 %v63
  %v148 = vunpack.c.l.b16 %v64
  %v149 = vunpack.c.l.b16 %v65
  %v150 = vpack.c.b16 %v119, %v118
  %v151 = vpack.c.b16 %v121, %v120
  %v152 = vpack.c.b16 %v123, %v122
  %v153 = vpack.c.b16 %v125, %v124
  %v154 = vpack.c.b16 %v127, %v126
  %v155 = vpack.c.b16 %v129, %v128
  %v156 = vpack.c.b16 %v131, %v130
  %v157 = vpack.c.b16 %v133, %v132
  %v158 = vpack.c.b16 %v135, %v134
  %v159 = vpack.c.b16 %v137, %v136
  %v160 = vpack.c.b16 %v139, %v138
  %v161 = vpack.c.b16 %v141, %v140
  %v162 = vpack.c.b16 %v143, %v142
  %v163 = vpack.c.b16 %v145, %v144
  %v164 = vpack.c.b16 %v147, %v146
  %v165 = vpack.c.b16 %v149, %v148
  %182 = vmatprep.subr.bf16.mxu0 0
  %183 = vmatpush1.bf16.msra.mxu0 %v157
  %184 = vmatprep.subr.bf16.mxu0 0
  %185 = vmatpush1.bf16.msra.mxu0 %v156
  %186 = vmatprep.subr.bf16.mxu0 0
  %187 = vmatpush1.bf16.msra.mxu0 %v155
  %188 = vmatprep.subr.bf16.mxu0 0
  %189 = vmatpush1.bf16.msra.mxu0 %v154
  %190 = vmatprep.subr.bf16.mxu0 0
  %191 = vmatpush1.bf16.msra.mxu0 %v153
  %192 = vmatprep.subr.bf16.mxu0 0
  %193 = vmatpush1.bf16.msra.mxu0 %v152
  %194 = vmatprep.subr.bf16.mxu0 0
  %195 = vmatpush1.bf16.msra.mxu0 %v151
  %196 = vmatprep.subr.bf16.mxu0 0
  %197 = vmatpush1.bf16.msra.mxu0 %v150
  %198 = vmatprep.subr.bf16.mxu0 0
  %199 = vmatpush2.bf16.msra.mxu0 %v165
  %200 = vmatprep.subr.bf16.mxu0 0
  %201 = vmatpush2.bf16.msra.mxu0 %v164
  %202 = vmatprep.subr.bf16.mxu0 0
  %203 = vmatpush2.bf16.msra.mxu0 %v163
  %204 = vmatprep.subr.bf16.mxu0 0
  %205 = vmatpush2.bf16.msra.mxu0 %v162
  %206 = vmatprep.subr.bf16.mxu0 0
  %207 = vmatpush2.bf16.msra.mxu0 %v161
  %208 = vmatprep.subr.bf16.mxu0 0
  %209 = vmatpush2.bf16.msra.mxu0 %v160
  %210 = vmatprep.subr.bf16.mxu0 0
  %211 = vmatpush2.bf16.msra.mxu0 %v159
  %212 = vmatprep.subr.bf16.mxu0 0
  %213 = vmatpush2.bf16.msra.mxu0 %v158
  %214 = vmatprep.mubr.bf16.mxu0 %v79
  %215 = vmatmul.mubr.bf16.gmra.mxu0 %v78
  %v216 = vpop.f32.mrf.mxu0
  %v217 = vadd.f32 0.0, %v216
  %v218 = vpop.f32.mrf.mxu0
  %v219 = vpop.f32.mrf.mxu0
  %v220 = vadd.f32 0.0, %v219
  %v221 = vpop.f32.mrf.mxu0
  %222 = vmatprep.mubr.bf16.mxu0 %v81
  %223 = vmatmul.mubr.bf16.gmra.mxu0 %v80
  %v224 = vpop.f32.mrf.mxu0
  %v225 = vadd.f32 0.0, %v224
  %v226 = vpop.f32.mrf.mxu0
  %v227 = vpop.f32.mrf.mxu0
  %v228 = vadd.f32 0.0, %v227
  %v229 = vpop.f32.mrf.mxu0
  %230 = vdwg.mxu0
  %vm231 = vcmask 261120
  %232 = vst.msk [vmem:[%s2] sm:$0xff] %vm231, %v217
  %233 = vst.msk [vmem:[%s2 + $0x8] sm:$0xff] %vm231, %v220
  %234 = vst.msk [vmem:[%s2 + $0x10] sm:$0xff] %vm231, %v225
  %235 = vst.msk [vmem:[%s2 + $0x18] sm:$0xff] %vm231, %v228
  %v236 = vld [vmem:[%s3] sm:$0xff]
  %v237 = vld [vmem:[%s3 + $0x8] sm:$0xff]
  %v238 = vld [vmem:[%s3 + $0x10] sm:$0xff]
  %v239 = vld [vmem:[%s3 + $0x18] sm:$0xff]
  %v240 = vsel %vm231, %v217, 0.0
  %241 = vadd.xlane.f32.xlu0 %v240
  %v242 = vpop.xlane.xlu0 %241
  %v243 = vsel %vm231, %v220, 0.0
  %244 = vadd.xlane.f32.xlu0 %v243
  %v245 = vpop.xlane.xlu0 %244
  %v246 = vsel %vm231, %v225, 0.0
  %247 = vadd.xlane.f32.xlu0 %v246
  %v248 = vpop.xlane.xlu0 %247
  %v249 = vsel %vm231, %v228, 0.0
  %250 = vadd.xlane.f32.xlu0 %v249
  %v251 = vpop.xlane.xlu0 %250
  %v252 = vadd.f32 %v236, %v242
  %v253 = vadd.f32 %v237, %v245
  %v254 = vadd.f32 %v238, %v248
  %v255 = vadd.f32 %v239, %v251
  %vm256 = vcmask 7168
  %257 = vst.msk [vmem:[%s3] sm:$0xff] %vm256, %v252
  %258 = vst.msk [vmem:[%s3 + $0x8] sm:$0xff] %vm256, %v253
  %259 = vst.msk [vmem:[%s3 + $0x10] sm:$0xff] %vm256, %v254
  %260 = vst.msk [vmem:[%s3 + $0x18] sm:$0xff] %vm256, %v255
  %v261 = vld [vmem:[%s4] sm:$0xff]
  %v262 = vld [vmem:[%s4 + $0x8] sm:$0xff]
  %v263 = vld [vmem:[%s4 + $0x10] sm:$0xff]
  %v264 = vld [vmem:[%s4 + $0x18] sm:$0xff]
  %v265 = vmul.f32 %v217, %v217
  %v266 = vmul.f32 %v220, %v220
  %v267 = vmul.f32 %v225, %v225
  %v268 = vmul.f32 %v228, %v228
  %v269 = vsel %vm231, %v265, 0.0
  %270 = vadd.xlane.f32.xlu0 %v269
  %v271 = vpop.xlane.xlu0 %270
  %v272 = vsel %vm231, %v266, 0.0
  %273 = vadd.xlane.f32.xlu0 %v272
  %v274 = vpop.xlane.xlu0 %273
  %v275 = vsel %vm231, %v267, 0.0
  %276 = vadd.xlane.f32.xlu0 %v275
  %v277 = vpop.xlane.xlu0 %276
  %v278 = vsel %vm231, %v268, 0.0
  %279 = vadd.xlane.f32.xlu0 %v278
  %v280 = vpop.xlane.xlu0 %279
  %v281 = vadd.f32 %v261, %v271
  %v282 = vadd.f32 %v262, %v274
  %v283 = vadd.f32 %v263, %v277
  %v284 = vadd.f32 %v264, %v280
  %285 = vst.msk [vmem:[%s4] sm:$0xff] %vm256, %v281
  %286 = vst.msk [vmem:[%s4 + $0x8] sm:$0xff] %vm256, %v282
  %287 = vst.msk [vmem:[%s4 + $0x10] sm:$0xff] %vm256, %v283
  %288 = vst.msk [vmem:[%s4 + $0x18] sm:$0xff] %vm256, %v284
  // Predicated region
  $region14: #{generator_forward.7} parent=0 // pred_check
    _
  $region15: #{generator_forward.7} parent=0 // pred_check_branch
    %290 = sbr.rel (0) target = $region17
  $region16: #{generator_forward.7} parent=0 // pred_region
    _
  $region17: #{generator_forward.7} parent=0 // pred_fallthru
    _
  // Predicated region
  $region18: #{generator_forward.7} parent=0 // pred_check
    _
  $region19: #{generator_forward.7} parent=0 // pred_check_branch
    %292 = sbr.rel (0) target = $region21
  $region20: #{generator_forward.7} parent=0 // pred_region
    _
  $region21: #{generator_forward.7} parent=0 // pred_fallthru
    _
  // Predicated region
  $region22: #{generator_forward.7} parent=0 // pred_check
    _
  $region23: #{generator_forward.7} parent=0 // pred_check_branch
    %294 = sbr.rel (0) target = $region25
  $region24: #{generator_forward.7} parent=0 // pred_region
    _
  $region25: #{generator_forward.7} parent=0 // pred_fallthru
    _
  // Predicated region
  $region26: #{generator_forward.7} parent=0 // pred_check
    _
  $region27: #{generator_forward.7} parent=0 // pred_check_branch
    %296 = sbr.rel (0) target = $region29
  $region28: #{generator_forward.7} parent=0 // pred_region
    _
  $region29: #{generator_forward.7} parent=0 // pred_fallthru
    _
  // Predicated region
  $region30: #{generator_forward.7} parent=0 // pred_check
    _
  $region31: #{generator_forward.7} parent=0 // pred_check_branch
    %298 = sbr.rel (0) target = $region33
  $region32: #{generator_forward.7} parent=0 // pred_region
    _
  $region33: #{generator_forward.7} parent=0 // pred_fallthru
    _
  // Predicated region
  $region34: #{generator_forward.7} parent=0 // pred_check
    _
  $region35: #{generator_forward.7} parent=0 // pred_check_branch
    %300 = sbr.rel (0) target = $region37
  $region36: #{generator_forward.7} parent=0 // pred_region
    _
  $region37: #{generator_forward.7} parent=0 // pred_fallthru
    _

// kernel: generator_forward.10
$region0: #{generator_forward.10}
  #allocation0 [shape = 'u32[]', space=smem, size = 0x4, offset = 0x4, fixed_abs, tag = 'smem constant byte address 0x4 - core index']
  #allocation1 [shape = 'u32[144,128]{1,0:T(1,128)}', space=vmem, size = 0x12000, scoped, tag = 'internal scratch']
  %s0 = inlined_call_operand.vmem [shape: f32[4,16,32], index: 0, kind: input, shape index: {}]
  %s1 = inlined_call_operand.vmem [shape: f32[16,1], index: 1, kind: input, shape index: {}]
  %s2 = inlined_call_operand.vmem [shape: f32[16,1], index: 2, kind: input, shape index: {}]
  %s3 = inlined_call_operand.vmem [shape: f32[16,1], index: 3, kind: input, shape index: {}]
  %s4 = inlined_call_operand.vmem [shape: f32[16,1], index: 4, kind: input, shape index: {}]
  %s5 = inlined_call_operand.vmem [shape: f32[4,16,32], index: 5, kind: output, shape index: {}]
  %s6 = sld [smem:[#allocation0]]
  $region53: #{generator_forward.10} parent=0
    _
  %s8 = ssub.s32 1, %s6
  %s9 = scalar_select 0, %s8, %s6
  loop: start=0, step=1, limit=6
  $region2: #{generator_forward.10} parent=0 // loop_pre_header
    _
  $region3: #{generator_forward.10} parent=0 // loop_header
    %s11 = sphi 0, %s15
    %p12 = scmp.ge.s32.totalorder %s11, 6
    %s18 = sphi 0, %s30
    %s19 = sphi 0, %s26
    %s20 = sphi 0, %s18
    %s21 = sphi 0, %s19
    %s22 = sphi 0, %s20
    %s23 = sphi 0, %s21
    %s35 = sphi 0, %s37
    %s38 = sphi 0, %s35
    %s39 = sphi 0, %s38
    %s55 = sphi 0, %s39
    %s59 = sphi 0, %s59
    %s61 = sphi 0, %s59
    %s62 = sphi 0, %s61
    %s76 = sphi 0, %s62
    %s80 = sphi 0, %s80
    %s82 = sphi 0, %s80
    %s83 = sphi 0, %s82
    %s97 = sphi 0, %s83
    %s101 = sphi 0, %s101
    %s103 = sphi 0, %s101
    %s104 = sphi 0, %s103
    %s118 = sphi 0, %s104
    %s122 = sphi 0, %s122
    %s124 = sphi 0, %s122
    %s125 = sphi 0, %s124
    %s139 = sphi 0, %s125
    %s147 = sphi 0, %s149
    %s150 = sphi 0, %s147
    %s151 = sphi 0, %s150
    %s167 = sphi 0, %s151
  $region4: #{generator_forward.10} parent=0 // loop_header_branch
    %14 = sbr.rel (%p12) target = $region8
  $region5: #{generator_forward.10} parent=0 // loop_body
    %s16 = ssub.s32 %s11, 1
    %s17 = ssub.s32 %s11, 2
    %s24 = sadd.s32 1, %s19
    %p25 = scmp.ge.s32.totalorder %s24, 1
    %s26 = scalar_select %p25, 0, %s24
    %s27 = sadd.s32 1, %s18
    %s28 = scalar_select %p25, %s27, %s18
    %p29 = scmp.ge.s32.totalorder %s28, 4
    %s30 = scalar_select %p29, 0, %s28
    %s31 = ssub.s32 %s18, %s30
    %s32 = ssub.s32 %s19, %s26
    %s33 = sor.u32 %s31, %s32
    %p34 = scmp.eq.s32.totalorder %s33, 0
    %s36 = sadd.s32 %s35, 1
    %s37 = scalar_select %p34, %s35, %s36
    %p40 = pneg %p34
    %p41 = scmp.eq.s32.totalorder %s11, 3
    %p42 = por %p40, %p41
    %p43 = scmp.ne.s32.totalorder %s35, %s38
    %p44 = scmp.eq.s32.totalorder %s11, 0
    %p45 = por %p43, %p44
    %p46 = scmp.ne.s32.totalorder %s35, %s38
    %p47 = scmp.eq.s32.totalorder %s16, 3
    %p48 = por %p46, %p47
    %p49 = scmp.ne.s32.totalorder %s38, %s39
    %p50 = scmp.eq.s32.totalorder %s16, 0
    %p51 = por %p49, %p50
    %p52 = scmp.ne.s32.totalorder %s38, %s39
    %p53 = scmp.eq.s32.totalorder %s17, 3
    %p54 = por %p52, %p53
    %p56 = scmp.ne.s32.totalorder %s39, %s55
    %p57 = scmp.eq.s32.totalorder %s17, 0
    %p58 = por %p56, %p57
    %s60 = sadd.s32 %s59, 1
    %p63 = scmp.eq.s32.totalorder %s11, 3
    %p64 = scmp.ne.s32.totalorder %s59, %s61
    %p65 = scmp.eq.s32.totalorder %s11, 0
    %p66 = por %p64, %p65
    %p67 = scmp.ne.s32.totalorder %s59, %s61
    %p68 = scmp.eq.s32.totalorder %s16, 3
    %p69 = por %p67, %p68
    %p70 = scmp.ne.s32.totalorder %s61, %s62
    %p71 = scmp.eq.s32.totalorder %s16, 0
    %p72 = por %p70, %p71
    %p73 = scmp.ne.s32.totalorder %s61, %s62
    %p74 = scmp.eq.s32.totalorder %s17, 3
    %p75 = por %p73, %p74
    %p77 = scmp.ne.s32.totalorder %s62, %s76
    %p78 = scmp.eq.s32.totalorder %s17, 0
    %p79 = por %p77, %p78
    %s81 = sadd.s32 %s80, 1
    %p84 = scmp.eq.s32.totalorder %s11, 3
    %p85 = scmp.ne.s32.totalorder %s80, %s82
    %p86 = scmp.eq.s32.totalorder %s11, 0
    %p87 = por %p85, %p86
    %p88 = scmp.ne.s32.totalorder %s80, %s82
    %p89 = scmp.eq.s32.totalorder %s16, 3
    %p90 = por %p88, %p89
    %p91 = scmp.ne.s32.totalorder %s82, %s83
    %p92 = scmp.eq.s32.totalorder %s16, 0
    %p93 = por %p91, %p92
    %p94 = scmp.ne.s32.totalorder %s82, %s83
    %p95 = scmp.eq.s32.totalorder %s17, 3
    %p96 = por %p94, %p95
    %p98 = scmp.ne.s32.totalorder %s83, %s97
    %p99 = scmp.eq.s32.totalorder %s17, 0
    %p100 = por %p98, %p99
    %s102 = sadd.s32 %s101, 1
    %p105 = scmp.eq.s32.totalorder %s11, 3
    %p106 = scmp.ne.s32.totalorder %s101, %s103
    %p107 = scmp.eq.s32.totalorder %s11, 0
    %p108 = por %p106, %p107
    %p109 = scmp.ne.s32.totalorder %s101, %s103
    %p110 = scmp.eq.s32.totalorder %s16, 3
    %p111 = por %p109, %p110
    %p112 = scmp.ne.s32.totalorder %s103, %s104
    %p113 = scmp.eq.s32.totalorder %s16, 0
    %p114 = por %p112, %p113
    %p115 = scmp.ne.s32.totalorder %s103, %s104
    %p116 = scmp.eq.s32.totalorder %s17, 3
    %p117 = por %p115, %p116
    %p119 = scmp.ne.s32.totalorder %s104, %s118
    %p120 = scmp.eq.s32.totalorder %s17, 0
    %p121 = por %p119, %p120
    %s123 = sadd.s32 %s122, 1
    %p126 = scmp.eq.s32.totalorder %s11, 3
    %p127 = scmp.ne.s32.totalorder %s122, %s124
    %p128 = scmp.eq.s32.totalorder %s11, 0
    %p129 = por %p127, %p128
    %p130 = scmp.ne.s32.totalorder %s122, %s124
    %p131 = scmp.eq.s32.totalorder %s16, 3
    %p132 = por %p130, %p131
    %p133 = scmp.ne.s32.totalorder %s124, %s125
    %p134 = scmp.eq.s32.totalorder %s16, 0
    %p135 = por %p133, %p134
    %p136 = scmp.ne.s32.totalorder %s124, %s125
    %p137 = scmp.eq.s32.totalorder %s17, 3
    %p138 = por %p136, %p137
    %p140 = scmp.ne.s32.totalorder %s125, %s139
    %p141 = scmp.eq.s32.totalorder %s17, 0
    %p142 = por %p140, %p141
    %s143 = ssub.s32 %s18, %s30
    %s144 = ssub.s32 %s19, %s26
    %s145 = sor.u32 %s143, %s144
    %p146 = scmp.eq.s32.totalorder %s145, 0
    %s148 = sadd.s32 %s147, 1
    %s149 = scalar_select %p146, %s147, %s148
    %p152 = pneg %p146
    %p153 = scmp.eq.s32.totalorder %s11, 3
    %p154 = por %p152, %p153
    %p155 = scmp.ne.s32.totalorder %s147, %s150
    %p156 = scmp.eq.s32.totalorder %s11, 0
    %p157 = por %p155, %p156
    %p158 = scmp.ne.s32.totalorder %s147, %s150
    %p159 = scmp.eq.s32.totalorder %s16, 3
    %p160 = por %p158, %p159
    %p161 = scmp.ne.s32.totalorder %s150, %s151
    %p162 = scmp.eq.s32.totalorder %s16, 0
    %p163 = por %p161, %p162
    %p164 = scmp.ne.s32.totalorder %s150, %s151
    %p165 = scmp.eq.s32.totalorder %s17, 3
    %p166 = por %p164, %p165
    %p168 = scmp.ne.s32.totalorder %s151, %s167
    %p169 = scmp.eq.s32.totalorder %s17, 0
    %p170 = por %p168, %p169
    %p171 = scmp.le.s32.totalorder 1, %s11
    %p172 = scmp.lt.s32.totalorder %s11, 5
    %p173 = pnand %p171, %p172
    %p174 = pneg %p173
    // Predicated region
    $region9: #{generator_forward.10} parent=5 // pred_check
      _
    $region10: #{generator_forward.10} parent=5 // pred_check_branch
      %176 = sbr.rel (%p173) target = $region12
    $region11: #{generator_forward.10} parent=5 // pred_region
      %s177 = ssub.s32 %s11, 1
      // Predicated region
      $region13: #{generator_forward.10} parent=11 // pred_check
        %p178 = pneg %p72
      $region14: #{generator_forward.10} parent=11 // pred_check_branch
        %180 = sbr.rel (%p178) target = $region16
      $region15: #{generator_forward.10} parent=11 // pred_region
        _
      $region16: #{generator_forward.10} parent=11 // pred_fallthru
        _
      // Predicated region
      $region17: #{generator_forward.10} parent=11 // pred_check
        %p181 = pneg %p93
      $region18: #{generator_forward.10} parent=11 // pred_check_branch
        %183 = sbr.rel (%p181) target = $region20
      $region19: #{generator_forward.10} parent=11 // pred_region
        _
      $region20: #{generator_forward.10} parent=11 // pred_fallthru
        _
      // Predicated region
      $region21: #{generator_forward.10} parent=11 // pred_check
        %p184 = pneg %p114
      $region22: #{generator_forward.10} parent=11 // pred_check_branch
        %186 = sbr.rel (%p184) target = $region24
      $region23: #{generator_forward.10} parent=11 // pred_region
        _
      $region24: #{generator_forward.10} parent=11 // pred_fallthru
        _
      // Predicated region
      $region25: #{generator_forward.10} parent=11 // pred_check
        %p187 = pneg %p135
      $region26: #{generator_forward.10} parent=11 // pred_check_branch
        %189 = sbr.rel (%p187) target = $region28
      $region27: #{generator_forward.10} parent=11 // pred_region
        _
      $region28: #{generator_forward.10} parent=11 // pred_fallthru
        _
    $region12: #{generator_forward.10} parent=5 // pred_fallthru
      _
    %p190 = scmp.lt.s32.totalorder %s11, 4
    // Predicated region
    $region29: #{generator_forward.10} parent=5 // pred_check
      %p191 = pneg %p190
    $region30: #{generator_forward.10} parent=5 // pred_check_branch
      %193 = sbr.rel (%p191) target = $region32
    $region31: #{generator_forward.10} parent=5 // pred_region
      // Predicated region
      $region33: #{generator_forward.10} parent=31 // pred_check
        %p194 = pneg %p45
      $region34: #{generator_forward.10} parent=31 // pred_check_branch
        %196 = sbr.rel (%p194) target = $region36
      $region35: #{generator_forward.10} parent=31 // pred_region
        %p197 = scmp.lt.s32.totalorder %s18, 3
        %s198 = scalar_select %p197, %s18, 3
        %p199 = scmp.lt.s32.totalorder %s19, 0
        %s200 = scalar_select %p199, %s19, 0
        %s201 = smul.addr %s198, 2
        %s202 = sadd.s32 %s200, %s201
        %s203 = smul.addr %s202, 8
        %s204 = scalar_lea.vmem %s0, %s203
      $region36: #{generator_forward.10} parent=31 // pred_fallthru
        _
    $region32: #{generator_forward.10} parent=5 // pred_fallthru
      _
    %p205 = scmp.le.s32.totalorder 1, %s11
    %p206 = scmp.lt.s32.totalorder %s11, 5
    %p207 = pnand %p205, %p206
    %p208 = pneg %p207
    // Predicated region
    $region37: #{generator_forward.10} parent=5 // pred_check
      _
    $region38: #{generator_forward.10} parent=5 // pred_check_branch
      %210 = sbr.rel (%p207) target = $region40
    $region39: #{generator_forward.10} parent=5 // pred_region
      %s211 = ssub.s32 %s11, 1
      %p212 = scmp.lt.s32.totalorder %s20, 3
      %s213 = scalar_select %p212, %s20, 3
      %p214 = scmp.lt.s32.totalorder %s21, 0
      %s215 = scalar_select %p214, %s21, 0
      %s216 = smul.addr %s213, 2
      %s217 = sadd.s32 %s215, %s216
      %s218 = smul.addr %s217, 8
      %s219 = scalar_lea.vmem %s0, %s218
      %p220 = pneg %p51
      %p221 = pneg %p48
      %p222 = pneg %p72
      %p223 = pneg %p69
      %p224 = pneg %p93
      %p225 = pneg %p90
      %p226 = pneg %p114
      %p227 = pneg %p111
      %p228 = pneg %p135
      %p229 = pneg %p132
      %p230 = pneg %p163
      %p231 = pneg %p160
      %p232 = scmp.lt.s32.totalorder %s20, 3
      %s233 = scalar_select %p232, %s20, 3
      %p234 = scmp.lt.s32.totalorder %s21, 0
      %s235 = scalar_select %p234, %s21, 0
      %s236 = smul.addr %s233, 2
      %s237 = sadd.s32 %s235, %s236
      %s238 = smul.addr %s237, 8
      %s239 = scalar_lea.vmem %s5, %s238
      %p240 = scmp.lt.s32.totalorder %s20, 3
      %s241 = scalar_select %p240, %s20, 3
      %p242 = scmp.lt.s32.totalorder %s21, 0
      %s243 = scalar_select %p242, %s21, 0
      %s244 = smul.addr %s241, 2
      %s245 = sadd.s32 %s243, %s244
      %s246 = smul.addr %s245, 8
      %s247 = scalar_lea.vmem %s0, %s246
      %p248 = scmp.lt.s32.totalorder %s20, 3
      %s249 = scalar_select %p248, %s20, 3
      %p250 = scmp.lt.s32.totalorder %s21, 0
      %s251 = scalar_select %p250, %s21, 0
      %s252 = smul.addr %s249, 2
      %s253 = sadd.s32 %s251, %s252
      %s254 = smul.addr %s253, 8
      %s255 = scalar_lea.vmem %s5, %s254
      %v256 = vld [vmem:[%s1] sm:$0xff]
      %v257 = vld [vmem:[%s1 + $0x8] sm:$0xff]
      %v258 = vmul.f32 %v256, 0.0078125
      %v259 = vmul.f32 %v257, 0.0078125
      %v260 = vld [vmem:[%s2] sm:$0xff]
      %v261 = vld [vmem:[%s2 + $0x8] sm:$0xff]
      %v262 = vmul.f32 %v260, 0.0078125
      %v263 = vmul.f32 %v261, 0.0078125
      %v264 = vmul.f32 %v258, %v258
      %v265 = vmul.f32 %v259, %v259
      %v266 = vsub.f32 %v262, %v264
      %v267 = vsub.f32 %v263, %v265
      %v268 = vld [vmem:[%s3] sm:$0xff]
      %v269 = vld [vmem:[%s3 + $0x8] sm:$0xff]
      %v270 = vadd.f32 %v266, 1e-05
      %v271 = vadd.f32 %v267, 1e-05
      %v272 = vrsqrt.pop %v270
      %v273 = vrsqrt.pop %v271
      %v274 = vmul.f32 %v268, %v272
      %v275 = vmul.f32 %v269, %v273
      %v276 = vld [vmem:[%s4] sm:$0xff]
      %v277 = vld [vmem:[%s4 + $0x8] sm:$0xff]
      %v278 = vmul.f32 %v258, %v274
      %v279 = vmul.f32 %v259, %v275
      %v280 = vsub.f32 %v276, %v278
      %v281 = vsub.f32 %v277, %v279
      %v282 = vld [vmem:[%s247] sm:$0xff]
      %v283 = vld [vmem:[%s247 + $0x8] sm:$0xff]
      %285 = vset.pattern.permute.xlu0 0
      %286 = vperm.xlu0 %285, %v274
      %v287 = vpop.permute.xlu0 %286
      %290 = vset.pattern.permute.xlu0 0
      %291 = vperm.xlu0 %290, %v275
      %v292 = vpop.permute.xlu0 %291
      %v294 = vmul.f32 %v282, %v287
      %v295 = vmul.f32 %v283, %v292
      %297 = vset.pattern.permute.xlu0 0
      %298 = vperm.xlu0 %297, %v280
      %v299 = vpop.permute.xlu0 %298
      %302 = vset.pattern.permute.xlu0 0
      %303 = vperm.xlu0 %302, %v281
      %v304 = vpop.permute.xlu0 %303
      %v306 = vadd.f32 %v294, %v299
      %v307 = vadd.f32 %v295, %v304
      %v308 = vmax.f32 %v306, 0.0
      %v309 = vmax.f32 %v307, 0.0
      %vm310 = vcmask 261120
      %311 = vst.msk [vmem:[%s255] sm:$0xff] %vm310, %v308
      %312 = vst.msk [vmem:[%s255 + $0x8] sm:$0xff] %vm310, %v309
      %p313 = scmp.lt.s32.totalorder %s20, 3
      %s314 = scalar_select %p313, %s20, 3
      %p315 = scmp.lt.s32.totalorder %s21, 0
      %s316 = scalar_select %p315, %s21, 0
      %s317 = smul.addr %s314, 2
      %s318 = sadd.s32 %s316, %s317
      %s319 = smul.addr %s318, 8
      %s320 = scalar_lea.vmem %s5, %s319
      // Predicated region
      $region41: #{generator_forward.10} parent=39 // pred_check
        %p321 = pneg %p160
      $region42: #{generator_forward.10} parent=39 // pred_check_branch
        %323 = sbr.rel (%p321) target = $region44
      $region43: #{generator_forward.10} parent=39 // pred_region
        _
      $region44: #{generator_forward.10} parent=39 // pred_fallthru
        _
    $region40: #{generator_forward.10} parent=5 // pred_fallthru
      _
    %p324 = scmp.le.s32.totalorder 2, %s11
    // Predicated region
    $region45: #{generator_forward.10} parent=5 // pred_check
      %p325 = pneg %p324
    $region46: #{generator_forward.10} parent=5 // pred_check_branch
      %327 = sbr.rel (%p325) target = $region48
    $region47: #{generator_forward.10} parent=5 // pred_region
      %s328 = ssub.s32 %s11, 2
      // Predicated region
      $region49: #{generator_forward.10} parent=47 // pred_check
        %p329 = pneg %p166
      $region50: #{generator_forward.10} parent=47 // pred_check_branch
        %331 = sbr.rel (%p329) target = $region52
      $region51: #{generator_forward.10} parent=47 // pred_region
        %p332 = scmp.lt.s32.totalorder %s22, 3
        %s333 = scalar_select %p332, %s22, 3
        %p334 = scmp.lt.s32.totalorder %s23, 0
        %s335 = scalar_select %p334, %s23, 0
        %s336 = smul.addr %s333, 2
        %s337 = sadd.s32 %s335, %s336
        %s338 = smul.addr %s337, 8
        %s339 = scalar_lea.vmem %s5, %s338
      $region52: #{generator_forward.10} parent=47 // pred_fallthru
        _
    $region48: #{generator_forward.10} parent=5 // pred_fallthru
      _
  $region6: #{generator_forward.10} parent=0 // loop_footer
    %s15 = sadd.s32 1, %s11
  $region7: #{generator_forward.10} parent=0 // loop_footer_branch
    %10 = sbr.rel target = $region3
  $region8: #{generator_forward.10} parent=0 // loop_exit
    _

// kernel: generator_forward.9
$region0: #{generator_forward.9}
  #allocation0 [shape = 'u32[]', space=smem, size = 0x4, offset = 0x4, fixed_abs, tag = 'smem constant byte address 0x4 - core index']
  #allocation1 [shape = 'u32[144,128]{1,0:T(1,128)}', space=vmem, size = 0x12000, scoped, tag = 'internal scratch']
  %s0 = inlined_call_operand.vmem [shape: bf16[4,16,128], index: 0, kind: input, shape index: {}]
  %s1 = inlined_call_operand.vmem [shape: bf16[4,128,32], index: 1, kind: input, shape index: {}]
  %s2 = inlined_call_operand.vmem [shape: f32[4,16,32], index: 2, kind: output, shape index: {0}]
  %s3 = inlined_call_operand.vmem [shape: f32[16,1], index: 3, kind: output, shape index: {1}]
  %s4 = inlined_call_operand.vmem [shape: f32[16,1], index: 4, kind: output, shape index: {2}]
  %5 = xla_tuple %s2, %s3, %s4
  %s6 = sld [smem:[#allocation0]]
  $region61: #{generator_forward.9} parent=0
    _
  %s8 = ssub.s32 1, %s6
  %s9 = scalar_select 0, %s8, %s6
  loop: start=0, step=1, limit=6
  $region2: #{generator_forward.9} parent=0 // loop_pre_header
    _
  $region3: #{generator_forward.9} parent=0 // loop_header
    %s11 = sphi 0, %s15
    %p12 = scmp.ge.s32.totalorder %s11, 6
    %s18 = sphi 0, %s30
    %s19 = sphi 0, %s26
    %s20 = sphi 0, %s18
    %s21 = sphi 0, %s19
    %s22 = sphi 0, %s20
    %s23 = sphi 0, %s21
    %s33 = sphi 0, %s35
    %s36 = sphi 0, %s33
    %s37 = sphi 0, %s36
    %s53 = sphi 0, %s37
    %s61 = sphi 0, %s63
    %s64 = sphi 0, %s61
    %s65 = sphi 0, %s64
    %s81 = sphi 0, %s65
    %s89 = sphi 0, %s91
    %s92 = sphi 0, %s89
    %s93 = sphi 0, %s92
    %s109 = sphi 0, %s93
    %s113 = sphi 0, %s113
    %s115 = sphi 0, %s113
    %s116 = sphi 0, %s115
    %s130 = sphi 0, %s116
    %s134 = sphi 0, %s134
    %s136 = sphi 0, %s134
    %s137 = sphi 0, %s136
    %s151 = sphi 0, %s137
  $region4: #{generator_forward.9} parent=0 // loop_header_branch
    %14 = sbr.rel (%p12) target = $region8
  $region5: #{generator_forward.9} parent=0 // loop_body
    %s16 = ssub.s32 %s11, 1
    %s17 = ssub.s32 %s11, 2
    %s24 = sadd.s32 1, %s19
    %p25 = scmp.ge.s32.totalorder %s24, 1
    %s26 = scalar_select %p25, 0, %s24
    %s27 = sadd.s32 1, %s18
    %s28 = scalar_select %p25, %s27, %s18
    %p29 = scmp.ge.s32.totalorder %s28, 4
    %s30 = scalar_select %p29, 0, %s28
    %s31 = ssub.s32 %s18, %s30
    %p32 = scmp.eq.s32.totalorder %s31, 0
    %s34 = sadd.s32 %s33, 1
    %s35 = scalar_select %p32, %s33, %s34
    %p38 = pneg %p32
    %p39 = scmp.eq.s32.totalorder %s11, 3
    %p40 = por %p38, %p39
    %p41 = scmp.ne.s32.totalorder %s33, %s36
    %p42 = scmp.eq.s32.totalorder %s11, 0
    %p43 = por %p41, %p42
    %p44 = scmp.ne.s32.totalorder %s33, %s36
    %p45 = scmp.eq.s32.totalorder %s16, 3
    %p46 = por %p44, %p45
    %p47 = scmp.ne.s32.totalorder %s36, %s37
    %p48 = scmp.eq.s32.totalorder %s16, 0
    %p49 = por %p47, %p48
    %p50 = scmp.ne.s32.totalorder %s36, %s37
    %p51 = scmp.eq.s32.totalorder %s17, 3
    %p52 = por %p50, %p51
    %p54 = scmp.ne.s32.totalorder %s37, %s53
    %p55 = scmp.eq.s32.totalorder %s17, 0
    %p56 = por %p54, %p55
    %s57 = ssub.s32 %s18, %s30
    %s58 = ssub.s32 %s19, %s26
    %s59 = sor.u32 %s57, %s58
    %p60 = scmp.eq.s32.totalorder %s59, 0
    %s62 = sadd.s32 %s61, 1
    %s63 = scalar_select %p60, %s61, %s62
    %p66 = pneg %p60
    %p67 = scmp.eq.s32.totalorder %s11, 3
    %p68 = por %p66, %p67
    %p69 = scmp.ne.s32.totalorder %s61, %s64
    %p70 = scmp.eq.s32.totalorder %s11, 0
    %p71 = por %p69, %p70
    %p72 = scmp.ne.s32.totalorder %s61, %s64
    %p73 = scmp.eq.s32.totalorder %s16, 3
    %p74 = por %p72, %p73
    %p75 = scmp.ne.s32.totalorder %s64, %s65
    %p76 = scmp.eq.s32.totalorder %s16, 0
    %p77 = por %p75, %p76
    %p78 = scmp.ne.s32.totalorder %s64, %s65
    %p79 = scmp.eq.s32.totalorder %s17, 3
    %p80 = por %p78, %p79
    %p82 = scmp.ne.s32.totalorder %s65, %s81
    %p83 = scmp.eq.s32.totalorder %s17, 0
    %p84 = por %p82, %p83
    %s85 = ssub.s32 %s18, %s30
    %s86 = ssub.s32 %s19, %s26
    %s87 = sor.u32 %s85, %s86
    %p88 = scmp.eq.s32.totalorder %s87, 0
    %s90 = sadd.s32 %s89, 1
    %s91 = scalar_select %p88, %s89, %s90
    %p94 = pneg %p88
    %p95 = scmp.eq.s32.totalorder %s11, 3
    %p96 = por %p94, %p95
    %p97 = scmp.ne.s32.totalorder %s89, %s92
    %p98 = scmp.eq.s32.totalorder %s11, 0
    %p99 = por %p97, %p98
    %p100 = scmp.ne.s32.totalorder %s89, %s92
    %p101 = scmp.eq.s32.totalorder %s16, 3
    %p102 = por %p100, %p101
    %p103 = scmp.ne.s32.totalorder %s92, %s93
    %p104 = scmp.eq.s32.totalorder %s16, 0
    %p105 = por %p103, %p104
    %p106 = scmp.ne.s32.totalorder %s92, %s93
    %p107 = scmp.eq.s32.totalorder %s17, 3
    %p108 = por %p106, %p107
    %p110 = scmp.ne.s32.totalorder %s93, %s109
    %p111 = scmp.eq.s32.totalorder %s17, 0
    %p112 = por %p110, %p111
    %s114 = sadd.s32 %s113, 1
    %p117 = scmp.eq.s32.totalorder %s11, 3
    %p118 = scmp.ne.s32.totalorder %s113, %s115
    %p119 = scmp.eq.s32.totalorder %s11, 0
    %p120 = por %p118, %p119
    %p121 = scmp.ne.s32.totalorder %s113, %s115
    %p122 = scmp.eq.s32.totalorder %s16, 3
    %p123 = por %p121, %p122
    %p124 = scmp.ne.s32.totalorder %s115, %s116
    %p125 = scmp.eq.s32.totalorder %s16, 0
    %p126 = por %p124, %p125
    %p127 = scmp.ne.s32.totalorder %s115, %s116
    %p128 = scmp.eq.s32.totalorder %s17, 3
    %p129 = por %p127, %p128
    %p131 = scmp.ne.s32.totalorder %s116, %s130
    %p132 = scmp.eq.s32.totalorder %s17, 0
    %p133 = por %p131, %p132
    %s135 = sadd.s32 %s134, 1
    %p138 = scmp.eq.s32.totalorder %s11, 3
    %p139 = scmp.ne.s32.totalorder %s134, %s136
    %p140 = scmp.eq.s32.totalorder %s11, 0
    %p141 = por %p139, %p140
    %p142 = scmp.ne.s32.totalorder %s134, %s136
    %p143 = scmp.eq.s32.totalorder %s16, 3
    %p144 = por %p142, %p143
    %p145 = scmp.ne.s32.totalorder %s136, %s137
    %p146 = scmp.eq.s32.totalorder %s16, 0
    %p147 = por %p145, %p146
    %p148 = scmp.ne.s32.totalorder %s136, %s137
    %p149 = scmp.eq.s32.totalorder %s17, 3
    %p150 = por %p148, %p149
    %p152 = scmp.ne.s32.totalorder %s137, %s151
    %p153 = scmp.eq.s32.totalorder %s17, 0
    %p154 = por %p152, %p153
    %p155 = scmp.le.s32.totalorder 1, %s11
    %p156 = scmp.lt.s32.totalorder %s11, 5
    %p157 = pnand %p155, %p156
    %p158 = pneg %p157
    // Predicated region
    $region9: #{generator_forward.9} parent=5 // pred_check
      _
    $region10: #{generator_forward.9} parent=5 // pred_check_branch
      %160 = sbr.rel (%p157) target = $region12
    $region11: #{generator_forward.9} parent=5 // pred_region
      %s161 = ssub.s32 %s11, 1
    $region12: #{generator_forward.9} parent=5 // pred_fallthru
      _
    %p162 = scmp.lt.s32.totalorder %s11, 4
    // Predicated region
    $region13: #{generator_forward.9} parent=5 // pred_check
      %p163 = pneg %p162
    $region14: #{generator_forward.9} parent=5 // pred_check_branch
      %165 = sbr.rel (%p163) target = $region16
    $region15: #{generator_forward.9} parent=5 // pred_region
      // Predicated region
      $region17: #{generator_forward.9} parent=15 // pred_check
        %p166 = pneg %p43
      $region18: #{generator_forward.9} parent=15 // pred_check_branch
        %168 = sbr.rel (%p166) target = $region20
      $region19: #{generator_forward.9} parent=15 // pred_region
        %p169 = scmp.lt.s32.totalorder %s18, 3
        %s170 = scalar_select %p169, %s18, 3
        %s171 = smul.addr %s170, 2
        %s172 = smul.addr %s171, 4
        %s173 = scalar_lea.vmem %s0, %s172
      $region20: #{generator_forward.9} parent=15 // pred_fallthru
        _
      // Predicated region
      $region21: #{generator_forward.9} parent=15 // pred_check
        %p174 = pneg %p71
      $region22: #{generator_forward.9} parent=15 // pred_check_branch
        %176 = sbr.rel (%p174) target = $region24
      $region23: #{generator_forward.9} parent=15 // pred_region
        %p177 = scmp.lt.s32.totalorder %s18, 3
        %s178 = scalar_select %p177, %s18, 3
        %p179 = scmp.lt.s32.totalorder %s19, 0
        %s180 = scalar_select %p179, %s19, 0
        %s181 = smul.addr %s178, 16
        %s182 = sadd.s32 %s180, %s181
        %s183 = smul.addr %s182, 4
        %s184 = scalar_lea.vmem %s1, %s183
      $region24: #{generator_forward.9} parent=15 // pred_fallthru
        _
    $region16: #{generator_forward.9} parent=5 // pred_fallthru
      _
    %p185 = scmp.le.s32.totalorder 1, %s11
    %p186 = scmp.lt.s32.totalorder %s11, 5
    %p187 = pnand %p185, %p186
    %p188 = pneg %p187
    // Predicated region
    $region25: #{generator_forward.9} parent=5 // pred_check
      _
    $region26: #{generator_forward.9} parent=5 // pred_check_branch
      %190 = sbr.rel (%p187) target = $region28
    $region27: #{generator_forward.9} parent=5 // pred_region
      %s191 = ssub.s32 %s11, 1
      %p192 = scmp.lt.s32.totalorder %s20, 3
      %s193 = scalar_select %p192, %s20, 3
      %s194 = smul.addr %s193, 2
      %s195 = smul.addr %s194, 4
      %s196 = scalar_lea.vmem %s0, %s195
      %p197 = pneg %p49
      %p198 = pneg %p46
      %p199 = scmp.lt.s32.totalorder %s20, 3
      %s200 = scalar_select %p199, %s20, 3
      %p201 = scmp.lt.s32.totalorder %s21, 0
      %s202 = scalar_select %p201, %s21, 0
      %s203 = smul.addr %s200, 16
      %s204 = sadd.s32 %s202, %s203
      %s205 = smul.addr %s204, 4
      %s206 = scalar_lea.vmem %s1, %s205
      %p207 = pneg %p77
      %p208 = pneg %p74
      %p209 = pneg %p105
      %p210 = pneg %p102
      %p211 = scmp.lt.s32.totalorder %s20, 3
      %s212 = scalar_select %p211, %s20, 3
      %p213 = scmp.lt.s32.totalorder %s21, 0
      %s214 = scalar_select %p213, %s21, 0
      %s215 = smul.addr %s212, 2
      %s216 = sadd.s32 %s214, %s215
      %s217 = smul.addr %s216, 8
      %s218 = scalar_lea.vmem %s2, %s217
      %p219 = pneg %p126
      %p220 = pneg %p123
      %p221 = pneg %p147
      %p222 = pneg %p144
      %p223 = scmp.lt.s32.totalorder %s20, 3
      %s224 = scalar_select %p223, %s20, 3
      %s225 = smul.addr %s224, 2
      %s226 = smul.addr %s225, 4
      %s227 = scalar_lea.vmem %s0, %s226
      %p228 = scmp.lt.s32.totalorder %s20, 3
      %s229 = scalar_select %p228, %s20, 3
      %p230 = scmp.lt.s32.totalorder %s21, 0
      %s231 = scalar_select %p230, %s21, 0
      %s232 = smul.addr %s229, 16
      %s233 = sadd.s32 %s231, %s232
      %s234 = smul.addr %s233, 4
      %s235 = scalar_lea.vmem %s1, %s234
      %p236 = scmp.lt.s32.totalorder %s20, 3
      %s237 = scalar_select %p236, %s20, 3
      %p238 = scmp.lt.s32.totalorder %s21, 0
      %s239 = scalar_select %p238, %s21, 0
      %s240 = smul.addr %s237, 2
      %s241 = sadd.s32 %s239, %s240
      %s242 = smul.addr %s241, 8
      %s243 = scalar_lea.vmem %s2, %s242
      %p245 = scmp.eq.s32.totalorder %s20, 0
      %p246 = scmp.eq.s32.totalorder %s21, 0
      %p247 = pnand %p245, %p246
      %p248 = pneg %p247
      // Predicated region
      $region29: #{generator_forward.9} parent=27 // pred_check
        _
      $region30: #{generator_forward.9} parent=27 // pred_check_branch
        %250 = sbr.rel (%p247) target = $region32
      $region31: #{generator_forward.9} parent=27 // pred_region
        %vm251 = vcmask 7168
        %252 = vst.msk [vmem:[%s3] sm:$0xff] %vm251, 0.0
        %253 = vst.msk [vmem:[%s3 + $0x8] sm:$0xff] %vm251, 0.0
        %254 = vst.msk [vmem:[%s4] sm:$0xff] %vm251, 0.0
        %255 = vst.msk [vmem:[%s4 + $0x8] sm:$0xff] %vm251, 0.0
      $region32: #{generator_forward.9} parent=27 // pred_fallthru
        _
      %v256 = vld [vmem:[%s227] sm:$0xf]
      %v257 = vld [vmem:[%s227 + $0x4] sm:$0xf]
      %v258 = vld [vmem:[%s235] sm:$0xf]
      %v259 = vld [vmem:[%s235 + $0x4] sm:$0xf]
      %v260 = vld [vmem:[%s235 + $0x8] sm:$0xf]
      %v261 = vld [vmem:[%s235 + $0xc] sm:$0xf]
      %v262 = vld [vmem:[%s235 + $0x10] sm:$0xf]
      %v263 = vld [vmem:[%s235 + $0x14] sm:$0xf]
      %v264 = vld [vmem:[%s235 + $0x18] sm:$0xf]
      %v265 = vld [vmem:[%s235 + $0x1c] sm:$0xf]
      %v266 = vld [vmem:[%s235 + $0x20] sm:$0xf]
      %v267 = vld [vmem:[%s235 + $0x24] sm:$0xf]
      %v268 = vld [vmem:[%s235 + $0x28] sm:$0xf]
      %v269 = vld [vmem:[%s235 + $0x2c] sm:$0xf]
      %v270 = vld [vmem:[%s235 + $0x30] sm:$0xf]
      %v271 = vld [vmem:[%s235 + $0x34] sm:$0xf]
      %v272 = vld [vmem:[%s235 + $0x38] sm:$0xf]
      %v273 = vld [vmem:[%s235 + $0x3c] sm:$0xf]
      %v276 = vunpack.c.l.b16 %v256
      %v277 = vunpack.c.l.b16 %v257
      %v278 = vpack.c.b16 %v277, %v276
      %v296 = vunpack.c.l.b16 %v258
      %v297 = vunpack.c.l.b16 %v259
      %v298 = vunpack.c.l.b16 %v260
      %v299 = vunpack.c.l.b16 %v261
      %v300 = vunpack.c.l.b16 %v262
      %v301 = vunpack.c.l.b16 %v263
      %v302 = vunpack.c.l.b16 %v264
      %v303 = vunpack.c.l.b16 %v265
      %v304 = vunpack.c.l.b16 %v266
      %v305 = vunpack.c.l.b16 %v267
      %v306 = vunpack.c.l.b16 %v268
      %v307 = vunpack.c.l.b16 %v269
      %v308 = vunpack.c.l.b16 %v270
      %v309 = vunpack.c.l.b16 %v271
      %v310 = vunpack.c.l.b16 %v272
      %v311 = vunpack.c.l.b16 %v273
      %v312 = vpack.c.b16 %v297, %v296
      %v313 = vpack.c.b16 %v299, %v298
      %v314 = vpack.c.b16 %v301, %v300
      %v315 = vpack.c.b16 %v303, %v302
      %v316 = vpack.c.b16 %v305, %v304
      %v317 = vpack.c.b16 %v307, %v306
      %v318 = vpack.c.b16 %v309, %v308
      %v319 = vpack.c.b16 %v311, %v310
      %328 = vmatprep.subr.bf16.mxu0 0
      %329 = vmatpush1.bf16.msra.mxu0 %v319
      %330 = vmatprep.subr.bf16.mxu0 0
      %331 = vmatpush1.bf16.msra.mxu0 %v318
      %332 = vmatprep.subr.bf16.mxu0 0
      %333 = vmatpush1.bf16.msra.mxu0 %v317
      %334 = vmatprep.subr.bf16.mxu0 0
      %335 = vmatpush1.bf16.msra.mxu0 %v316
      %336 = vmatprep.subr.bf16.mxu0 0
      %337 = vmatpush1.bf16.msra.mxu0 %v315
      %338 = vmatprep.subr.bf16.mxu0 0
      %339 = vmatpush1.bf16.msra.mxu0 %v314
      %340 = vmatprep.subr.bf16.mxu0 0
      %341 = vmatpush1.bf16.msra.mxu0 %v313
      %342 = vmatprep.subr.bf16.mxu0 0
      %343 = vmatpush1.bf16.msra.mxu0 %v312
      %344 = vmatprep.subr.bf16.mxu0 0
      %345 = vmatpush2.bf16.msra.mxu0 0
      %346 = vmatprep.subr.bf16.mxu0 0
      %347 = vmatpush2.bf16.msra.mxu0 0
      %348 = vmatprep.subr.bf16.mxu0 0
      %349 = vmatpush2.bf16.msra.mxu0 0
      %350 = vmatprep.subr.bf16.mxu0 0
      %351 = vmatpush2.bf16.msra.mxu0 0
      %352 = vmatprep.subr.bf16.mxu0 0
      %353 = vmatpush2.bf16.msra.mxu0 0
      %354 = vmatprep.subr.bf16.mxu0 0
      %355 = vmatpush2.bf16.msra.mxu0 0
      %356 = vmatprep.subr.bf16.mxu0 0
      %357 = vmatpush2.bf16.msra.mxu0 0
      %358 = vmatprep.subr.bf16.mxu0 0
      %359 = vmatpush2.bf16.msra.mxu0 0
      %360 = vmatprep.mubr.bf16.mxu0 0
      %361 = vmatmul.mubr.bf16.gmra.mxu0 %v278
      %v362 = vpop.f32.mrf.mxu0
      %v363 = vadd.f32 0.0, %v362
      %v364 = vpop.f32.mrf.mxu0
      %v365 = vpop.f32.mrf.mxu0
      %v366 = vadd.f32 0.0, %v365
      %v367 = vpop.f32.mrf.mxu0
      %368 = vdwg.mxu0
      %vm369 = vcmask 261120
      %370 = vst.msk [vmem:[%s243] sm:$0xff] %vm369, %v363
      %371 = vst.msk [vmem:[%s243 + $0x8] sm:$0xff] %vm369, %v366
      %v372 = vld [vmem:[%s3] sm:$0xff]
      %v373 = vld [vmem:[%s3 + $0x8] sm:$0xff]
      %v374 = vsel %vm369, %v363, 0.0
      %375 = vadd.xlane.f32.xlu0 %v374
      %v376 = vpop.xlane.xlu0 %375
      %v377 = vsel %vm369, %v366, 0.0
      %378 = vadd.xlane.f32.xlu0 %v377
      %v379 = vpop.xlane.xlu0 %378
      %v380 = vadd.f32 %v372, %v376
      %v381 = vadd.f32 %v373, %v379
      %vm382 = vcmask 7168
      %383 = vst.msk [vmem:[%s3] sm:$0xff] %vm382, %v380
      %384 = vst.msk [vmem:[%s3 + $0x8] sm:$0xff] %vm382, %v381
      %v385 = vld [vmem:[%s4] sm:$0xff]
      %v386 = vld [vmem:[%s4 + $0x8] sm:$0xff]
      %v387 = vmul.f32 %v363, %v363
      %v388 = vmul.f32 %v366, %v366
      %v389 = vsel %vm369, %v387, 0.0
      %390 = vadd.xlane.f32.xlu0 %v389
      %v391 = vpop.xlane.xlu0 %390
      %v392 = vsel %vm369, %v388, 0.0
      %393 = vadd.xlane.f32.xlu0 %v392
      %v394 = vpop.xlane.xlu0 %393
      %v395 = vadd.f32 %v385, %v391
      %v396 = vadd.f32 %v386, %v394
      %397 = vst.msk [vmem:[%s4] sm:$0xff] %vm382, %v395
      %398 = vst.msk [vmem:[%s4 + $0x8] sm:$0xff] %vm382, %v396
      %p399 = scmp.lt.s32.totalorder %s20, 3
      %s400 = scalar_select %p399, %s20, 3
      %p401 = scmp.lt.s32.totalorder %s21, 0
      %s402 = scalar_select %p401, %s21, 0
      %s403 = smul.addr %s400, 2
      %s404 = sadd.s32 %s402, %s403
      %s405 = smul.addr %s404, 8
      %s406 = scalar_lea.vmem %s2, %s405
      // Predicated region
      $region33: #{generator_forward.9} parent=27 // pred_check
        %p407 = pneg %p102
      $region34: #{generator_forward.9} parent=27 // pred_check_branch
        %409 = sbr.rel (%p407) target = $region36
      $region35: #{generator_forward.9} parent=27 // pred_region
        _
      $region36: #{generator_forward.9} parent=27 // pred_fallthru
        _
      // Predicated region
      $region37: #{generator_forward.9} parent=27 // pred_check
        %p410 = pneg %p123
      $region38: #{generator_forward.9} parent=27 // pred_check_branch
        %412 = sbr.rel (%p410) target = $region40
      $region39: #{generator_forward.9} parent=27 // pred_region
        _
      $region40: #{generator_forward.9} parent=27 // pred_fallthru
        _
      // Predicated region
      $region41: #{generator_forward.9} parent=27 // pred_check
        %p413 = pneg %p144
      $region42: #{generator_forward.9} parent=27 // pred_check_branch
        %415 = sbr.rel (%p413) target = $region44
      $region43: #{generator_forward.9} parent=27 // pred_region
        _
      $region44: #{generator_forward.9} parent=27 // pred_fallthru
        _
      // Predicated region
      $region45: #{generator_forward.9} parent=27 // pred_check
        %p416 = pneg %p123
      $region46: #{generator_forward.9} parent=27 // pred_check_branch
        %418 = sbr.rel (%p416) target = $region48
      $region47: #{generator_forward.9} parent=27 // pred_region
        _
      $region48: #{generator_forward.9} parent=27 // pred_fallthru
        _
      // Predicated region
      $region49: #{generator_forward.9} parent=27 // pred_check
        %p419 = pneg %p144
      $region50: #{generator_forward.9} parent=27 // pred_check_branch
        %421 = sbr.rel (%p419) target = $region52
      $region51: #{generator_forward.9} parent=27 // pred_region
        _
      $region52: #{generator_forward.9} parent=27 // pred_fallthru
        _
    $region28: #{generator_forward.9} parent=5 // pred_fallthru
      _
    %p422 = scmp.le.s32.totalorder 2, %s11
    // Predicated region
    $region53: #{generator_forward.9} parent=5 // pred_check
      %p423 = pneg %p422
    $region54: #{generator_forward.9} parent=5 // pred_check_branch
      %425 = sbr.rel (%p423) target = $region56
    $region55: #{generator_forward.9} parent=5 // pred_region
      %s426 = ssub.s32 %s11, 2
      // Predicated region
      $region57: #{generator_forward.9} parent=55 // pred_check
        %p427 = pneg %p108
      $region58: #{generator_forward.9} parent=55 // pred_check_branch
        %429 = sbr.rel (%p427) target = $region60
      $region59: #{generator_forward.9} parent=55 // pred_region
        %p430 = scmp.lt.s32.totalorder %s22, 3
        %s431 = scalar_select %p430, %s22, 3
        %p432 = scmp.lt.s32.totalorder %s23, 0
        %s433 = scalar_select %p432, %s23, 0
        %s434 = smul.addr %s431, 2
        %s435 = sadd.s32 %s433, %s434
        %s436 = smul.addr %s435, 8
        %s437 = scalar_lea.vmem %s2, %s436
      $region60: #{generator_forward.9} parent=55 // pred_fallthru
        _
    $region56: #{generator_forward.9} parent=5 // pred_fallthru
      _
  $region6: #{generator_forward.9} parent=0 // loop_footer
    %s15 = sadd.s32 1, %s11
  $region7: #{generator_forward.9} parent=0 // loop_footer_branch
    %10 = sbr.rel target = $region3
  $region8: #{generator_forward.9} parent=0 // loop_exit
    _

// kernel: generator_forward.11
$region0: #{generator_forward.11}
  #allocation0 [shape = 'u32[]', space=smem, size = 0x4, offset = 0x4, fixed_abs, tag = 'smem constant byte address 0x4 - core index']
  #allocation1 [shape = 'u32[144,128]{1,0:T(1,128)}', space=vmem, size = 0x12000, scoped, tag = 'internal scratch']
  %s0 = inlined_call_operand.vmem [shape: bf16[4,8,64], index: 0, kind: input, shape index: {}]
  %s1 = inlined_call_operand.vmem [shape: bf16[4,64,128], index: 1, kind: input, shape index: {}]
  %s2 = inlined_call_operand.vmem [shape: f32[4,8,128], index: 2, kind: output, shape index: {0}]
  %s3 = inlined_call_operand.vmem [shape: f32[8,1], index: 3, kind: output, shape index: {1}]
  %s4 = inlined_call_operand.vmem [shape: f32[8,1], index: 4, kind: output, shape index: {2}]
  %5 = xla_tuple %s2, %s3, %s4
  %s6 = sld [smem:[#allocation0]]
  $region61: #{generator_forward.11} parent=0
    _
  %s8 = ssub.s32 1, %s6
  %s9 = scalar_select 0, %s8, %s6
  loop: start=0, step=1, limit=6
  $region2: #{generator_forward.11} parent=0 // loop_pre_header
    _
  $region3: #{generator_forward.11} parent=0 // loop_header
    %s11 = sphi 0, %s15
    %p12 = scmp.ge.s32.totalorder %s11, 6
    %s18 = sphi 0, %s30
    %s19 = sphi 0, %s26
    %s20 = sphi 0, %s18
    %s21 = sphi 0, %s19
    %s22 = sphi 0, %s20
    %s23 = sphi 0, %s21
    %s33 = sphi 0, %s35
    %s36 = sphi 0, %s33
    %s37 = sphi 0, %s36
    %s53 = sphi 0, %s37
    %s61 = sphi 0, %s63
    %s64 = sphi 0, %s61
    %s65 = sphi 0, %s64
    %s81 = sphi 0, %s65
    %s89 = sphi 0, %s91
    %s92 = sphi 0, %s89
    %s93 = sphi 0, %s92
    %s109 = sphi 0, %s93
    %s113 = sphi 0, %s113
    %s115 = sphi 0, %s113
    %s116 = sphi 0, %s115
    %s130 = sphi 0, %s116
    %s134 = sphi 0, %s134
    %s136 = sphi 0, %s134
    %s137 = sphi 0, %s136
    %s151 = sphi 0, %s137
  $region4: #{generator_forward.11} parent=0 // loop_header_branch
    %14 = sbr.rel (%p12) target = $region8
  $region5: #{generator_forward.11} parent=0 // loop_body
    %s16 = ssub.s32 %s11, 1
    %s17 = ssub.s32 %s11, 2
    %s24 = sadd.s32 1, %s19
    %p25 = scmp.ge.s32.totalorder %s24, 1
    %s26 = scalar_select %p25, 0, %s24
    %s27 = sadd.s32 1, %s18
    %s28 = scalar_select %p25, %s27, %s18
    %p29 = scmp.ge.s32.totalorder %s28, 4
    %s30 = scalar_select %p29, 0, %s28
    %s31 = ssub.s32 %s18, %s30
    %p32 = scmp.eq.s32.totalorder %s31, 0
    %s34 = sadd.s32 %s33, 1
    %s35 = scalar_select %p32, %s33, %s34
    %p38 = pneg %p32
    %p39 = scmp.eq.s32.totalorder %s11, 3
    %p40 = por %p38, %p39
    %p41 = scmp.ne.s32.totalorder %s33, %s36
    %p42 = scmp.eq.s32.totalorder %s11, 0
    %p43 = por %p41, %p42
    %p44 = scmp.ne.s32.totalorder %s33, %s36
    %p45 = scmp.eq.s32.totalorder %s16, 3
    %p46 = por %p44, %p45
    %p47 = scmp.ne.s32.totalorder %s36, %s37
    %p48 = scmp.eq.s32.totalorder %s16, 0
    %p49 = por %p47, %p48
    %p50 = scmp.ne.s32.totalorder %s36, %s37
    %p51 = scmp.eq.s32.totalorder %s17, 3
    %p52 = por %p50, %p51
    %p54 = scmp.ne.s32.totalorder %s37, %s53
    %p55 = scmp.eq.s32.totalorder %s17, 0
    %p56 = por %p54, %p55
    %s57 = ssub.s32 %s18, %s30
    %s58 = ssub.s32 %s19, %s26
    %s59 = sor.u32 %s57, %s58
    %p60 = scmp.eq.s32.totalorder %s59, 0
    %s62 = sadd.s32 %s61, 1
    %s63 = scalar_select %p60, %s61, %s62
    %p66 = pneg %p60
    %p67 = scmp.eq.s32.totalorder %s11, 3
    %p68 = por %p66, %p67
    %p69 = scmp.ne.s32.totalorder %s61, %s64
    %p70 = scmp.eq.s32.totalorder %s11, 0
    %p71 = por %p69, %p70
    %p72 = scmp.ne.s32.totalorder %s61, %s64
    %p73 = scmp.eq.s32.totalorder %s16, 3
    %p74 = por %p72, %p73
    %p75 = scmp.ne.s32.totalorder %s64, %s65
    %p76 = scmp.eq.s32.totalorder %s16, 0
    %p77 = por %p75, %p76
    %p78 = scmp.ne.s32.totalorder %s64, %s65
    %p79 = scmp.eq.s32.totalorder %s17, 3
    %p80 = por %p78, %p79
    %p82 = scmp.ne.s32.totalorder %s65, %s81
    %p83 = scmp.eq.s32.totalorder %s17, 0
    %p84 = por %p82, %p83
    %s85 = ssub.s32 %s18, %s30
    %s86 = ssub.s32 %s19, %s26
    %s87 = sor.u32 %s85, %s86
    %p88 = scmp.eq.s32.totalorder %s87, 0
    %s90 = sadd.s32 %s89, 1
    %s91 = scalar_select %p88, %s89, %s90
    %p94 = pneg %p88
    %p95 = scmp.eq.s32.totalorder %s11, 3
    %p96 = por %p94, %p95
    %p97 = scmp.ne.s32.totalorder %s89, %s92
    %p98 = scmp.eq.s32.totalorder %s11, 0
    %p99 = por %p97, %p98
    %p100 = scmp.ne.s32.totalorder %s89, %s92
    %p101 = scmp.eq.s32.totalorder %s16, 3
    %p102 = por %p100, %p101
    %p103 = scmp.ne.s32.totalorder %s92, %s93
    %p104 = scmp.eq.s32.totalorder %s16, 0
    %p105 = por %p103, %p104
    %p106 = scmp.ne.s32.totalorder %s92, %s93
    %p107 = scmp.eq.s32.totalorder %s17, 3
    %p108 = por %p106, %p107
    %p110 = scmp.ne.s32.totalorder %s93, %s109
    %p111 = scmp.eq.s32.totalorder %s17, 0
    %p112 = por %p110, %p111
    %s114 = sadd.s32 %s113, 1
    %p117 = scmp.eq.s32.totalorder %s11, 3
    %p118 = scmp.ne.s32.totalorder %s113, %s115
    %p119 = scmp.eq.s32.totalorder %s11, 0
    %p120 = por %p118, %p119
    %p121 = scmp.ne.s32.totalorder %s113, %s115
    %p122 = scmp.eq.s32.totalorder %s16, 3
    %p123 = por %p121, %p122
    %p124 = scmp.ne.s32.totalorder %s115, %s116
    %p125 = scmp.eq.s32.totalorder %s16, 0
    %p126 = por %p124, %p125
    %p127 = scmp.ne.s32.totalorder %s115, %s116
    %p128 = scmp.eq.s32.totalorder %s17, 3
    %p129 = por %p127, %p128
    %p131 = scmp.ne.s32.totalorder %s116, %s130
    %p132 = scmp.eq.s32.totalorder %s17, 0
    %p133 = por %p131, %p132
    %s135 = sadd.s32 %s134, 1
    %p138 = scmp.eq.s32.totalorder %s11, 3
    %p139 = scmp.ne.s32.totalorder %s134, %s136
    %p140 = scmp.eq.s32.totalorder %s11, 0
    %p141 = por %p139, %p140
    %p142 = scmp.ne.s32.totalorder %s134, %s136
    %p143 = scmp.eq.s32.totalorder %s16, 3
    %p144 = por %p142, %p143
    %p145 = scmp.ne.s32.totalorder %s136, %s137
    %p146 = scmp.eq.s32.totalorder %s16, 0
    %p147 = por %p145, %p146
    %p148 = scmp.ne.s32.totalorder %s136, %s137
    %p149 = scmp.eq.s32.totalorder %s17, 3
    %p150 = por %p148, %p149
    %p152 = scmp.ne.s32.totalorder %s137, %s151
    %p153 = scmp.eq.s32.totalorder %s17, 0
    %p154 = por %p152, %p153
    %p155 = scmp.le.s32.totalorder 1, %s11
    %p156 = scmp.lt.s32.totalorder %s11, 5
    %p157 = pnand %p155, %p156
    %p158 = pneg %p157
    // Predicated region
    $region9: #{generator_forward.11} parent=5 // pred_check
      _
    $region10: #{generator_forward.11} parent=5 // pred_check_branch
      %160 = sbr.rel (%p157) target = $region12
    $region11: #{generator_forward.11} parent=5 // pred_region
      %s161 = ssub.s32 %s11, 1
    $region12: #{generator_forward.11} parent=5 // pred_fallthru
      _
    %p162 = scmp.lt.s32.totalorder %s11, 4
    // Predicated region
    $region13: #{generator_forward.11} parent=5 // pred_check
      %p163 = pneg %p162
    $region14: #{generator_forward.11} parent=5 // pred_check_branch
      %165 = sbr.rel (%p163) target = $region16
    $region15: #{generator_forward.11} parent=5 // pred_region
      // Predicated region
      $region17: #{generator_forward.11} parent=15 // pred_check
        %p166 = pneg %p43
      $region18: #{generator_forward.11} parent=15 // pred_check_branch
        %168 = sbr.rel (%p166) target = $region20
      $region19: #{generator_forward.11} parent=15 // pred_region
        %p169 = scmp.lt.s32.totalorder %s18, 3
        %s170 = scalar_select %p169, %s18, 3
        %s171 = smul.addr %s170, 4
        %s172 = scalar_lea.vmem %s0, %s171
      $region20: #{generator_forward.11} parent=15 // pred_fallthru
        _
      // Predicated region
      $region21: #{generator_forward.11} parent=15 // pred_check
        %p173 = pneg %p71
      $region22: #{generator_forward.11} parent=15 // pred_check_branch
        %175 = sbr.rel (%p173) target = $region24
      $region23: #{generator_forward.11} parent=15 // pred_region
        %p176 = scmp.lt.s32.totalorder %s18, 3
        %s177 = scalar_select %p176, %s18, 3
        %p178 = scmp.lt.s32.totalorder %s19, 0
        %s179 = scalar_select %p178, %s19, 0
        %s180 = smul.addr %s177, 8
        %s181 = sadd.s32 %s179, %s180
        %s182 = smul.addr %s181, 4
        %s183 = scalar_lea.vmem %s1, %s182
      $region24: #{generator_forward.11} parent=15 // pred_fallthru
        _
    $region16: #{generator_forward.11} parent=5 // pred_fallthru
      _
    %p184 = scmp.le.s32.totalorder 1, %s11
    %p185 = scmp.lt.s32.totalorder %s11, 5
    %p186 = pnand %p184, %p185
    %p187 = pneg %p186
    // Predicated region
    $region25: #{generator_forward.11} parent=5 // pred_check
      _
    $region26: #{generator_forward.11} parent=5 // pred_check_branch
      %189 = sbr.rel (%p186) target = $region28
    $region27: #{generator_forward.11} parent=5 // pred_region
      %s190 = ssub.s32 %s11, 1
      %p191 = scmp.lt.s32.totalorder %s20, 3
      %s192 = scalar_select %p191, %s20, 3
      %s193 = smul.addr %s192, 4
      %s194 = scalar_lea.vmem %s0, %s193
      %p195 = pneg %p49
      %p196 = pneg %p46
      %p197 = scmp.lt.s32.totalorder %s20, 3
      %s198 = scalar_select %p197, %s20, 3
      %p199 = scmp.lt.s32.totalorder %s21, 0
      %s200 = scalar_select %p199, %s21, 0
      %s201 = smul.addr %s198, 8
      %s202 = sadd.s32 %s200, %s201
      %s203 = smul.addr %s202, 4
      %s204 = scalar_lea.vmem %s1, %s203
      %p205 = pneg %p77
      %p206 = pneg %p74
      %p207 = pneg %p105
      %p208 = pneg %p102
      %p209 = scmp.lt.s32.totalorder %s20, 3
      %s210 = scalar_select %p209, %s20, 3
      %p211 = scmp.lt.s32.totalorder %s21, 0
      %s212 = scalar_select %p211, %s21, 0
      %s213 = sadd.s32 %s212, %s210
      %s214 = smul.addr %s213, 8
      %s215 = scalar_lea.vmem %s2, %s214
      %p216 = pneg %p126
      %p217 = pneg %p123
      %p218 = pneg %p147
      %p219 = pneg %p144
      %p220 = scmp.lt.s32.totalorder %s20, 3
      %s221 = scalar_select %p220, %s20, 3
      %s222 = smul.addr %s221, 4
      %s223 = scalar_lea.vmem %s0, %s222
      %p224 = scmp.lt.s32.totalorder %s20, 3
      %s225 = scalar_select %p224, %s20, 3
      %p226 = scmp.lt.s32.totalorder %s21, 0
      %s227 = scalar_select %p226, %s21, 0
      %s228 = smul.addr %s225, 8
      %s229 = sadd.s32 %s227, %s228
      %s230 = smul.addr %s229, 4
      %s231 = scalar_lea.vmem %s1, %s230
      %p232 = scmp.lt.s32.totalorder %s20, 3
      %s233 = scalar_select %p232, %s20, 3
      %p234 = scmp.lt.s32.totalorder %s21, 0
      %s235 = scalar_select %p234, %s21, 0
      %s236 = sadd.s32 %s235, %s233
      %s237 = smul.addr %s236, 8
      %s238 = scalar_lea.vmem %s2, %s237
      %p240 = scmp.eq.s32.totalorder %s20, 0
      %p241 = scmp.eq.s32.totalorder %s21, 0
      %p242 = pnand %p240, %p241
      %p243 = pneg %p242
      // Predicated region
      $region29: #{generator_forward.11} parent=27 // pred_check
        _
      $region30: #{generator_forward.11} parent=27 // pred_check_branch
        %245 = sbr.rel (%p242) target = $region32
      $region31: #{generator_forward.11} parent=27 // pred_region
        %vm246 = vcmask 7168
        %247 = vst.msk [vmem:[%s3] sm:$0xff] %vm246, 0.0
        %248 = vst.msk [vmem:[%s4] sm:$0xff] %vm246, 0.0
      $region32: #{generator_forward.11} parent=27 // pred_fallthru
        _
      %v249 = vld [vmem:[%s223] sm:$0xf]
      %v250 = vld [vmem:[%s231] sm:$0xf]
      %v251 = vld [vmem:[%s231 + $0x4] sm:$0xf]
      %v252 = vld [vmem:[%s231 + $0x8] sm:$0xf]
      %v253 = vld [vmem:[%s231 + $0xc] sm:$0xf]
      %v254 = vld [vmem:[%s231 + $0x10] sm:$0xf]
      %v255 = vld [vmem:[%s231 + $0x14] sm:$0xf]
      %v256 = vld [vmem:[%s231 + $0x18] sm:$0xf]
      %v257 = vld [vmem:[%s231 + $0x1c] sm:$0xf]
      %v266 = vunpack.c.l.b16 %v250
      %v267 = vunpack.c.l.b16 %v251
      %v268 = vunpack.c.l.b16 %v252
      %v269 = vunpack.c.l.b16 %v253
      %v270 = vunpack.c.l.b16 %v254
      %v271 = vunpack.c.l.b16 %v255
      %v272 = vunpack.c.l.b16 %v256
      %v273 = vunpack.c.l.b16 %v257
      %v274 = vpack.c.b16 %v267, %v266
      %v275 = vpack.c.b16 %v269, %v268
      %v276 = vpack.c.b16 %v271, %v270
      %v277 = vpack.c.b16 %v273, %v272
      %vm282 = vcmask 523264
      %v284 = vsel %vm282, %v249, 0
      %286 = vmatprep.subr.bf16.mxu0 0
      %287 = vmatpush1.bf16.msra.mxu0 0
      %288 = vmatprep.subr.bf16.mxu0 0
      %289 = vmatpush1.bf16.msra.mxu0 0
      %290 = vmatprep.subr.bf16.mxu0 0
      %291 = vmatpush1.bf16.msra.mxu0 0
      %292 = vmatprep.subr.bf16.mxu0 0
      %293 = vmatpush1.bf16.msra.mxu0 0
      %294 = vmatprep.subr.bf16.mxu0 0
      %295 = vmatpush1.bf16.msra.mxu0 %v277
      %296 = vmatprep.subr.bf16.mxu0 0
      %297 = vmatpush1.bf16.msra.mxu0 %v276
      %298 = vmatprep.subr.bf16.mxu0 0
      %299 = vmatpush1.bf16.msra.mxu0 %v275
      %300 = vmatprep.subr.bf16.mxu0 0
      %301 = vmatpush1.bf16.msra.mxu0 %v274
      %302 = vmatprep.subr.bf16.mxu0 0
      %303 = vmatpush2.bf16.msra.mxu0 0
      %304 = vmatprep.subr.bf16.mxu0 0
      %305 = vmatpush2.bf16.msra.mxu0 0
      %306 = vmatprep.subr.bf16.mxu0 0
      %307 = vmatpush2.bf16.msra.mxu0 0
      %308 = vmatprep.subr.bf16.mxu0 0
      %309 = vmatpush2.bf16.msra.mxu0 0
      %310 = vmatprep.subr.bf16.mxu0 0
      %311 = vmatpush2.bf16.msra.mxu0 0
      %312 = vmatprep.subr.bf16.mxu0 0
      %313 = vmatpush2.bf16.msra.mxu0 0
      %314 = vmatprep.subr.bf16.mxu0 0
      %315 = vmatpush2.bf16.msra.mxu0 0
      %316 = vmatprep.subr.bf16.mxu0 0
      %317 = vmatpush2.bf16.msra.mxu0 0
      %318 = vmatprep.mubr.bf16.mxu0 0
      %319 = vmatmul.mubr.bf16.gmra.mxu0 %v284
      %v320 = vpop.f32.mrf.mxu0
      %v321 = vadd.f32 0.0, %v320
      %v322 = vpop.f32.mrf.mxu0
      %v323 = vpop.f32.mrf.mxu0
      %v324 = vpop.f32.mrf.mxu0
      %325 = vdwg.mxu0
      %326 = vst [vmem:[%s238] sm:$0xff] %v321
      %v327 = vld [vmem:[%s3] sm:$0xff]
      %328 = vadd.xlane.f32.xlu0 %v321
      %v329 = vpop.xlane.xlu0 %328
      %v330 = vadd.f32 %v327, %v329
      %vm331 = vcmask 7168
      %332 = vst.msk [vmem:[%s3] sm:$0xff] %vm331, %v330
      %v333 = vld [vmem:[%s4] sm:$0xff]
      %v334 = vmul.f32 %v321, %v321
      %335 = vadd.xlane.f32.xlu0 %v334
      %v336 = vpop.xlane.xlu0 %335
      %v337 = vadd.f32 %v333, %v336
      %338 = vst.msk [vmem:[%s4] sm:$0xff] %vm331, %v337
      %p339 = scmp.lt.s32.totalorder %s20, 3
      %s340 = scalar_select %p339, %s20, 3
      %p341 = scmp.lt.s32.totalorder %s21, 0
      %s342 = scalar_select %p341, %s21, 0
      %s343 = sadd.s32 %s342, %s340
      %s344 = smul.addr %s343, 8
      %s345 = scalar_lea.vmem %s2, %s344
      // Predicated region
      $region33: #{generator_forward.11} parent=27 // pred_check
        %p346 = pneg %p102
      $region34: #{generator_forward.11} parent=27 // pred_check_branch
        %348 = sbr.rel (%p346) target = $region36
      $region35: #{generator_forward.11} parent=27 // pred_region
        _
      $region36: #{generator_forward.11} parent=27 // pred_fallthru
        _
      // Predicated region
      $region37: #{generator_forward.11} parent=27 // pred_check
        %p349 = pneg %p123
      $region38: #{generator_forward.11} parent=27 // pred_check_branch
        %351 = sbr.rel (%p349) target = $region40
      $region39: #{generator_forward.11} parent=27 // pred_region
        _
      $region40: #{generator_forward.11} parent=27 // pred_fallthru
        _
      // Predicated region
      $region41: #{generator_forward.11} parent=27 // pred_check
        %p352 = pneg %p144
      $region42: #{generator_forward.11} parent=27 // pred_check_branch
        %354 = sbr.rel (%p352) target = $region44
      $region43: #{generator_forward.11} parent=27 // pred_region
        _
      $region44: #{generator_forward.11} parent=27 // pred_fallthru
        _
      // Predicated region
      $region45: #{generator_forward.11} parent=27 // pred_check
        %p355 = pneg %p123
      $region46: #{generator_forward.11} parent=27 // pred_check_branch
        %357 = sbr.rel (%p355) target = $region48
      $region47: #{generator_forward.11} parent=27 // pred_region
        _
      $region48: #{generator_forward.11} parent=27 // pred_fallthru
        _
      // Predicated region
      $region49: #{generator_forward.11} parent=27 // pred_check
        %p358 = pneg %p144
      $region50: #{generator_forward.11} parent=27 // pred_check_branch
        %360 = sbr.rel (%p358) target = $region52
      $region51: #{generator_forward.11} parent=27 // pred_region
        _
      $region52: #{generator_forward.11} parent=27 // pred_fallthru
        _
    $region28: #{generator_forward.11} parent=5 // pred_fallthru
      _
    %p361 = scmp.le.s32.totalorder 2, %s11
    // Predicated region
    $region53: #{generator_forward.11} parent=5 // pred_check
      %p362 = pneg %p361
    $region54: #{generator_forward.11} parent=5 // pred_check_branch
      %364 = sbr.rel (%p362) target = $region56
    $region55: #{generator_forward.11} parent=5 // pred_region
      %s365 = ssub.s32 %s11, 2
      // Predicated region
      $region57: #{generator_forward.11} parent=55 // pred_check
        %p366 = pneg %p108
      $region58: #{generator_forward.11} parent=55 // pred_check_branch
        %368 = sbr.rel (%p366) target = $region60
      $region59: #{generator_forward.11} parent=55 // pred_region
        %p369 = scmp.lt.s32.totalorder %s22, 3
        %s370 = scalar_select %p369, %s22, 3
        %p371 = scmp.lt.s32.totalorder %s23, 0
        %s372 = scalar_select %p371, %s23, 0
        %s373 = sadd.s32 %s372, %s370
        %s374 = smul.addr %s373, 8
        %s375 = scalar_lea.vmem %s2, %s374
      $region60: #{generator_forward.11} parent=55 // pred_fallthru
        _
    $region56: #{generator_forward.11} parent=5 // pred_fallthru
      _
  $region6: #{generator_forward.11} parent=0 // loop_footer
    %s15 = sadd.s32 1, %s11
  $region7: #{generator_forward.11} parent=0 // loop_footer_branch
    %10 = sbr.rel target = $region3
  $region8: #{generator_forward.11} parent=0 // loop_exit
    _

// kernel: generator_forward.12
$region0: #{generator_forward.12}
  #allocation0 [shape = 'u32[]', space=smem, size = 0x4, offset = 0x4, fixed_abs, tag = 'smem constant byte address 0x4 - core index']
  #allocation1 [shape = 'u32[144,128]{1,0:T(1,128)}', space=vmem, size = 0x12000, scoped, tag = 'internal scratch']
  %s0 = inlined_call_operand.vmem [shape: f32[4,8,128], index: 0, kind: input, shape index: {}]
  %s1 = inlined_call_operand.vmem [shape: f32[8,1], index: 1, kind: input, shape index: {}]
  %s2 = inlined_call_operand.vmem [shape: f32[8,1], index: 2, kind: input, shape index: {}]
  %s3 = inlined_call_operand.vmem [shape: f32[8,1], index: 3, kind: input, shape index: {}]
  %s4 = inlined_call_operand.vmem [shape: f32[8,1], index: 4, kind: input, shape index: {}]
  %s5 = inlined_call_operand.vmem [shape: f32[4,8,128], index: 5, kind: output, shape index: {}]
  %s6 = sld [smem:[#allocation0]]
  $region53: #{generator_forward.12} parent=0
    _
  %s8 = ssub.s32 1, %s6
  %s9 = scalar_select 0, %s8, %s6
  loop: start=0, step=1, limit=6
  $region2: #{generator_forward.12} parent=0 // loop_pre_header
    _
  $region3: #{generator_forward.12} parent=0 // loop_header
    %s11 = sphi 0, %s15
    %p12 = scmp.ge.s32.totalorder %s11, 6
    %s18 = sphi 0, %s30
    %s19 = sphi 0, %s26
    %s20 = sphi 0, %s18
    %s21 = sphi 0, %s19
    %s22 = sphi 0, %s20
    %s23 = sphi 0, %s21
    %s35 = sphi 0, %s37
    %s38 = sphi 0, %s35
    %s39 = sphi 0, %s38
    %s55 = sphi 0, %s39
    %s59 = sphi 0, %s59
    %s61 = sphi 0, %s59
    %s62 = sphi 0, %s61
    %s76 = sphi 0, %s62
    %s80 = sphi 0, %s80
    %s82 = sphi 0, %s80
    %s83 = sphi 0, %s82
    %s97 = sphi 0, %s83
    %s101 = sphi 0, %s101
    %s103 = sphi 0, %s101
    %s104 = sphi 0, %s103
    %s118 = sphi 0, %s104
    %s122 = sphi 0, %s122
    %s124 = sphi 0, %s122
    %s125 = sphi 0, %s124
    %s139 = sphi 0, %s125
    %s147 = sphi 0, %s149
    %s150 = sphi 0, %s147
    %s151 = sphi 0, %s150
    %s167 = sphi 0, %s151
  $region4: #{generator_forward.12} parent=0 // loop_header_branch
    %14 = sbr.rel (%p12) target = $region8
  $region5: #{generator_forward.12} parent=0 // loop_body
    %s16 = ssub.s32 %s11, 1
    %s17 = ssub.s32 %s11, 2
    %s24 = sadd.s32 1, %s19
    %p25 = scmp.ge.s32.totalorder %s24, 1
    %s26 = scalar_select %p25, 0, %s24
    %s27 = sadd.s32 1, %s18
    %s28 = scalar_select %p25, %s27, %s18
    %p29 = scmp.ge.s32.totalorder %s28, 4
    %s30 = scalar_select %p29, 0, %s28
    %s31 = ssub.s32 %s18, %s30
    %s32 = ssub.s32 %s19, %s26
    %s33 = sor.u32 %s31, %s32
    %p34 = scmp.eq.s32.totalorder %s33, 0
    %s36 = sadd.s32 %s35, 1
    %s37 = scalar_select %p34, %s35, %s36
    %p40 = pneg %p34
    %p41 = scmp.eq.s32.totalorder %s11, 3
    %p42 = por %p40, %p41
    %p43 = scmp.ne.s32.totalorder %s35, %s38
    %p44 = scmp.eq.s32.totalorder %s11, 0
    %p45 = por %p43, %p44
    %p46 = scmp.ne.s32.totalorder %s35, %s38
    %p47 = scmp.eq.s32.totalorder %s16, 3
    %p48 = por %p46, %p47
    %p49 = scmp.ne.s32.totalorder %s38, %s39
    %p50 = scmp.eq.s32.totalorder %s16, 0
    %p51 = por %p49, %p50
    %p52 = scmp.ne.s32.totalorder %s38, %s39
    %p53 = scmp.eq.s32.totalorder %s17, 3
    %p54 = por %p52, %p53
    %p56 = scmp.ne.s32.totalorder %s39, %s55
    %p57 = scmp.eq.s32.totalorder %s17, 0
    %p58 = por %p56, %p57
    %s60 = sadd.s32 %s59, 1
    %p63 = scmp.eq.s32.totalorder %s11, 3
    %p64 = scmp.ne.s32.totalorder %s59, %s61
    %p65 = scmp.eq.s32.totalorder %s11, 0
    %p66 = por %p64, %p65
    %p67 = scmp.ne.s32.totalorder %s59, %s61
    %p68 = scmp.eq.s32.totalorder %s16, 3
    %p69 = por %p67, %p68
    %p70 = scmp.ne.s32.totalorder %s61, %s62
    %p71 = scmp.eq.s32.totalorder %s16, 0
    %p72 = por %p70, %p71
    %p73 = scmp.ne.s32.totalorder %s61, %s62
    %p74 = scmp.eq.s32.totalorder %s17, 3
    %p75 = por %p73, %p74
    %p77 = scmp.ne.s32.totalorder %s62, %s76
    %p78 = scmp.eq.s32.totalorder %s17, 0
    %p79 = por %p77, %p78
    %s81 = sadd.s32 %s80, 1
    %p84 = scmp.eq.s32.totalorder %s11, 3
    %p85 = scmp.ne.s32.totalorder %s80, %s82
    %p86 = scmp.eq.s32.totalorder %s11, 0
    %p87 = por %p85, %p86
    %p88 = scmp.ne.s32.totalorder %s80, %s82
    %p89 = scmp.eq.s32.totalorder %s16, 3
    %p90 = por %p88, %p89
    %p91 = scmp.ne.s32.totalorder %s82, %s83
    %p92 = scmp.eq.s32.totalorder %s16, 0
    %p93 = por %p91, %p92
    %p94 = scmp.ne.s32.totalorder %s82, %s83
    %p95 = scmp.eq.s32.totalorder %s17, 3
    %p96 = por %p94, %p95
    %p98 = scmp.ne.s32.totalorder %s83, %s97
    %p99 = scmp.eq.s32.totalorder %s17, 0
    %p100 = por %p98, %p99
    %s102 = sadd.s32 %s101, 1
    %p105 = scmp.eq.s32.totalorder %s11, 3
    %p106 = scmp.ne.s32.totalorder %s101, %s103
    %p107 = scmp.eq.s32.totalorder %s11, 0
    %p108 = por %p106, %p107
    %p109 = scmp.ne.s32.totalorder %s101, %s103
    %p110 = scmp.eq.s32.totalorder %s16, 3
    %p111 = por %p109, %p110
    %p112 = scmp.ne.s32.totalorder %s103, %s104
    %p113 = scmp.eq.s32.totalorder %s16, 0
    %p114 = por %p112, %p113
    %p115 = scmp.ne.s32.totalorder %s103, %s104
    %p116 = scmp.eq.s32.totalorder %s17, 3
    %p117 = por %p115, %p116
    %p119 = scmp.ne.s32.totalorder %s104, %s118
    %p120 = scmp.eq.s32.totalorder %s17, 0
    %p121 = por %p119, %p120
    %s123 = sadd.s32 %s122, 1
    %p126 = scmp.eq.s32.totalorder %s11, 3
    %p127 = scmp.ne.s32.totalorder %s122, %s124
    %p128 = scmp.eq.s32.totalorder %s11, 0
    %p129 = por %p127, %p128
    %p130 = scmp.ne.s32.totalorder %s122, %s124
    %p131 = scmp.eq.s32.totalorder %s16, 3
    %p132 = por %p130, %p131
    %p133 = scmp.ne.s32.totalorder %s124, %s125
    %p134 = scmp.eq.s32.totalorder %s16, 0
    %p135 = por %p133, %p134
    %p136 = scmp.ne.s32.totalorder %s124, %s125
    %p137 = scmp.eq.s32.totalorder %s17, 3
    %p138 = por %p136, %p137
    %p140 = scmp.ne.s32.totalorder %s125, %s139
    %p141 = scmp.eq.s32.totalorder %s17, 0
    %p142 = por %p140, %p141
    %s143 = ssub.s32 %s18, %s30
    %s144 = ssub.s32 %s19, %s26
    %s145 = sor.u32 %s143, %s144
    %p146 = scmp.eq.s32.totalorder %s145, 0
    %s148 = sadd.s32 %s147, 1
    %s149 = scalar_select %p146, %s147, %s148
    %p152 = pneg %p146
    %p153 = scmp.eq.s32.totalorder %s11, 3
    %p154 = por %p152, %p153
    %p155 = scmp.ne.s32.totalorder %s147, %s150
    %p156 = scmp.eq.s32.totalorder %s11, 0
    %p157 = por %p155, %p156
    %p158 = scmp.ne.s32.totalorder %s147, %s150
    %p159 = scmp.eq.s32.totalorder %s16, 3
    %p160 = por %p158, %p159
    %p161 = scmp.ne.s32.totalorder %s150, %s151
    %p162 = scmp.eq.s32.totalorder %s16, 0
    %p163 = por %p161, %p162
    %p164 = scmp.ne.s32.totalorder %s150, %s151
    %p165 = scmp.eq.s32.totalorder %s17, 3
    %p166 = por %p164, %p165
    %p168 = scmp.ne.s32.totalorder %s151, %s167
    %p169 = scmp.eq.s32.totalorder %s17, 0
    %p170 = por %p168, %p169
    %p171 = scmp.le.s32.totalorder 1, %s11
    %p172 = scmp.lt.s32.totalorder %s11, 5
    %p173 = pnand %p171, %p172
    %p174 = pneg %p173
    // Predicated region
    $region9: #{generator_forward.12} parent=5 // pred_check
      _
    $region10: #{generator_forward.12} parent=5 // pred_check_branch
      %176 = sbr.rel (%p173) target = $region12
    $region11: #{generator_forward.12} parent=5 // pred_region
      %s177 = ssub.s32 %s11, 1
      // Predicated region
      $region13: #{generator_forward.12} parent=11 // pred_check
        %p178 = pneg %p72
      $region14: #{generator_forward.12} parent=11 // pred_check_branch
        %180 = sbr.rel (%p178) target = $region16
      $region15: #{generator_forward.12} parent=11 // pred_region
        _
      $region16: #{generator_forward.12} parent=11 // pred_fallthru
        _
      // Predicated region
      $region17: #{generator_forward.12} parent=11 // pred_check
        %p181 = pneg %p93
      $region18: #{generator_forward.12} parent=11 // pred_check_branch
        %183 = sbr.rel (%p181) target = $region20
      $region19: #{generator_forward.12} parent=11 // pred_region
        _
      $region20: #{generator_forward.12} parent=11 // pred_fallthru
        _
      // Predicated region
      $region21: #{generator_forward.12} parent=11 // pred_check
        %p184 = pneg %p114
      $region22: #{generator_forward.12} parent=11 // pred_check_branch
        %186 = sbr.rel (%p184) target = $region24
      $region23: #{generator_forward.12} parent=11 // pred_region
        _
      $region24: #{generator_forward.12} parent=11 // pred_fallthru
        _
      // Predicated region
      $region25: #{generator_forward.12} parent=11 // pred_check
        %p187 = pneg %p135
      $region26: #{generator_forward.12} parent=11 // pred_check_branch
        %189 = sbr.rel (%p187) target = $region28
      $region27: #{generator_forward.12} parent=11 // pred_region
        _
      $region28: #{generator_forward.12} parent=11 // pred_fallthru
        _
    $region12: #{generator_forward.12} parent=5 // pred_fallthru
      _
    %p190 = scmp.lt.s32.totalorder %s11, 4
    // Predicated region
    $region29: #{generator_forward.12} parent=5 // pred_check
      %p191 = pneg %p190
    $region30: #{generator_forward.12} parent=5 // pred_check_branch
      %193 = sbr.rel (%p191) target = $region32
    $region31: #{generator_forward.12} parent=5 // pred_region
      // Predicated region
      $region33: #{generator_forward.12} parent=31 // pred_check
        %p194 = pneg %p45
      $region34: #{generator_forward.12} parent=31 // pred_check_branch
        %196 = sbr.rel (%p194) target = $region36
      $region35: #{generator_forward.12} parent=31 // pred_region
        %p197 = scmp.lt.s32.totalorder %s18, 3
        %s198 = scalar_select %p197, %s18, 3
        %p199 = scmp.lt.s32.totalorder %s19, 0
        %s200 = scalar_select %p199, %s19, 0
        %s201 = sadd.s32 %s200, %s198
        %s202 = smul.addr %s201, 8
        %s203 = scalar_lea.vmem %s0, %s202
      $region36: #{generator_forward.12} parent=31 // pred_fallthru
        _
    $region32: #{generator_forward.12} parent=5 // pred_fallthru
      _
    %p204 = scmp.le.s32.totalorder 1, %s11
    %p205 = scmp.lt.s32.totalorder %s11, 5
    %p206 = pnand %p204, %p205
    %p207 = pneg %p206
    // Predicated region
    $region37: #{generator_forward.12} parent=5 // pred_check
      _
    $region38: #{generator_forward.12} parent=5 // pred_check_branch
      %209 = sbr.rel (%p206) target = $region40
    $region39: #{generator_forward.12} parent=5 // pred_region
      %s210 = ssub.s32 %s11, 1
      %p211 = scmp.lt.s32.totalorder %s20, 3
      %s212 = scalar_select %p211, %s20, 3
      %p213 = scmp.lt.s32.totalorder %s21, 0
      %s214 = scalar_select %p213, %s21, 0
      %s215 = sadd.s32 %s214, %s212
      %s216 = smul.addr %s215, 8
      %s217 = scalar_lea.vmem %s0, %s216
      %p218 = pneg %p51
      %p219 = pneg %p48
      %p220 = pneg %p72
      %p221 = pneg %p69
      %p222 = pneg %p93
      %p223 = pneg %p90
      %p224 = pneg %p114
      %p225 = pneg %p111
      %p226 = pneg %p135
      %p227 = pneg %p132
      %p228 = pneg %p163
      %p229 = pneg %p160
      %p230 = scmp.lt.s32.totalorder %s20, 3
      %s231 = scalar_select %p230, %s20, 3
      %p232 = scmp.lt.s32.totalorder %s21, 0
      %s233 = scalar_select %p232, %s21, 0
      %s234 = sadd.s32 %s233, %s231
      %s235 = smul.addr %s234, 8
      %s236 = scalar_lea.vmem %s5, %s235
      %p237 = scmp.lt.s32.totalorder %s20, 3
      %s238 = scalar_select %p237, %s20, 3
      %p239 = scmp.lt.s32.totalorder %s21, 0
      %s240 = scalar_select %p239, %s21, 0
      %s241 = sadd.s32 %s240, %s238
      %s242 = smul.addr %s241, 8
      %s243 = scalar_lea.vmem %s0, %s242
      %p244 = scmp.lt.s32.totalorder %s20, 3
      %s245 = scalar_select %p244, %s20, 3
      %p246 = scmp.lt.s32.totalorder %s21, 0
      %s247 = scalar_select %p246, %s21, 0
      %s248 = sadd.s32 %s247, %s245
      %s249 = smul.addr %s248, 8
      %s250 = scalar_lea.vmem %s5, %s249
      %v251 = vld [vmem:[%s1] sm:$0xff]
      %v252 = vmul.f32 %v251, 0.001953125
      %v253 = vld [vmem:[%s2] sm:$0xff]
      %v254 = vmul.f32 %v253, 0.001953125
      %v255 = vmul.f32 %v252, %v252
      %v256 = vsub.f32 %v254, %v255
      %v257 = vld [vmem:[%s3] sm:$0xff]
      %v258 = vadd.f32 %v256, 1e-05
      %v259 = vrsqrt.pop %v258
      %v260 = vmul.f32 %v257, %v259
      %v261 = vld [vmem:[%s4] sm:$0xff]
      %v262 = vmul.f32 %v252, %v260
      %v263 = vsub.f32 %v261, %v262
      %v264 = vld [vmem:[%s243] sm:$0xff]
      %266 = vset.pattern.permute.xlu0 0
      %267 = vperm.xlu0 %266, %v260
      %v268 = vpop.permute.xlu0 %267
      %v270 = vmul.f32 %v264, %v268
      %272 = vset.pattern.permute.xlu0 0
      %273 = vperm.xlu0 %272, %v263
      %v274 = vpop.permute.xlu0 %273
      %v276 = vadd.f32 %v270, %v274
      %v277 = vmax.f32 %v276, 0.0
      %278 = vst [vmem:[%s250] sm:$0xff] %v277
      %p279 = scmp.lt.s32.totalorder %s20, 3
      %s280 = scalar_select %p279, %s20, 3
      %p281 = scmp.lt.s32.totalorder %s21, 0
      %s282 = scalar_select %p281, %s21, 0
      %s283 = sadd.s32 %s282, %s280
      %s284 = smul.addr %s283, 8
      %s285 = scalar_lea.vmem %s5, %s284
      // Predicated region
      $region41: #{generator_forward.12} parent=39 // pred_check
        %p286 = pneg %p160
      $region42: #{generator_forward.12} parent=39 // pred_check_branch
        %288 = sbr.rel (%p286) target = $region44
      $region43: #{generator_forward.12} parent=39 // pred_region
        _
      $region44: #{generator_forward.12} parent=39 // pred_fallthru
        _
    $region40: #{generator_forward.12} parent=5 // pred_fallthru
      _
    %p289 = scmp.le.s32.totalorder 2, %s11
    // Predicated region
    $region45: #{generator_forward.12} parent=5 // pred_check
      %p290 = pneg %p289
    $region46: #{generator_forward.12} parent=5 // pred_check_branch
      %292 = sbr.rel (%p290) target = $region48
    $region47: #{generator_forward.12} parent=5 // pred_region
      %s293 = ssub.s32 %s11, 2
      // Predicated region
      $region49: #{generator_forward.12} parent=47 // pred_check
        %p294 = pneg %p166
      $region50: #{generator_forward.12} parent=47 // pred_check_branch
        %296 = sbr.rel (%p294) target = $region52
      $region51: #{generator_forward.12} parent=47 // pred_region
        %p297 = scmp.lt.s32.totalorder %s22, 3
        %s298 = scalar_select %p297, %s22, 3
        %p299 = scmp.lt.s32.totalorder %s23, 0
        %s300 = scalar_select %p299, %s23, 0
        %s301 = sadd.s32 %s300, %s298
        %s302 = smul.addr %s301, 8
        %s303 = scalar_lea.vmem %s5, %s302
      $region52: #{generator_forward.12} parent=47 // pred_fallthru
        _
    $region48: #{generator_forward.12} parent=5 // pred_fallthru
      _
  $region6: #{generator_forward.12} parent=0 // loop_footer
    %s15 = sadd.s32 1, %s11
  $region7: #{generator_forward.12} parent=0 // loop_footer_branch
    %10 = sbr.rel target = $region3
  $region8: #{generator_forward.12} parent=0 // loop_exit
    _

// kernel: generator_forward.13
$region0: #{generator_forward.13}
  #allocation0 [shape = 'u32[]', space=smem, size = 0x4, offset = 0x4, fixed_abs, tag = 'smem constant byte address 0x4 - core index']
  #allocation1 [shape = 'u32[144,128]{1,0:T(1,128)}', space=vmem, size = 0x12000, scoped, tag = 'internal scratch']
  %s0 = inlined_call_operand.vmem [shape: bf16[4,3,32], index: 0, kind: input, shape index: {}]
  %s1 = inlined_call_operand.vmem [shape: bf16[4,32,512], index: 1, kind: input, shape index: {}]
  %s2 = inlined_call_operand.vmem [shape: f32[4,3,512], index: 2, kind: output, shape index: {}]
  %s3 = sld [smem:[#allocation0]]
  $region41: #{generator_forward.13} parent=0
    _
  %s5 = ssub.s32 1, %s3
  %s6 = scalar_select 0, %s5, %s3
  loop: start=0, step=1, limit=6
  $region2: #{generator_forward.13} parent=0 // loop_pre_header
    _
  $region3: #{generator_forward.13} parent=0 // loop_header
    %s8 = sphi 0, %s12
    %p9 = scmp.ge.s32.totalorder %s8, 6
    %s15 = sphi 0, %s27
    %s16 = sphi 0, %s23
    %s17 = sphi 0, %s15
    %s18 = sphi 0, %s16
    %s19 = sphi 0, %s17
    %s20 = sphi 0, %s18
    %s30 = sphi 0, %s32
    %s33 = sphi 0, %s30
    %s34 = sphi 0, %s33
    %s50 = sphi 0, %s34
    %s58 = sphi 0, %s60
    %s61 = sphi 0, %s58
    %s62 = sphi 0, %s61
    %s78 = sphi 0, %s62
    %s86 = sphi 0, %s88
    %s89 = sphi 0, %s86
    %s90 = sphi 0, %s89
    %s106 = sphi 0, %s90
  $region4: #{generator_forward.13} parent=0 // loop_header_branch
    %11 = sbr.rel (%p9) target = $region8
  $region5: #{generator_forward.13} parent=0 // loop_body
    %s13 = ssub.s32 %s8, 1
    %s14 = ssub.s32 %s8, 2
    %s21 = sadd.s32 1, %s16
    %p22 = scmp.ge.s32.totalorder %s21, 1
    %s23 = scalar_select %p22, 0, %s21
    %s24 = sadd.s32 1, %s15
    %s25 = scalar_select %p22, %s24, %s15
    %p26 = scmp.ge.s32.totalorder %s25, 4
    %s27 = scalar_select %p26, 0, %s25
    %s28 = ssub.s32 %s15, %s27
    %p29 = scmp.eq.s32.totalorder %s28, 0
    %s31 = sadd.s32 %s30, 1
    %s32 = scalar_select %p29, %s30, %s31
    %p35 = pneg %p29
    %p36 = scmp.eq.s32.totalorder %s8, 3
    %p37 = por %p35, %p36
    %p38 = scmp.ne.s32.totalorder %s30, %s33
    %p39 = scmp.eq.s32.totalorder %s8, 0
    %p40 = por %p38, %p39
    %p41 = scmp.ne.s32.totalorder %s30, %s33
    %p42 = scmp.eq.s32.totalorder %s13, 3
    %p43 = por %p41, %p42
    %p44 = scmp.ne.s32.totalorder %s33, %s34
    %p45 = scmp.eq.s32.totalorder %s13, 0
    %p46 = por %p44, %p45
    %p47 = scmp.ne.s32.totalorder %s33, %s34
    %p48 = scmp.eq.s32.totalorder %s14, 3
    %p49 = por %p47, %p48
    %p51 = scmp.ne.s32.totalorder %s34, %s50
    %p52 = scmp.eq.s32.totalorder %s14, 0
    %p53 = por %p51, %p52
    %s54 = ssub.s32 %s15, %s27
    %s55 = ssub.s32 %s16, %s23
    %s56 = sor.u32 %s54, %s55
    %p57 = scmp.eq.s32.totalorder %s56, 0
    %s59 = sadd.s32 %s58, 1
    %s60 = scalar_select %p57, %s58, %s59
    %p63 = pneg %p57
    %p64 = scmp.eq.s32.totalorder %s8, 3
    %p65 = por %p63, %p64
    %p66 = scmp.ne.s32.totalorder %s58, %s61
    %p67 = scmp.eq.s32.totalorder %s8, 0
    %p68 = por %p66, %p67
    %p69 = scmp.ne.s32.totalorder %s58, %s61
    %p70 = scmp.eq.s32.totalorder %s13, 3
    %p71 = por %p69, %p70
    %p72 = scmp.ne.s32.totalorder %s61, %s62
    %p73 = scmp.eq.s32.totalorder %s13, 0
    %p74 = por %p72, %p73
    %p75 = scmp.ne.s32.totalorder %s61, %s62
    %p76 = scmp.eq.s32.totalorder %s14, 3
    %p77 = por %p75, %p76
    %p79 = scmp.ne.s32.totalorder %s62, %s78
    %p80 = scmp.eq.s32.totalorder %s14, 0
    %p81 = por %p79, %p80
    %s82 = ssub.s32 %s15, %s27
    %s83 = ssub.s32 %s16, %s23
    %s84 = sor.u32 %s82, %s83
    %p85 = scmp.eq.s32.totalorder %s84, 0
    %s87 = sadd.s32 %s86, 1
    %s88 = scalar_select %p85, %s86, %s87
    %p91 = pneg %p85
    %p92 = scmp.eq.s32.totalorder %s8, 3
    %p93 = por %p91, %p92
    %p94 = scmp.ne.s32.totalorder %s86, %s89
    %p95 = scmp.eq.s32.totalorder %s8, 0
    %p96 = por %p94, %p95
    %p97 = scmp.ne.s32.totalorder %s86, %s89
    %p98 = scmp.eq.s32.totalorder %s13, 3
    %p99 = por %p97, %p98
    %p100 = scmp.ne.s32.totalorder %s89, %s90
    %p101 = scmp.eq.s32.totalorder %s13, 0
    %p102 = por %p100, %p101
    %p103 = scmp.ne.s32.totalorder %s89, %s90
    %p104 = scmp.eq.s32.totalorder %s14, 3
    %p105 = por %p103, %p104
    %p107 = scmp.ne.s32.totalorder %s90, %s106
    %p108 = scmp.eq.s32.totalorder %s14, 0
    %p109 = por %p107, %p108
    %p110 = scmp.le.s32.totalorder 1, %s8
    %p111 = scmp.lt.s32.totalorder %s8, 5
    %p112 = pnand %p110, %p111
    %p113 = pneg %p112
    // Predicated region
    $region9: #{generator_forward.13} parent=5 // pred_check
      _
    $region10: #{generator_forward.13} parent=5 // pred_check_branch
      %115 = sbr.rel (%p112) target = $region12
    $region11: #{generator_forward.13} parent=5 // pred_region
      %s116 = ssub.s32 %s8, 1
    $region12: #{generator_forward.13} parent=5 // pred_fallthru
      _
    %p117 = scmp.lt.s32.totalorder %s8, 4
    // Predicated region
    $region13: #{generator_forward.13} parent=5 // pred_check
      %p118 = pneg %p117
    $region14: #{generator_forward.13} parent=5 // pred_check_branch
      %120 = sbr.rel (%p118) target = $region16
    $region15: #{generator_forward.13} parent=5 // pred_region
      // Predicated region
      $region17: #{generator_forward.13} parent=15 // pred_check
        %p121 = pneg %p40
      $region18: #{generator_forward.13} parent=15 // pred_check_branch
        %123 = sbr.rel (%p121) target = $region20
      $region19: #{generator_forward.13} parent=15 // pred_region
        %p124 = scmp.lt.s32.totalorder %s15, 3
        %s125 = scalar_select %p124, %s15, 3
        %s126 = smul.addr %s125, 2
        %s127 = scalar_lea.vmem %s0, %s126
      $region20: #{generator_forward.13} parent=15 // pred_fallthru
        _
      // Predicated region
      $region21: #{generator_forward.13} parent=15 // pred_check
        %p128 = pneg %p68
      $region22: #{generator_forward.13} parent=15 // pred_check_branch
        %130 = sbr.rel (%p128) target = $region24
      $region23: #{generator_forward.13} parent=15 // pred_region
        %s131 = smul.u32 4, %s16
        %p132 = scmp.lt.s32.totalorder %s15, 3
        %s133 = scalar_select %p132, %s15, 3
        %p134 = scmp.lt.s32.totalorder %s131, 3
        %s135 = scalar_select %p134, %s131, 3
        %s136 = smul.addr %s133, 16
        %s137 = sadd.s32 %s135, %s136
        %s138 = smul.addr %s137, 4
        %s139 = scalar_lea.vmem %s1, %s138
        %s140 = smul.u32 4, %s16
      $region24: #{generator_forward.13} parent=15 // pred_fallthru
        _
    $region16: #{generator_forward.13} parent=5 // pred_fallthru
      _
    %p141 = scmp.le.s32.totalorder 1, %s8
    %p142 = scmp.lt.s32.totalorder %s8, 5
    %p143 = pnand %p141, %p142
    %p144 = pneg %p143
    // Predicated region
    $region25: #{generator_forward.13} parent=5 // pred_check
      _
    $region26: #{generator_forward.13} parent=5 // pred_check_branch
      %146 = sbr.rel (%p143) target = $region28
    $region27: #{generator_forward.13} parent=5 // pred_region
      %s147 = ssub.s32 %s8, 1
      %p148 = scmp.lt.s32.totalorder %s17, 3
      %s149 = scalar_select %p148, %s17, 3
      %s150 = smul.addr %s149, 2
      %s151 = scalar_lea.vmem %s0, %s150
      %p152 = pneg %p46
      %p153 = pneg %p43
      %s154 = smul.u32 4, %s18
      %p155 = scmp.lt.s32.totalorder %s17, 3
      %s156 = scalar_select %p155, %s17, 3
      %p157 = scmp.lt.s32.totalorder %s154, 3
      %s158 = scalar_select %p157, %s154, 3
      %s159 = smul.addr %s156, 16
      %s160 = sadd.s32 %s158, %s159
      %s161 = smul.addr %s160, 4
      %s162 = scalar_lea.vmem %s1, %s161
      %p163 = pneg %p74
      %p164 = pneg %p71
      %p165 = pneg %p102
      %p166 = pneg %p99
      %s167 = smul.u32 4, %s18
      %p168 = scmp.lt.s32.totalorder %s17, 3
      %s169 = scalar_select %p168, %s17, 3
      %p170 = scmp.lt.s32.totalorder %s167, 3
      %s171 = scalar_select %p170, %s167, 3
      %s172 = smul.addr %s169, 4
      %s173 = sadd.s32 %s171, %s172
      %s174 = smul.addr %s173, 4
      %s175 = scalar_lea.vmem %s2, %s174
      %p176 = scmp.lt.s32.totalorder %s17, 3
      %s177 = scalar_select %p176, %s17, 3
      %s178 = smul.addr %s177, 2
      %s179 = scalar_lea.vmem %s0, %s178
      %s180 = smul.u32 4, %s18
      %p181 = scmp.lt.s32.totalorder %s17, 3
      %s182 = scalar_select %p181, %s17, 3
      %p183 = scmp.lt.s32.totalorder %s180, 3
      %s184 = scalar_select %p183, %s180, 3
      %s185 = smul.addr %s182, 16
      %s186 = sadd.s32 %s184, %s185
      %s187 = smul.addr %s186, 4
      %s188 = scalar_lea.vmem %s1, %s187
      %s189 = smul.u32 4, %s18
      %s190 = smul.u32 4, %s18
      %p191 = scmp.lt.s32.totalorder %s17, 3
      %s192 = scalar_select %p191, %s17, 3
      %p193 = scmp.lt.s32.totalorder %s190, 3
      %s194 = scalar_select %p193, %s190, 3
      %s195 = smul.addr %s192, 4
      %s196 = sadd.s32 %s194, %s195
      %s197 = smul.addr %s196, 4
      %s198 = scalar_lea.vmem %s2, %s197
      %s199 = smul.u32 4, %s18
      %v201 = vld [vmem:[%s179] sm:$0x3]
      %v202 = vld [vmem:[%s188] sm:$0xff]
      %v203 = vld [vmem:[%s188 + $0x8] sm:$0xff]
      %v204 = vld [vmem:[%s188 + $0x10] sm:$0xff]
      %v205 = vld [vmem:[%s188 + $0x18] sm:$0xff]
      %v206 = vld [vmem:[%s188 + $0x20] sm:$0xff]
      %v207 = vld [vmem:[%s188 + $0x28] sm:$0xff]
      %v208 = vld [vmem:[%s188 + $0x30] sm:$0xff]
      %v209 = vld [vmem:[%s188 + $0x38] sm:$0xff]
      %v218 = vunpack.c.l.b16 %v202
      %v219 = vunpack.c.h.b16 %v202
      %v220 = vunpack.c.l.b16 %v203
      %v221 = vunpack.c.h.b16 %v203
      %v222 = vunpack.c.l.b16 %v204
      %v223 = vunpack.c.h.b16 %v204
      %v224 = vunpack.c.l.b16 %v205
      %v225 = vunpack.c.h.b16 %v205
      %v226 = vunpack.c.l.b16 %v206
      %v227 = vunpack.c.h.b16 %v206
      %v228 = vunpack.c.l.b16 %v207
      %v229 = vunpack.c.h.b16 %v207
      %v230 = vunpack.c.l.b16 %v208
      %v231 = vunpack.c.h.b16 %v208
      %v232 = vunpack.c.l.b16 %v209
      %v233 = vunpack.c.h.b16 %v209
      %v234 = vpack.c.b16 %v222, %v218
      %v235 = vpack.c.b16 %v223, %v219
      %v236 = vpack.c.b16 %v224, %v220
      %v237 = vpack.c.b16 %v225, %v221
      %v238 = vpack.c.b16 %v230, %v226
      %v239 = vpack.c.b16 %v231, %v227
      %v240 = vpack.c.b16 %v232, %v228
      %v241 = vpack.c.b16 %v233, %v229
      %vm250 = vcmask 261120
      %v252 = vsel %vm250, %v201, 0
      %254 = vmatprep.subr.bf16.mxu0 0
      %255 = vmatpush1.bf16.msra.mxu0 0
      %256 = vmatprep.subr.bf16.mxu0 0
      %257 = vmatpush1.bf16.msra.mxu0 0
      %258 = vmatprep.subr.bf16.mxu0 0
      %259 = vmatpush1.bf16.msra.mxu0 0
      %260 = vmatprep.subr.bf16.mxu0 0
      %261 = vmatpush1.bf16.msra.mxu0 0
      %262 = vmatprep.subr.bf16.mxu0 0
      %263 = vmatpush1.bf16.msra.mxu0 0
      %264 = vmatprep.subr.bf16.mxu0 0
      %265 = vmatpush1.bf16.msra.mxu0 0
      %266 = vmatprep.subr.bf16.mxu0 %v239
      %267 = vmatpush1.bf16.msra.mxu0 %v238
      %268 = vmatprep.subr.bf16.mxu0 %v235
      %269 = vmatpush1.bf16.msra.mxu0 %v234
      %270 = vmatprep.subr.bf16.mxu0 0
      %271 = vmatpush2.bf16.msra.mxu0 0
      %272 = vmatprep.subr.bf16.mxu0 0
      %273 = vmatpush2.bf16.msra.mxu0 0
      %274 = vmatprep.subr.bf16.mxu0 0
      %275 = vmatpush2.bf16.msra.mxu0 0
      %276 = vmatprep.subr.bf16.mxu0 0
      %277 = vmatpush2.bf16.msra.mxu0 0
      %278 = vmatprep.subr.bf16.mxu0 0
      %279 = vmatpush2.bf16.msra.mxu0 0
      %280 = vmatprep.subr.bf16.mxu0 0
      %281 = vmatpush2.bf16.msra.mxu0 0
      %282 = vmatprep.subr.bf16.mxu0 0
      %283 = vmatpush2.bf16.msra.mxu0 0
      %284 = vmatprep.subr.bf16.mxu0 0
      %285 = vmatpush2.bf16.msra.mxu0 0
      %286 = vmatprep.mubr.bf16.mxu0 0
      %287 = vmatmul.mubr.bf16.gmra.mxu0 %v252
      %v288 = vpop.f32.mrf.mxu0
      %v289 = vadd.f32 0.0, %v288
      %v290 = vpop.f32.mrf.mxu0
      %v291 = vadd.f32 0.0, %v290
      %v292 = vpop.f32.mrf.mxu0
      %v293 = vpop.f32.mrf.mxu0
      %294 = vdwg.mxu0
      %295 = vmatprep.subr.bf16.mxu0 0
      %296 = vmatpush1.bf16.msra.mxu0 0
      %297 = vmatprep.subr.bf16.mxu0 0
      %298 = vmatpush1.bf16.msra.mxu0 0
      %299 = vmatprep.subr.bf16.mxu0 0
      %300 = vmatpush1.bf16.msra.mxu0 0
      %301 = vmatprep.subr.bf16.mxu0 0
      %302 = vmatpush1.bf16.msra.mxu0 0
      %303 = vmatprep.subr.bf16.mxu0 0
      %304 = vmatpush1.bf16.msra.mxu0 0
      %305 = vmatprep.subr.bf16.mxu0 0
      %306 = vmatpush1.bf16.msra.mxu0 0
      %307 = vmatprep.subr.bf16.mxu0 %v241
      %308 = vmatpush1.bf16.msra.mxu0 %v240
      %309 = vmatprep.subr.bf16.mxu0 %v237
      %310 = vmatpush1.bf16.msra.mxu0 %v236
      %311 = vmatprep.subr.bf16.mxu0 0
      %312 = vmatpush2.bf16.msra.mxu0 0
      %313 = vmatprep.subr.bf16.mxu0 0
      %314 = vmatpush2.bf16.msra.mxu0 0
      %315 = vmatprep.subr.bf16.mxu0 0
      %316 = vmatpush2.bf16.msra.mxu0 0
      %317 = vmatprep.subr.bf16.mxu0 0
      %318 = vmatpush2.bf16.msra.mxu0 0
      %319 = vmatprep.subr.bf16.mxu0 0
      %320 = vmatpush2.bf16.msra.mxu0 0
      %321 = vmatprep.subr.bf16.mxu0 0
      %322 = vmatpush2.bf16.msra.mxu0 0
      %323 = vmatprep.subr.bf16.mxu0 0
      %324 = vmatpush2.bf16.msra.mxu0 0
      %325 = vmatprep.subr.bf16.mxu0 0
      %326 = vmatpush2.bf16.msra.mxu0 0
      %327 = vmatprep.mubr.bf16.mxu0 0
      %328 = vmatmul.mubr.bf16.gmra.mxu0 %v252
      %v329 = vpop.f32.mrf.mxu0
      %v330 = vadd.f32 0.0, %v329
      %v331 = vpop.f32.mrf.mxu0
      %v332 = vadd.f32 0.0, %v331
      %v333 = vpop.f32.mrf.mxu0
      %v334 = vpop.f32.mrf.mxu0
      %335 = vdwg.mxu0
      %v336 = vtanh.pop %v289
      %v337 = vtanh.pop %v291
      %v338 = vtanh.pop %v330
      %v339 = vtanh.pop %v332
      %v344 = vcombine.low %v336, %v337
      %v345 = vcombine.low %v338, %v339
      %348 = vst [vmem:[%s198] sm:$0x77] %v344
      %349 = vst [vmem:[%s198 + $0x8] sm:$0x77] %v345
      %s350 = smul.u32 4, %s18
      %p351 = scmp.lt.s32.totalorder %s17, 3
      %s352 = scalar_select %p351, %s17, 3
      %p353 = scmp.lt.s32.totalorder %s350, 3
      %s354 = scalar_select %p353, %s350, 3
      %s355 = smul.addr %s352, 4
      %s356 = sadd.s32 %s354, %s355
      %s357 = smul.addr %s356, 4
      %s358 = scalar_lea.vmem %s2, %s357
      // Predicated region
      $region29: #{generator_forward.13} parent=27 // pred_check
        %p359 = pneg %p99
      $region30: #{generator_forward.13} parent=27 // pred_check_branch
        %361 = sbr.rel (%p359) target = $region32
      $region31: #{generator_forward.13} parent=27 // pred_region
        %s362 = smul.u32 4, %s18
      $region32: #{generator_forward.13} parent=27 // pred_fallthru
        _
    $region28: #{generator_forward.13} parent=5 // pred_fallthru
      _
    %p363 = scmp.le.s32.totalorder 2, %s8
    // Predicated region
    $region33: #{generator_forward.13} parent=5 // pred_check
      %p364 = pneg %p363
    $region34: #{generator_forward.13} parent=5 // pred_check_branch
      %366 = sbr.rel (%p364) target = $region36
    $region35: #{generator_forward.13} parent=5 // pred_region
      %s367 = ssub.s32 %s8, 2
      // Predicated region
      $region37: #{generator_forward.13} parent=35 // pred_check
        %p368 = pneg %p105
      $region38: #{generator_forward.13} parent=35 // pred_check_branch
        %370 = sbr.rel (%p368) target = $region40
      $region39: #{generator_forward.13} parent=35 // pred_region
        %s371 = smul.u32 4, %s20
        %p372 = scmp.lt.s32.totalorder %s19, 3
        %s373 = scalar_select %p372, %s19, 3
        %p374 = scmp.lt.s32.totalorder %s371, 3
        %s375 = scalar_select %p374, %s371, 3
        %s376 = smul.addr %s373, 4
        %s377 = sadd.s32 %s375, %s376
        %s378 = smul.addr %s377, 4
        %s379 = scalar_lea.vmem %s2, %s378
      $region40: #{generator_forward.13} parent=35 // pred_fallthru
        _
    $region36: #{generator_forward.13} parent=5 // pred_fallthru
      _
  $region6: #{generator_forward.13} parent=0 // loop_footer
    %s12 = sadd.s32 1, %s8
  $region7: #{generator_forward.13} parent=0 // loop_footer_branch
    %7 = sbr.rel target = $region3
  $region8: #{generator_forward.13} parent=0 // loop_exit
    _

</llo_original>
